<compile_context>
chip_gen: v5e
topology: v5e:2x2
jax: 0.10.0
libtpu: 0.0.40
codegen_flags: <defaults>
</compile_context>

<pallas_src>
import numpy as np
import jax
import jax.numpy as jnp
from jax.experimental import pallas as pl
from jax.experimental.pallas import tpu as pltpu

SAMPLE_RATE = 16000
N_FFT = 512
HOP = int(0.01 * SAMPLE_RATE)      # 160
WIN = int(0.03 * SAMPLE_RATE)      # 480
N_MELS = 80
N_FREQ = N_FFT // 2 + 1            # 257
N_FREQ_PAD = 384                   # 257 -> 3*128 lanes (zero-padded)
N_MELS_PAD = 128                   # 80  -> 128 lanes (zero-padded)
N_CHUNKS = 4                       # ceil(N_FFT / HOP): each frame = 4 hop-rows
DFT_ROWS = N_CHUNKS * HOP          # 640; rows 512..639 are zero padding
TAIL = 8                           # extra hop-rows appended per tile (need >= 3)
LOG_EPS = 1e-10
NEG_INF = -1e30
MAX_TT = 512                       # frontend time tile (frames), multiple of 16
MAX_TT2 = 2048                     # head/loss time tile (frames)


def _round_up(x, m):
    return ((x + m - 1) // m) * m


# ----------------------------- parameter setup (host-side glue) -----------------------------
def _hann_window(win_length, n_fft):
    n = np.arange(win_length)
    w = 0.5 * (1.0 - np.cos(2.0 * np.pi * n / win_length))   # periodic hann
    pad_l = (n_fft - win_length) // 2
    pad_r = n_fft - win_length - pad_l
    return np.pad(w, (pad_l, pad_r))


def _dft_matrix_split():
    """Hann window and 1/sqrt(n_fft) (torch.stft normalized=True) folded into the DFT
    matrices, cos||sin concatenated and lane-padded to 2*N_FREQ_PAD columns, then
    row-padded 512->640 so chunk k of a frame (hop-row t+k) multiplies rows
    [k*HOP, (k+1)*HOP).  Returns [640, 768] f32 (cast to bf16 by the caller)."""
    win = _hann_window(WIN, N_FFT)
    w_idx = np.arange(N_FFT)
    f_idx = np.arange(N_FREQ)
    ang = 2.0 * np.pi * np.outer(w_idx, f_idx) / N_FFT
    norm = 1.0 / np.sqrt(N_FFT)
    cosW = win[:, None] * np.cos(ang) * norm
    sinW = -win[:, None] * np.sin(ang) * norm
    pad = N_FREQ_PAD - N_FREQ
    cosW = np.pad(cosW, ((0, 0), (0, pad)))
    sinW = np.pad(sinW, ((0, 0), (0, pad)))
    W = np.concatenate([cosW, sinW], axis=1)                  # [512, 768]
    return np.pad(W, ((0, DFT_ROWS - N_FFT), (0, 0))).astype(np.float32)


def _mel_filterbank(n_freqs, n_mels, f_min, f_max, sr):
    def hz_to_mel(f): return 2595.0 * np.log10(1.0 + f / 700.0)
    def mel_to_hz(m): return 700.0 * (10.0 ** (m / 2595.0) - 1.0)
    m_pts = np.linspace(hz_to_mel(f_min), hz_to_mel(f_max), n_mels + 2)
    f_pts = mel_to_hz(m_pts)
    freqs = np.linspace(0.0, sr / 2.0, n_freqs)
    fb = np.zeros((n_freqs, n_mels), dtype=np.float64)
    for i in range(n_mels):
        l, c, r = f_pts[i], f_pts[i + 1], f_pts[i + 2]
        up = (freqs - l) / max(c - l, 1e-9)
        dn = (r - freqs) / max(r - c, 1e-9)
        fb[:, i] = np.maximum(0.0, np.minimum(up, dn))
    out = np.zeros((N_FREQ_PAD, N_MELS_PAD), dtype=np.float32)   # zero padding is exact
    out[:n_freqs, :n_mels] = fb
    return out


# ----------------------------- Pallas kernels -----------------------------
def _frontend_kernel(lens_ref, main_ref, tail_ref, dft_ref, mel_ref, w_ref,
                     proj_ref, sums_ref):
    """Per (batch, T-tile): framing-by-matmul-decomposition STFT power -> mel -> log,
    masked feature sums for the streaming UtteranceMVN mean, and the (stand-in) vocab
    projection proj = logmel @ W (bf16)."""
    b = pl.program_id(0)
    j = pl.program_id(1)
    tT = main_ref.shape[1]

    n_valid = lens_ref[b]
    tile_active = (j * tT) < n_valid

    @pl.when(tile_active)
    def _():
        # hop-rows for this tile: rows [j*tT, j*tT + tT + TAIL) of the padded waveform.
        rows = jnp.concatenate([main_ref[0], tail_ref[0]], axis=0)     # [tT+TAIL, HOP] f32
        # frame[t, k*HOP + m] = rows[t + k, m]  ->  re_im = sum_k rows[k:k+tT] @ dft[k]
        re_im = jnp.zeros((tT, 2 * N_FREQ_PAD), jnp.float32)
        for k in range(N_CHUNKS):
            chunk = rows[k:k + tT, :].astype(jnp.bfloat16)             # bf16 just before MXU
            re_im = re_im + jnp.dot(chunk, dft_ref[k * HOP:(k + 1) * HOP, :],
                                    preferred_element_type=jnp.float32)
        re = re_im[:, :N_FREQ_PAD]
        im = re_im[:, N_FREQ_PAD:]
        power = (re * re + im * im).astype(jnp.bfloat16)               # [tT, 384]
        mel = jnp.dot(power, mel_ref[...], preferred_element_type=jnp.float32)
        logmel = jnp.log(jnp.maximum(mel, LOG_EPS))                    # [tT, 128] f32

        row = jax.lax.broadcasted_iota(jnp.int32, (tT, 1), 0) + j * tT
        maskf = (row < n_valid).astype(jnp.float32)
        sums_ref[...] = jnp.sum(logmel * maskf, axis=0,
                                keepdims=True).reshape(1, 1, 1, N_MELS_PAD)

        proj = jnp.dot(logmel.astype(jnp.bfloat16), w_ref[...],
                       preferred_element_type=jnp.float32)             # [tT, 128]
        proj_ref[0] = proj.astype(jnp.bfloat16)

    @pl.when(jnp.logical_not(tile_active))
    def _():
        # Fully masked tile: skip the MXU work, keep outputs finite/zero.
        sums_ref[...] = jnp.zeros_like(sums_ref)
        proj_ref[...] = jnp.zeros_like(proj_ref)


def frontend(main, tail, feats_lengths, dftW, melW, w_out, tT):
    B, T_pad, _ = main.shape
    nT = T_pad // tT
    return pl.pallas_call(
        _frontend_kernel,
        out_shape=(
            jax.ShapeDtypeStruct((B, T_pad, N_MELS_PAD), jnp.bfloat16),   # proj = logmel @ W
            jax.ShapeDtypeStruct((B, nT, 1, N_MELS_PAD), jnp.float32),    # masked log-mel sums
        ),
        grid_spec=pltpu.PrefetchScalarGridSpec(
            num_scalar_prefetch=1,
            grid=(B, nT),
            in_specs=[
                pl.BlockSpec((1, tT, HOP), lambda b, j, lens: (b, j, 0)),
                pl.BlockSpec((1, TAIL, HOP), lambda b, j, lens: (b, j, 0)),
                pl.BlockSpec((DFT_ROWS, 2 * N_FREQ_PAD), lambda b, j, lens: (0, 0)),
                pl.BlockSpec((N_FREQ_PAD, N_MELS_PAD), lambda b, j, lens: (0, 0)),
                pl.BlockSpec((N_MELS_PAD, N_MELS_PAD), lambda b, j, lens: (0, 0)),
            ],
            out_specs=[
                pl.BlockSpec((1, tT, N_MELS_PAD), lambda b, j, lens: (b, j, 0)),
                pl.BlockSpec((1, 1, 1, N_MELS_PAD), lambda b, j, lens: (b, j, 0, 0)),
            ],
        ),
        compiler_params=pltpu.CompilerParams(
            dimension_semantics=("parallel", "parallel")),
    )(feats_lengths, main, tail, dftW, melW, w_out)


def _head_loss_kernel(lens_ref, proj_ref, shift_ref, loss_ref):
    """Per (batch, big T-tile): logits = proj - (mean@W - b), log-softmax, masked
    blank-token NLL partial sum.  Pure VPU/EUP (no matmul)."""
    b = pl.program_id(0)
    j = pl.program_id(1)
    tT = proj_ref.shape[1]

    n_valid = lens_ref[b]
    tile_active = (j * tT) < n_valid

    @pl.when(tile_active)
    def _():
        logits = proj_ref[0].astype(jnp.float32) - shift_ref[0]          # [tT, 128]
        m = jnp.max(logits, axis=-1, keepdims=True)
        z = logits - m
        lse = jnp.log(jnp.sum(jnp.exp(z), axis=-1, keepdims=True))
        lp_blank = z[:, :1] - lse                                        # [tT, 1]
        row = jax.lax.broadcasted_iota(jnp.int32, (tT, 1), 0) + j * tT
        maskf = (row < n_valid).astype(jnp.float32)
        ps = jnp.sum(lp_blank * maskf, axis=0, keepdims=True)            # [1, 1]
        loss_ref[...] = (ps * jnp.ones((1, N_MELS_PAD), jnp.float32)
                         ).reshape(1, 1, 1, N_MELS_PAD)

    @pl.when(jnp.logical_not(tile_active))
    def _():
        loss_ref[...] = jnp.zeros_like(loss_ref)


def head_loss(proj, shift, feats_lengths, tT2):
    B, T_pad, _ = proj.shape
    nT2 = T_pad // tT2
    return pl.pallas_call(
        _head_loss_kernel,
        out_shape=jax.ShapeDtypeStruct((B, nT2, 1, N_MELS_PAD), jnp.float32),
        grid_spec=pltpu.PrefetchScalarGridSpec(
            num_scalar_prefetch=1,
            grid=(B, nT2),
            in_specs=[
                pl.BlockSpec((1, tT2, N_MELS_PAD), lambda b, j, lens: (b, j, 0)),
                pl.BlockSpec((1, 1, N_MELS_PAD), lambda b, j, lens: (b, 0, 0)),
            ],
            out_specs=pl.BlockSpec((1, 1, 1, N_MELS_PAD), lambda b, j, lens: (b, j, 0, 0)),
        ),
        compiler_params=pltpu.CompilerParams(
            dimension_semantics=("parallel", "parallel")),
    )(feats_lengths, proj, shift)


# ----------------------------- forward (ASRModel.forward) -----------------------------
def asr_forward(speech, speech_lengths, text, text_lengths, params):
    # _extract_feats: CustomFrontend (centered STFT, normalized, hop=160, win=480,
    # n_fft=512, n_mels=80) + UtteranceMVN (norm_means only).  SpecAug is training-only.
    B, L = speech.shape
    pad = N_FFT // 2
    T = L // HOP + 1

    # Frontend time tile: multiple of 16, <= MAX_TT; if a single batch element fits in
    # one tile, split it in two so both v7x TensorCores get a "parallel" grid step.
    T16 = _round_up(max(T, 1), 16)
    if B == 1 and T16 <= MAX_TT:
        tT = max(16, _round_up(-(-T16 // 2), 16))
    else:
        tT = min(MAX_TT, T16)
    T_pad = _round_up(T, tT)
    nT = T_pad // tT

    # center=True reflect pad, then zero-extend so the waveform reshapes into
    # (T_pad + TAIL) hop-rows of HOP samples.  No gather: framing happens in-kernel.
    sp = jnp.pad(speech, ((0, 0), (pad, pad)), mode="reflect")
    need = (T_pad + TAIL) * HOP
    if need > sp.shape[1]:
        sp = jnp.pad(sp, ((0, 0), (0, need - sp.shape[1])))
    else:
        sp = sp[:, :need]
    rows = sp.reshape(B, T_pad + TAIL, HOP)                       # [B, T_pad+8, 160] f32
    main = rows[:, :T_pad]
    tail = jnp.concatenate(
        [rows[:, (j + 1) * tT:(j + 1) * tT + TAIL] for j in range(nT)], axis=1)
    feats_lengths = (speech_lengths // HOP + 1).astype(jnp.int32)

    # Pass 1: STFT power -> mel -> log, streaming masked MVN sums, vocab projection.
    w_bf16 = params["W_out"].astype(jnp.bfloat16)
    proj, sums = frontend(main, tail, feats_lengths,
                          params["dftW"], params["melW"], w_bf16, tT)

    # UtteranceMVN mean and the per-utterance logit correction (tiny, done in JAX glue).
    denom = jnp.maximum(feats_lengths, 1).astype(jnp.float32)[:, None]
    mean = jnp.sum(sums[:, :, 0, :], axis=1) / denom              # [B, 128]
    shift = (mean @ params["W_out"] - params["b_out"])[:, None, :]  # [B, 1, 128]

    # Pass 2 (VPU/EUP only) with its own, larger time tile dividing T_pad.
    g = 1
    for d in range(nT, 0, -1):
        if nT % d == 0 and tT * d <= MAX_TT2:
            g = d
            break
    tT2 = tT * g

    # TODO(synk): the real E2E encoder/decoder + CTC/attention loss source is not
    # provided; this linear head + blank-token NLL is a stand-in (a real encoder would
    # consume the log-mel features sliced to [:, :, :80]).
    loss_parts = head_loss(proj, shift, feats_lengths, tT2)       # [B, nT2, 1, 128]
    total_frames = jnp.sum(feats_lengths).astype(jnp.float32)
    loss = -jnp.sum(loss_parts[:, :, 0, 0]) / total_frames

    ret_dict = {"loss": loss, "loss_ctc": loss, "feats_lengths": feats_lengths}
    return loss, ret_dict


# ----------------------------- main -----------------------------
if __name__ == "__main__":
    key = jax.random.PRNGKey(0)
    k1, k2, k3 = jax.random.split(key, 3)

    B = 2
    L = 16 * HOP                     # 2560 samples -> 17 valid frames
    VOCAB = 12                       # sos = eos = VOCAB - 1
    INPUT_SIZE = N_MELS

    speech = jax.random.normal(k1, (B, L), dtype=jnp.float32)
    speech_lengths = jnp.array([L, L - 3 * HOP], dtype=jnp.int32)
    text = jax.random.randint(k2, (B, 5), 1, VOCAB - 1)
    text_lengths = jnp.array([5, 4], dtype=jnp.int32)

    dftW = _dft_matrix_split()                                            # [640, 768]
    melW = _mel_filterbank(N_FREQ, N_MELS, 0.0, SAMPLE_RATE / 2.0, SAMPLE_RATE)

    # Head weights padded to [128, 128]: extra feature rows are zero (no effect),
    # extra vocab columns get a -1e30 bias so they vanish under softmax.
    w_real = 0.02 * jax.random.normal(k3, (INPUT_SIZE, VOCAB), dtype=jnp.float32)
    W_out = jnp.zeros((N_MELS_PAD, N_MELS_PAD), jnp.float32).at[:INPUT_SIZE, :VOCAB].set(w_real)
    b_out = jnp.full((1, N_MELS_PAD), NEG_INF, jnp.float32).at[0, :VOCAB].set(0.0)

    params = {
        "dftW": jnp.asarray(dftW).astype(jnp.bfloat16),
        "melW": jnp.asarray(melW).astype(jnp.bfloat16),
        "W_out": W_out,
        "b_out": b_out,
    }

    loss, ret = jax.jit(asr_forward)(speech, speech_lengths, text, text_lengths, params)
    jax.block_until_ready(loss)
    print("KERNEL_OK")
</pallas_src>

<mosaic_0001>
module attributes {stable_mosaic.version = 11 : i64} {
  func.func @_frontend_kernel(%arg0: i32, %arg1: i32, %arg2: memref<2xi32, #tpu.memory_space<smem>>, %arg3: memref<1x32x160xf32, #tpu.memory_space<vmem>>, %arg4: memref<1x8x160xf32, #tpu.memory_space<vmem>>, %arg5: memref<640x768xbf16, #tpu.memory_space<vmem>>, %arg6: memref<384x128xbf16, #tpu.memory_space<vmem>>, %arg7: memref<128x128xbf16, #tpu.memory_space<vmem>>, %arg8: memref<1x32x128xbf16, #tpu.memory_space<vmem>>, %arg9: memref<1x1x1x128xf32, #tpu.memory_space<vmem>>) attributes {dimension_semantics = [#tpu.dimension_semantics<parallel>, #tpu.dimension_semantics<parallel>], iteration_bounds = array<i64: 2, 1>, scalar_prefetch = 1 : i64, scratch_operands = 0 : i64, tpu.core_type = #tpu.core_type<tc>, window_params = [{transform_indices = @transform_0, window_bounds = array<i64: 1, 32, 160>}, {transform_indices = @transform_1, window_bounds = array<i64: 1, 8, 160>}, {pipeline_mode = #tpu.pipeline_mode<synchronous>, transform_indices = @transform_2, window_bounds = array<i64: 640, 768>}, {pipeline_mode = #tpu.pipeline_mode<synchronous>, transform_indices = @transform_3, window_bounds = array<i64: 384, 128>}, {pipeline_mode = #tpu.pipeline_mode<synchronous>, transform_indices = @transform_4, window_bounds = array<i64: 128, 128>}, {transform_indices = @transform_5, window_bounds = array<i64: 1, 32, 128>}, {transform_indices = @transform_6, window_bounds = array<i64: 1, 1, 1, 128>}]} {
    %0 = arith.index_cast %arg0 : i32 to index
    %1 = memref.load %arg2[%0] : memref<2xi32, #tpu.memory_space<smem>>
    %c32_i32 = arith.constant 32 : i32
    %2 = arith.muli %arg1, %c32_i32 : i32
    %3 = arith.cmpi slt, %2, %1 : i32
    %4 = arith.extui %3 : i1 to i32
    %c0_i32 = arith.constant 0 : i32
    %5 = arith.cmpi ne, %4, %c0_i32 : i32
    scf.if %5 {
      %c0 = arith.constant 0 : index
      %c0_1 = arith.constant 0 : index
      %c0_2 = arith.constant 0 : index
      %9 = vector.load %arg3[%c0, %c0_1, %c0_2] : memref<1x32x160xf32, #tpu.memory_space<vmem>>, vector<1x32x160xf32>
      %10 = vector.shape_cast %9 : vector<1x32x160xf32> to vector<32x160xf32>
      %c0_3 = arith.constant 0 : index
      %c0_4 = arith.constant 0 : index
      %c0_5 = arith.constant 0 : index
      %11 = vector.load %arg4[%c0_3, %c0_4, %c0_5] : memref<1x8x160xf32, #tpu.memory_space<vmem>>, vector<1x8x160xf32>
      %12 = vector.shape_cast %11 : vector<1x8x160xf32> to vector<8x160xf32>
      %13 = tpu.concatenate %10, %12 in 0 : vector<32x160xf32>, vector<8x160xf32> -> vector<40x160xf32>
      %cst = arith.constant 0.000000e+00 : f32
      %14 = vector.broadcast %cst : f32 to vector<32x768xf32>
      %15 = vector.extract_strided_slice %13 {offsets = [0, 0], sizes = [32, 160], strides = [1, 1]} : vector<40x160xf32> to vector<32x160xf32>
      %16 = arith.truncf %15 : vector<32x160xf32> to vector<32x160xbf16>
      %c0_6 = arith.constant 0 : index
      %c0_7 = arith.constant 0 : index
      %17 = vector.load %arg5[%c0_6, %c0_7] : memref<640x768xbf16, #tpu.memory_space<vmem>>, vector<160x768xbf16>
      %cst_8 = arith.constant dense<0.000000e+00> : vector<32x768xf32>
      %18 = tpu.matmul %16, %17, %cst_8 {dimension_numbers = #tpu.dot_dimension_numbers<[1], [0], [0], [1], [0, 0, 1, 1], [], []>} : vector<32x160xbf16>, vector<160x768xbf16>, vector<32x768xf32> -> vector<32x768xf32>
      %19 = arith.addf %14, %18 : vector<32x768xf32>
      %20 = vector.extract_strided_slice %13 {offsets = [1, 0], sizes = [32, 160], strides = [1, 1]} : vector<40x160xf32> to vector<32x160xf32>
      %21 = arith.truncf %20 : vector<32x160xf32> to vector<32x160xbf16>
      %c160 = arith.constant 160 : index
      %c0_9 = arith.constant 0 : index
      %22 = vector.load %arg5[%c160, %c0_9] : memref<640x768xbf16, #tpu.memory_space<vmem>>, vector<160x768xbf16>
      %cst_10 = arith.constant dense<0.000000e+00> : vector<32x768xf32>
      %23 = tpu.matmul %21, %22, %cst_10 {dimension_numbers = #tpu.dot_dimension_numbers<[1], [0], [0], [1], [0, 0, 1, 1], [], []>} : vector<32x160xbf16>, vector<160x768xbf16>, vector<32x768xf32> -> vector<32x768xf32>
      %24 = arith.addf %19, %23 : vector<32x768xf32>
      %25 = vector.extract_strided_slice %13 {offsets = [2, 0], sizes = [32, 160], strides = [1, 1]} : vector<40x160xf32> to vector<32x160xf32>
      %26 = arith.truncf %25 : vector<32x160xf32> to vector<32x160xbf16>
      %c320 = arith.constant 320 : index
      %c0_11 = arith.constant 0 : index
      %27 = vector.load %arg5[%c320, %c0_11] : memref<640x768xbf16, #tpu.memory_space<vmem>>, vector<160x768xbf16>
      %cst_12 = arith.constant dense<0.000000e+00> : vector<32x768xf32>
      %28 = tpu.matmul %26, %27, %cst_12 {dimension_numbers = #tpu.dot_dimension_numbers<[1], [0], [0], [1], [0, 0, 1, 1], [], []>} : vector<32x160xbf16>, vector<160x768xbf16>, vector<32x768xf32> -> vector<32x768xf32>
      %29 = arith.addf %24, %28 : vector<32x768xf32>
      %30 = vector.extract_strided_slice %13 {offsets = [3, 0], sizes = [32, 160], strides = [1, 1]} : vector<40x160xf32> to vector<32x160xf32>
      %31 = arith.truncf %30 : vector<32x160xf32> to vector<32x160xbf16>
      %c480 = arith.constant 480 : index
      %c0_13 = arith.constant 0 : index
      %32 = vector.load %arg5[%c480, %c0_13] : memref<640x768xbf16, #tpu.memory_space<vmem>>, vector<160x768xbf16>
      %cst_14 = arith.constant dense<0.000000e+00> : vector<32x768xf32>
      %33 = tpu.matmul %31, %32, %cst_14 {dimension_numbers = #tpu.dot_dimension_numbers<[1], [0], [0], [1], [0, 0, 1, 1], [], []>} : vector<32x160xbf16>, vector<160x768xbf16>, vector<32x768xf32> -> vector<32x768xf32>
      %34 = arith.addf %29, %33 : vector<32x768xf32>
      %35 = vector.extract_strided_slice %34 {offsets = [0, 0], sizes = [32, 384], strides = [1, 1]} : vector<32x768xf32> to vector<32x384xf32>
      %36 = vector.extract_strided_slice %34 {offsets = [0, 384], sizes = [32, 384], strides = [1, 1]} : vector<32x768xf32> to vector<32x384xf32>
      %37 = arith.mulf %35, %35 : vector<32x384xf32>
      %38 = arith.mulf %36, %36 : vector<32x384xf32>
      %39 = arith.addf %37, %38 : vector<32x384xf32>
      %40 = arith.truncf %39 : vector<32x384xf32> to vector<32x384xbf16>
      %c0_15 = arith.constant 0 : index
      %c0_16 = arith.constant 0 : index
      %41 = vector.load %arg6[%c0_15, %c0_16] : memref<384x128xbf16, #tpu.memory_space<vmem>>, vector<384x128xbf16>
      %cst_17 = arith.constant dense<0.000000e+00> : vector<32x128xf32>
      %42 = tpu.matmul %40, %41, %cst_17 {dimension_numbers = #tpu.dot_dimension_numbers<[1], [0], [0], [1], [0, 0, 1, 1], [], []>} : vector<32x384xbf16>, vector<384x128xbf16>, vector<32x128xf32> -> vector<32x128xf32>
      %cst_18 = arith.constant 1.000000e-10 : f32
      %43 = vector.broadcast %cst_18 : f32 to vector<32x128xf32>
      %44 = arith.maximumf %42, %43 : vector<32x128xf32>
      %45 = math.log %44 : vector<32x128xf32>
      %46 = tpu.iota {dimensions = array<i32: 0>} : vector<32x1xi32>
      %c32_i32_19 = arith.constant 32 : i32
      %47 = arith.muli %arg1, %c32_i32_19 : i32
      %48 = vector.broadcast %47 : i32 to vector<32x1xi32>
      %49 = arith.addi %46, %48 : vector<32x1xi32>
      %50 = vector.broadcast %1 : i32 to vector<32x1xi32>
      %51 = arith.cmpi slt, %49, %50 : vector<32x1xi32>
      %52 = arith.extui %51 : vector<32x1xi1> to vector<32x1xi32>
      %53 = arith.sitofp %52 : vector<32x1xi32> to vector<32x1xf32>
      %54 = vector.broadcast %53 : vector<32x1xf32> to vector<32x128xf32>
      %55 = arith.mulf %45, %54 : vector<32x128xf32>
      %cst_20 = arith.constant dense<0.000000e+00> : vector<128xf32>
      %56 = vector.multi_reduction <add>, %55, %cst_20 [0] : vector<32x128xf32> to vector<128xf32>
      %57 = vector.shape_cast %56 : vector<128xf32> to vector<1x128xf32>
      %58 = vector.shape_cast %57 : vector<1x128xf32> to vector<1x1x1x128xf32>
      %c0_21 = arith.constant 0 : index
      %c0_22 = arith.constant 0 : index
      %c0_23 = arith.constant 0 : index
      %c0_24 = arith.constant 0 : index
      %59 = vector.load %arg9[%c0_21, %c0_22, %c0_23, %c0_24] : memref<1x1x1x128xf32, #tpu.memory_space<vmem>>, vector<1x1x1x128xf32>
      tpu.vector_store %arg9[%c0_21, %c0_22, %c0_23, %c0_24], %58 {strides = array<i32>} : memref<1x1x1x128xf32, #tpu.memory_space<vmem>>, vector<1x1x1x128xf32>,
      %60 = arith.truncf %45 : vector<32x128xf32> to vector<32x128xbf16>
      %c0_25 = arith.constant 0 : index
      %c0_26 = arith.constant 0 : index
      %61 = vector.load %arg7[%c0_25, %c0_26] : memref<128x128xbf16, #tpu.memory_space<vmem>>, vector<128x128xbf16>
      %cst_27 = arith.constant dense<0.000000e+00> : vector<32x128xf32>
      %62 = tpu.matmul %60, %61, %cst_27 {dimension_numbers = #tpu.dot_dimension_numbers<[1], [0], [0], [1], [0, 0, 1, 1], [], []>} : vector<32x128xbf16>, vector<128x128xbf16>, vector<32x128xf32> -> vector<32x128xf32>
      %63 = arith.truncf %62 : vector<32x128xf32> to vector<32x128xbf16>
      %c0_28 = arith.constant 0 : index
      %c0_29 = arith.constant 0 : index
      %c0_30 = arith.constant 0 : index
      %64 = vector.load %arg8[%c0_28, %c0_29, %c0_30] : memref<1x32x128xbf16, #tpu.memory_space<vmem>>, vector<1x32x128xbf16>
      %65 = vector.shape_cast %64 : vector<1x32x128xbf16> to vector<32x128xbf16>
      %66 = vector.shape_cast %63 : vector<32x128xbf16> to vector<1x32x128xbf16>
      tpu.vector_store %arg8[%c0_28, %c0_29, %c0_30], %66 {strides = array<i32>} : memref<1x32x128xbf16, #tpu.memory_space<vmem>>, vector<1x32x128xbf16>,
    } else {
    }
    %true = arith.constant true
    %6 = arith.xori %3, %true : i1
    %7 = arith.extui %6 : i1 to i32
    %c0_i32_0 = arith.constant 0 : i32
    %8 = arith.cmpi ne, %7, %c0_i32_0 : i32
    scf.if %8 {
      %cst = arith.constant 0.000000e+00 : f32
      %9 = vector.broadcast %cst : f32 to vector<1x1x1x128xf32>
      %c0 = arith.constant 0 : index
      %c0_1 = arith.constant 0 : index
      %c0_2 = arith.constant 0 : index
      %c0_3 = arith.constant 0 : index
      %10 = vector.load %arg9[%c0, %c0_1, %c0_2, %c0_3] : memref<1x1x1x128xf32, #tpu.memory_space<vmem>>, vector<1x1x1x128xf32>
      tpu.vector_store %arg9[%c0, %c0_1, %c0_2, %c0_3], %9 {strides = array<i32>} : memref<1x1x1x128xf32, #tpu.memory_space<vmem>>, vector<1x1x1x128xf32>,
      %cst_4 = arith.constant 0.000000e+00 : bf16
      %11 = vector.broadcast %cst_4 : bf16 to vector<1x32x128xbf16>
      %c0_5 = arith.constant 0 : index
      %c0_6 = arith.constant 0 : index
      %c0_7 = arith.constant 0 : index
      %12 = vector.load %arg8[%c0_5, %c0_6, %c0_7] : memref<1x32x128xbf16, #tpu.memory_space<vmem>>, vector<1x32x128xbf16>
      tpu.vector_store %arg8[%c0_5, %c0_6, %c0_7], %11 {strides = array<i32>} : memref<1x32x128xbf16, #tpu.memory_space<vmem>>, vector<1x32x128xbf16>,
    } else {
    }
    return
  }
  func.func @transform_0(%arg0: i32, %arg1: i32, %arg2: memref<2xi32, #tpu.memory_space<smem>>) -> (i32, i32, i32) {
    %c0_i32 = arith.constant 0 : i32
    %c0_i32_0 = arith.constant 0 : i32
    return %arg0, %arg1, %c0_i32 : i32, i32, i32
  }
  func.func @transform_1(%arg0: i32, %arg1: i32, %arg2: memref<2xi32, #tpu.memory_space<smem>>) -> (i32, i32, i32) {
    %c0_i32 = arith.constant 0 : i32
    %c0_i32_0 = arith.constant 0 : i32
    return %arg0, %arg1, %c0_i32 : i32, i32, i32
  }
  func.func @transform_2(%arg0: i32, %arg1: i32, %arg2: memref<2xi32, #tpu.memory_space<smem>>) -> (i32, i32) {
    %c0_i32 = arith.constant 0 : i32
    %c0_i32_0 = arith.constant 0 : i32
    %c0_i32_1 = arith.constant 0 : i32
    return %c0_i32, %c0_i32_0 : i32, i32
  }
  func.func @transform_3(%arg0: i32, %arg1: i32, %arg2: memref<2xi32, #tpu.memory_space<smem>>) -> (i32, i32) {
    %c0_i32 = arith.constant 0 : i32
    %c0_i32_0 = arith.constant 0 : i32
    %c0_i32_1 = arith.constant 0 : i32
    return %c0_i32, %c0_i32_0 : i32, i32
  }
  func.func @transform_4(%arg0: i32, %arg1: i32, %arg2: memref<2xi32, #tpu.memory_space<smem>>) -> (i32, i32) {
    %c0_i32 = arith.constant 0 : i32
    %c0_i32_0 = arith.constant 0 : i32
    %c0_i32_1 = arith.constant 0 : i32
    return %c0_i32, %c0_i32_0 : i32, i32
  }
  func.func @transform_5(%arg0: i32, %arg1: i32, %arg2: memref<2xi32, #tpu.memory_space<smem>>) -> (i32, i32, i32) {
    %c0_i32 = arith.constant 0 : i32
    %c0_i32_0 = arith.constant 0 : i32
    return %arg0, %arg1, %c0_i32 : i32, i32, i32
  }
  func.func @transform_6(%arg0: i32, %arg1: i32, %arg2: memref<2xi32, #tpu.memory_space<smem>>) -> (i32, i32, i32, i32) {
    %c0_i32 = arith.constant 0 : i32
    %c0_i32_0 = arith.constant 0 : i32
    %c0_i32_1 = arith.constant 0 : i32
    return %arg0, %arg1, %c0_i32, %c0_i32_0 : i32, i32, i32, i32
  }
}

module attributes {stable_mosaic.version = 11 : i64} {
  func.func @_head_loss_kernel(%arg0: i32, %arg1: i32, %arg2: memref<2xi32, #tpu.memory_space<smem>>, %arg3: memref<1x32x128xbf16, #tpu.memory_space<vmem>>, %arg4: memref<1x1x128xf32, #tpu.memory_space<vmem>>, %arg5: memref<1x1x1x128xf32, #tpu.memory_space<vmem>>) attributes {dimension_semantics = [#tpu.dimension_semantics<parallel>, #tpu.dimension_semantics<parallel>], iteration_bounds = array<i64: 2, 1>, scalar_prefetch = 1 : i64, scratch_operands = 0 : i64, tpu.core_type = #tpu.core_type<tc>, window_params = [{transform_indices = @transform_0, window_bounds = array<i64: 1, 32, 128>}, {transform_indices = @transform_1, window_bounds = array<i64: 1, 1, 128>}, {transform_indices = @transform_2, window_bounds = array<i64: 1, 1, 1, 128>}]} {
    %0 = arith.index_cast %arg0 : i32 to index
    %1 = memref.load %arg2[%0] : memref<2xi32, #tpu.memory_space<smem>>
    %c32_i32 = arith.constant 32 : i32
    %2 = arith.muli %arg1, %c32_i32 : i32
    %3 = arith.cmpi slt, %2, %1 : i32
    %4 = arith.extui %3 : i1 to i32
    %c0_i32 = arith.constant 0 : i32
    %5 = arith.cmpi ne, %4, %c0_i32 : i32
    scf.if %5 {
      %c0 = arith.constant 0 : index
      %c0_1 = arith.constant 0 : index
      %c0_2 = arith.constant 0 : index
      %9 = vector.load %arg3[%c0, %c0_1, %c0_2] : memref<1x32x128xbf16, #tpu.memory_space<vmem>>, vector<1x32x128xbf16>
      %10 = vector.shape_cast %9 : vector<1x32x128xbf16> to vector<32x128xbf16>
      %11 = arith.extf %10 : vector<32x128xbf16> to vector<32x128xf32>
      %c0_3 = arith.constant 0 : index
      %c0_4 = arith.constant 0 : index
      %c0_5 = arith.constant 0 : index
      %12 = vector.load %arg4[%c0_3, %c0_4, %c0_5] : memref<1x1x128xf32, #tpu.memory_space<vmem>>, vector<1x1x128xf32>
      %13 = vector.shape_cast %12 : vector<1x1x128xf32> to vector<1x128xf32>
      %14 = vector.broadcast %13 : vector<1x128xf32> to vector<32x128xf32>
      %15 = arith.subf %11, %14 : vector<32x128xf32>
      %cst = arith.constant dense<0xFF800000> : vector<32xf32>
      %16 = vector.multi_reduction <maximumf>, %15, %cst [1] : vector<32x128xf32> to vector<32xf32>
      %17 = vector.shape_cast %16 : vector<32xf32> to vector<32x1xf32>
      %18 = vector.broadcast %17 : vector<32x1xf32> to vector<32x128xf32>
      %19 = arith.subf %15, %18 : vector<32x128xf32>
      %20 = math.exp %19 : vector<32x128xf32>
      %cst_6 = arith.constant dense<0.000000e+00> : vector<32xf32>
      %21 = vector.multi_reduction <add>, %20, %cst_6 [1] : vector<32x128xf32> to vector<32xf32>
      %22 = vector.shape_cast %21 : vector<32xf32> to vector<32x1xf32>
      %23 = math.log %22 : vector<32x1xf32>
      %24 = vector.extract_strided_slice %19 {offsets = [0, 0], sizes = [32, 1], strides = [1, 1]} : vector<32x128xf32> to vector<32x1xf32>
      %25 = arith.subf %24, %23 : vector<32x1xf32>
      %26 = tpu.iota {dimensions = array<i32: 0>} : vector<32x1xi32>
      %c32_i32_7 = arith.constant 32 : i32
      %27 = arith.muli %arg1, %c32_i32_7 : i32
      %28 = vector.broadcast %27 : i32 to vector<32x1xi32>
      %29 = arith.addi %26, %28 : vector<32x1xi32>
      %30 = vector.broadcast %1 : i32 to vector<32x1xi32>
      %31 = arith.cmpi slt, %29, %30 : vector<32x1xi32>
      %32 = arith.extui %31 : vector<32x1xi1> to vector<32x1xi32>
      %33 = arith.sitofp %32 : vector<32x1xi32> to vector<32x1xf32>
      %34 = arith.mulf %25, %33 : vector<32x1xf32>
      %cst_8 = arith.constant dense<0.000000e+00> : vector<1xf32>
      %35 = vector.multi_reduction <add>, %34, %cst_8 [0] : vector<32x1xf32> to vector<1xf32>
      %36 = vector.shape_cast %35 : vector<1xf32> to vector<1x1xf32>
      %cst_9 = arith.constant 1.000000e+00 : f32
      %37 = vector.broadcast %cst_9 : f32 to vector<1x128xf32>
      %38 = vector.broadcast %36 : vector<1x1xf32> to vector<1x128xf32>
      %39 = arith.mulf %38, %37 : vector<1x128xf32>
      %40 = vector.shape_cast %39 : vector<1x128xf32> to vector<1x1x1x128xf32>
      %c0_10 = arith.constant 0 : index
      %c0_11 = arith.constant 0 : index
      %c0_12 = arith.constant 0 : index
      %c0_13 = arith.constant 0 : index
      %41 = vector.load %arg5[%c0_10, %c0_11, %c0_12, %c0_13] : memref<1x1x1x128xf32, #tpu.memory_space<vmem>>, vector<1x1x1x128xf32>
      tpu.vector_store %arg5[%c0_10, %c0_11, %c0_12, %c0_13], %40 {strides = array<i32>} : memref<1x1x1x128xf32, #tpu.memory_space<vmem>>, vector<1x1x1x128xf32>,
    } else {
    }
    %true = arith.constant true
    %6 = arith.xori %3, %true : i1
    %7 = arith.extui %6 : i1 to i32
    %c0_i32_0 = arith.constant 0 : i32
    %8 = arith.cmpi ne, %7, %c0_i32_0 : i32
    scf.if %8 {
      %cst = arith.constant 0.000000e+00 : f32
      %9 = vector.broadcast %cst : f32 to vector<1x1x1x128xf32>
      %c0 = arith.constant 0 : index
      %c0_1 = arith.constant 0 : index
      %c0_2 = arith.constant 0 : index
      %c0_3 = arith.constant 0 : index
      %10 = vector.load %arg5[%c0, %c0_1, %c0_2, %c0_3] : memref<1x1x1x128xf32, #tpu.memory_space<vmem>>, vector<1x1x1x128xf32>
      tpu.vector_store %arg5[%c0, %c0_1, %c0_2, %c0_3], %9 {strides = array<i32>} : memref<1x1x1x128xf32, #tpu.memory_space<vmem>>, vector<1x1x1x128xf32>,
    } else {
    }
    return
  }
  func.func @transform_0(%arg0: i32, %arg1: i32, %arg2: memref<2xi32, #tpu.memory_space<smem>>) -> (i32, i32, i32) {
    %c0_i32 = arith.constant 0 : i32
    %c0_i32_0 = arith.constant 0 : i32
    return %arg0, %arg1, %c0_i32 : i32, i32, i32
  }
  func.func @transform_1(%arg0: i32, %arg1: i32, %arg2: memref<2xi32, #tpu.memory_space<smem>>) -> (i32, i32, i32) {
    %c0_i32 = arith.constant 0 : i32
    %c0_i32_0 = arith.constant 0 : i32
    %c0_i32_1 = arith.constant 0 : i32
    return %arg0, %c0_i32, %c0_i32_0 : i32, i32, i32
  }
  func.func @transform_2(%arg0: i32, %arg1: i32, %arg2: memref<2xi32, #tpu.memory_space<smem>>) -> (i32, i32, i32, i32) {
    %c0_i32 = arith.constant 0 : i32
    %c0_i32_0 = arith.constant 0 : i32
    %c0_i32_1 = arith.constant 0 : i32
    return %arg0, %arg1, %c0_i32, %c0_i32_0 : i32, i32, i32, i32
  }
}

</mosaic_0001>

<llo_original>
// kernel: asr_forward.3
$region0: #{asr_forward.3}
  #allocation0 [shape = 'u32[]', space=smem, size = 0x4, offset = 0x4, fixed_abs, tag = 'smem constant byte address 0x4 - core index']
  #allocation1 [shape = 'u32[72,128]{1,0:T(1,128)}', space=vmem, size = 0x9000, scoped, tag = 'internal scratch']
  #allocation2 [shape = 's32[1]{0}', space=sflag, size = 0x4, scoped, tag = 'scoped memory for asr_forward.3']
  #allocation3 [shape = 'u8[512]{0}', space=smem, size = 0x200, scoped, tag = 'prefetched SMEM operand 0']
  %s0 = inlined_call_operand.vmem [shape: s32[2], index: 0, kind: input, shape index: {}]
  %s1 = inlined_call_operand.vmem [shape: bf16[2,32,128], index: 1, kind: input, shape index: {}]
  %s2 = inlined_call_operand.vmem [shape: f32[2,1,128], index: 2, kind: input, shape index: {}]
  %s3 = inlined_call_operand.vmem [shape: f32[2,1,1,128], index: 3, kind: output, shape index: {}]
  %s4 = sld [smem:[#allocation0]]
  $region49: #{asr_forward.3} parent=0
    _
  %s6 = ssub.s32 1, %s4
  %s7 = scalar_select 0, %s6, %s4
  %s9 = sshll.u32 %s0, 4
  %s10 = int_to_ptr.vmem [resolvable:$true] %s9
  %12 = dma.vmem_to_smem %s10, 16, [#allocation3], [#allocation2]
  %14 = dma.done [#allocation2], 16
  %15 = sfence
  loop: start=0, step=1, limit=4
  $region2: #{asr_forward.3} parent=0 // loop_pre_header
    _
  $region3: #{asr_forward.3} parent=0 // loop_header
    %s17 = sphi 0, %s21
    %p18 = scmp.ge.s32.totalorder %s17, 4
    %s24 = sphi 0, %s36
    %s25 = sphi 0, %s32
    %s26 = sphi 0, %s24
    %s27 = sphi 0, %s25
    %s28 = sphi 0, %s26
    %s29 = sphi 0, %s27
    %s41 = sphi 0, %s43
    %s44 = sphi 0, %s41
    %s45 = sphi 0, %s44
    %s61 = sphi 0, %s45
    %s67 = sphi 0, %s69
    %s70 = sphi 0, %s67
    %s71 = sphi 0, %s70
    %s87 = sphi 0, %s71
    %s95 = sphi 0, %s97
    %s98 = sphi 0, %s95
    %s99 = sphi 0, %s98
    %s115 = sphi 0, %s99
  $region4: #{asr_forward.3} parent=0 // loop_header_branch
    %20 = sbr.rel (%p18) target = $region8
  $region5: #{asr_forward.3} parent=0 // loop_body
    %s22 = ssub.s32 %s17, 1
    %s23 = ssub.s32 %s17, 2
    %s30 = sadd.s32 1, %s25
    %p31 = scmp.ge.s32.totalorder %s30, 1
    %s32 = scalar_select %p31, 0, %s30
    %s33 = sadd.s32 1, %s24
    %s34 = scalar_select %p31, %s33, %s24
    %p35 = scmp.ge.s32.totalorder %s34, 2
    %s36 = scalar_select %p35, 0, %s34
    %s37 = ssub.s32 %s24, %s36
    %s38 = ssub.s32 %s25, %s32
    %s39 = sor.u32 %s37, %s38
    %p40 = scmp.eq.s32.totalorder %s39, 0
    %s42 = sadd.s32 %s41, 1
    %s43 = scalar_select %p40, %s41, %s42
    %p46 = pneg %p40
    %p47 = scmp.eq.s32.totalorder %s17, 1
    %p48 = por %p46, %p47
    %p49 = scmp.ne.s32.totalorder %s41, %s44
    %p50 = scmp.eq.s32.totalorder %s17, 0
    %p51 = por %p49, %p50
    %p52 = scmp.ne.s32.totalorder %s41, %s44
    %p53 = scmp.eq.s32.totalorder %s22, 1
    %p54 = por %p52, %p53
    %p55 = scmp.ne.s32.totalorder %s44, %s45
    %p56 = scmp.eq.s32.totalorder %s22, 0
    %p57 = por %p55, %p56
    %p58 = scmp.ne.s32.totalorder %s44, %s45
    %p59 = scmp.eq.s32.totalorder %s23, 1
    %p60 = por %p58, %p59
    %p62 = scmp.ne.s32.totalorder %s45, %s61
    %p63 = scmp.eq.s32.totalorder %s23, 0
    %p64 = por %p62, %p63
    %s65 = ssub.s32 %s24, %s36
    %p66 = scmp.eq.s32.totalorder %s65, 0
    %s68 = sadd.s32 %s67, 1
    %s69 = scalar_select %p66, %s67, %s68
    %p72 = pneg %p66
    %p73 = scmp.eq.s32.totalorder %s17, 1
    %p74 = por %p72, %p73
    %p75 = scmp.ne.s32.totalorder %s67, %s70
    %p76 = scmp.eq.s32.totalorder %s17, 0
    %p77 = por %p75, %p76
    %p78 = scmp.ne.s32.totalorder %s67, %s70
    %p79 = scmp.eq.s32.totalorder %s22, 1
    %p80 = por %p78, %p79
    %p81 = scmp.ne.s32.totalorder %s70, %s71
    %p82 = scmp.eq.s32.totalorder %s22, 0
    %p83 = por %p81, %p82
    %p84 = scmp.ne.s32.totalorder %s70, %s71
    %p85 = scmp.eq.s32.totalorder %s23, 1
    %p86 = por %p84, %p85
    %p88 = scmp.ne.s32.totalorder %s71, %s87
    %p89 = scmp.eq.s32.totalorder %s23, 0
    %p90 = por %p88, %p89
    %s91 = ssub.s32 %s24, %s36
    %s92 = ssub.s32 %s25, %s32
    %s93 = sor.u32 %s91, %s92
    %p94 = scmp.eq.s32.totalorder %s93, 0
    %s96 = sadd.s32 %s95, 1
    %s97 = scalar_select %p94, %s95, %s96
    %p100 = pneg %p94
    %p101 = scmp.eq.s32.totalorder %s17, 1
    %p102 = por %p100, %p101
    %p103 = scmp.ne.s32.totalorder %s95, %s98
    %p104 = scmp.eq.s32.totalorder %s17, 0
    %p105 = por %p103, %p104
    %p106 = scmp.ne.s32.totalorder %s95, %s98
    %p107 = scmp.eq.s32.totalorder %s22, 1
    %p108 = por %p106, %p107
    %p109 = scmp.ne.s32.totalorder %s98, %s99
    %p110 = scmp.eq.s32.totalorder %s22, 0
    %p111 = por %p109, %p110
    %p112 = scmp.ne.s32.totalorder %s98, %s99
    %p113 = scmp.eq.s32.totalorder %s23, 1
    %p114 = por %p112, %p113
    %p116 = scmp.ne.s32.totalorder %s99, %s115
    %p117 = scmp.eq.s32.totalorder %s23, 0
    %p118 = por %p116, %p117
    %p119 = scmp.le.s32.totalorder 1, %s17
    %p120 = scmp.lt.s32.totalorder %s17, 3
    %p121 = pnand %p119, %p120
    %p122 = pneg %p121
    // Predicated region
    $region9: #{asr_forward.3} parent=5 // pred_check
      _
    $region10: #{asr_forward.3} parent=5 // pred_check_branch
      %124 = sbr.rel (%p121) target = $region12
    $region11: #{asr_forward.3} parent=5 // pred_region
      %s125 = ssub.s32 %s17, 1
    $region12: #{asr_forward.3} parent=5 // pred_fallthru
      _
    %p126 = scmp.lt.s32.totalorder %s17, 2
    // Predicated region
    $region13: #{asr_forward.3} parent=5 // pred_check
      %p127 = pneg %p126
    $region14: #{asr_forward.3} parent=5 // pred_check_branch
      %129 = sbr.rel (%p127) target = $region16
    $region15: #{asr_forward.3} parent=5 // pred_region
      // Predicated region
      $region17: #{asr_forward.3} parent=15 // pred_check
        %p130 = pneg %p51
      $region18: #{asr_forward.3} parent=15 // pred_check_branch
        %132 = sbr.rel (%p130) target = $region20
      $region19: #{asr_forward.3} parent=15 // pred_region
        %s133 = smul.u32 4, %s25
        %p134 = scmp.lt.s32.totalorder %s24, 1
        %s135 = scalar_select %p134, %s24, 1
        %p136 = scmp.lt.s32.totalorder %s133, 3
        %s137 = scalar_select %p136, %s133, 3
        %s138 = smul.addr %s135, 4
        %s139 = sadd.s32 %s137, %s138
        %s140 = smul.addr %s139, 4
        %s141 = scalar_lea.vmem %s1, %s140
        %s142 = smul.u32 4, %s25
      $region20: #{asr_forward.3} parent=15 // pred_fallthru
        _
      // Predicated region
      $region21: #{asr_forward.3} parent=15 // pred_check
        %p143 = pneg %p77
      $region22: #{asr_forward.3} parent=15 // pred_check_branch
        %145 = sbr.rel (%p143) target = $region24
      $region23: #{asr_forward.3} parent=15 // pred_region
        %p146 = scmp.lt.s32.totalorder %s24, 1
        %s147 = scalar_select %p146, %s24, 1
        %s148 = scalar_lea.vmem %s2, %s147
      $region24: #{asr_forward.3} parent=15 // pred_fallthru
        _
    $region16: #{asr_forward.3} parent=5 // pred_fallthru
      _
    %p149 = scmp.le.s32.totalorder 1, %s17
    %p150 = scmp.lt.s32.totalorder %s17, 3
    %p151 = pnand %p149, %p150
    %p152 = pneg %p151
    // Predicated region
    $region25: #{asr_forward.3} parent=5 // pred_check
      _
    $region26: #{asr_forward.3} parent=5 // pred_check_branch
      %154 = sbr.rel (%p151) target = $region28
    $region27: #{asr_forward.3} parent=5 // pred_region
      %s155 = ssub.s32 %s17, 1
      %s156 = smul.u32 4, %s27
      %p157 = scmp.lt.s32.totalorder %s26, 1
      %s158 = scalar_select %p157, %s26, 1
      %p159 = scmp.lt.s32.totalorder %s156, 3
      %s160 = scalar_select %p159, %s156, 3
      %s161 = smul.addr %s158, 4
      %s162 = sadd.s32 %s160, %s161
      %s163 = smul.addr %s162, 4
      %s164 = scalar_lea.vmem %s1, %s163
      %p165 = pneg %p57
      %p166 = pneg %p54
      %p167 = scmp.lt.s32.totalorder %s26, 1
      %s168 = scalar_select %p167, %s26, 1
      %s169 = scalar_lea.vmem %s2, %s168
      %p170 = pneg %p83
      %p171 = pneg %p80
      %p172 = pneg %p111
      %p173 = pneg %p108
      %p174 = scmp.lt.s32.totalorder %s26, 1
      %s175 = scalar_select %p174, %s26, 1
      %p176 = scmp.lt.s32.totalorder %s27, 0
      %s177 = scalar_select %p176, %s27, 0
      %s178 = sadd.s32 %s177, %s175
      %s179 = scalar_lea.vmem %s3, %s178
      %s180 = smul.u32 4, %s27
      %p181 = scmp.lt.s32.totalorder %s26, 1
      %s182 = scalar_select %p181, %s26, 1
      %p183 = scmp.lt.s32.totalorder %s180, 3
      %s184 = scalar_select %p183, %s180, 3
      %s185 = smul.addr %s182, 4
      %s186 = sadd.s32 %s184, %s185
      %s187 = smul.addr %s186, 4
      %s188 = scalar_lea.vmem %s1, %s187
      %s189 = smul.u32 4, %s27
      %p190 = scmp.lt.s32.totalorder %s26, 1
      %s191 = scalar_select %p190, %s26, 1
      %s192 = scalar_lea.vmem %s2, %s191
      %p193 = scmp.lt.s32.totalorder %s26, 1
      %s194 = scalar_select %p193, %s26, 1
      %p195 = scmp.lt.s32.totalorder %s27, 0
      %s196 = scalar_select %p195, %s27, 0
      %s197 = sadd.s32 %s196, %s194
      %s198 = scalar_lea.vmem %s3, %s197
      %s199 = sld [smem:[#allocation3 + %s26]]
      %s200 = smul.u32 %s27, 32
      %p201 = scmp.lt.s32.totalorder %s200, %s199
      // Predicated region
      $region29: #{asr_forward.3} parent=27 // pred_check
        %p202 = pneg %p201
      $region30: #{asr_forward.3} parent=27 // pred_check_branch
        %204 = sbr.rel (%p202) target = $region32
      $region31: #{asr_forward.3} parent=27 // pred_region
        %v205 = vld [vmem:[%s188] sm:$0xf]
        %v206 = vld [vmem:[%s188 + $0x4] sm:$0xf]
        %v207 = vld [vmem:[%s188 + $0x8] sm:$0xf]
        %v208 = vld [vmem:[%s188 + $0xc] sm:$0xf]
        %v209 = vunpack.c.l.bf16 %v205
        %v210 = vunpack.c.l.bf16 %v206
        %v211 = vunpack.c.l.bf16 %v207
        %v212 = vunpack.c.l.bf16 %v208
        %v213 = vld [vmem:[%s192] sm:$0x1]
        %v215 = vperm.slane %v213, 0
        %v217 = vsub.f32 %v209, %v215
        %v218 = vsub.f32 %v210, %v215
        %v219 = vsub.f32 %v211, %v215
        %v220 = vsub.f32 %v212, %v215
        %221 = vmax.xlane.f32.xlu0 %v217
        %v222 = vpop.xlane.xlu0 %221
        %223 = vmax.xlane.f32.xlu0 %v218
        %v224 = vpop.xlane.xlu0 %223
        %225 = vmax.xlane.f32.xlu0 %v219
        %v226 = vpop.xlane.xlu0 %225
        %227 = vmax.xlane.f32.xlu0 %v220
        %v228 = vpop.xlane.xlu0 %227
        %v229 = vsub.f32 %v217, %v222
        %v230 = vsub.f32 %v218, %v224
        %v231 = vsub.f32 %v219, %v226
        %v232 = vsub.f32 %v220, %v228
        %v233 = vmul.f32 %v229, 1.442695
        %v234 = vpow.pop %v233
        %v235 = vmul.f32 %v230, 1.442695
        %v236 = vpow.pop %v235
        %v237 = vmul.f32 %v231, 1.442695
        %v238 = vpow.pop %v237
        %v239 = vmul.f32 %v232, 1.442695
        %v240 = vpow.pop %v239
        %241 = vadd.xlane.f32.xlu0 %v234
        %v242 = vpop.xlane.xlu0 %241
        %243 = vadd.xlane.f32.xlu0 %v236
        %v244 = vpop.xlane.xlu0 %243
        %245 = vadd.xlane.f32.xlu0 %v238
        %v246 = vpop.xlane.xlu0 %245
        %247 = vadd.xlane.f32.xlu0 %v240
        %v248 = vpop.xlane.xlu0 %247
        %v249 = vlog2.pop %v242
        %v250 = vmul.f32 %v249, 0.6931472
        %v251 = vlog2.pop %v244
        %v252 = vmul.f32 %v251, 0.6931472
        %v253 = vlog2.pop %v246
        %v254 = vmul.f32 %v253, 0.6931472
        %v255 = vlog2.pop %v248
        %v256 = vmul.f32 %v255, 0.6931472
        %v257 = vsub.f32 %v229, %v250
        %v258 = vsub.f32 %v230, %v252
        %v259 = vsub.f32 %v231, %v254
        %v260 = vsub.f32 %v232, %v256
        %v261 = vlaneseq
        %v262 = vshrl.u32 %v261, 7
        %v263 = vadd.s32 %v262, 8
        %v264 = vadd.s32 %v262, 16
        %v265 = vadd.s32 %v262, 24
        %v266 = vstv %s200
        %v267 = vadd.s32 %v262, %v266
        %v268 = vadd.s32 %v263, %v266
        %v269 = vadd.s32 %v264, %v266
        %v270 = vadd.s32 %v265, %v266
        %v271 = vstv %s199
        %vm272 = vcmp.lt.s32.totalorder %v267, %v271
        %vm273 = vcmp.lt.s32.totalorder %v268, %v271
        %vm274 = vcmp.lt.s32.totalorder %v269, %v271
        %vm275 = vcmp.lt.s32.totalorder %v270, %v271
        %v276 = vsel %vm272, 1, 0
        %v277 = vsel %vm273, 1, 0
        %v278 = vsel %vm274, 1, 0
        %v279 = vsel %vm275, 1, 0
        %v280 = vcvt.s32.f32 %v276
        %v281 = vcvt.s32.f32 %v277
        %v282 = vcvt.s32.f32 %v278
        %v283 = vcvt.s32.f32 %v279
        %v284 = vmul.f32 %v257, %v280
        %v285 = vmul.f32 %v258, %v281
        %v286 = vmul.f32 %v259, %v282
        %v287 = vmul.f32 %v260, %v283
        %vm288 = vcmask 7168
        %v289 = vsel %vm288, %v284, 0.0
        %v290 = vsel %vm288, %v285, 0.0
        %v291 = vadd.f32 %v289, %v290
        %v292 = vsel %vm288, %v286, 0.0
        %v293 = vadd.f32 %v291, %v292
        %v294 = vsel %vm288, %v287, 0.0
        %v295 = vadd.f32 %v293, %v294
        %v296 = vrot.slane %v295, 4
        %v297 = vadd.f32 %v295, %v296
        %v298 = vrot.slane %v297, 2
        %v299 = vadd.f32 %v297, %v298
        %v300 = vrot.slane %v299, 1
        %v301 = vadd.f32 %v299, %v300
        %303 = vset.pattern.permute.xlu0 0
        %304 = vperm.xlu0 %303, %v301
        %v305 = vpop.permute.xlu0 %304
        %307 = vst [vmem:[%s198] sm:$0x1] %v305
      $region32: #{asr_forward.3} parent=27 // pred_fallthru
        _
      %p308 = scmp.ge.s32.totalorder %s200, %s199
      // Predicated region
      $region33: #{asr_forward.3} parent=27 // pred_check
        %p309 = pneg %p308
      $region34: #{asr_forward.3} parent=27 // pred_check_branch
        %311 = sbr.rel (%p309) target = $region36
      $region35: #{asr_forward.3} parent=27 // pred_region
        %312 = vst [vmem:[%s198] sm:$0x1] 0.0
      $region36: #{asr_forward.3} parent=27 // pred_fallthru
        _
      %p313 = scmp.lt.s32.totalorder %s26, 1
      %s314 = scalar_select %p313, %s26, 1
      %p315 = scmp.lt.s32.totalorder %s27, 0
      %s316 = scalar_select %p315, %s27, 0
      %s317 = sadd.s32 %s316, %s314
      %s318 = scalar_lea.vmem %s3, %s317
      // Predicated region
      $region37: #{asr_forward.3} parent=27 // pred_check
        %p319 = pneg %p108
      $region38: #{asr_forward.3} parent=27 // pred_check_branch
        %321 = sbr.rel (%p319) target = $region40
      $region39: #{asr_forward.3} parent=27 // pred_region
        _
      $region40: #{asr_forward.3} parent=27 // pred_fallthru
        _
    $region28: #{asr_forward.3} parent=5 // pred_fallthru
      _
    %p322 = scmp.le.s32.totalorder 2, %s17
    // Predicated region
    $region41: #{asr_forward.3} parent=5 // pred_check
      %p323 = pneg %p322
    $region42: #{asr_forward.3} parent=5 // pred_check_branch
      %325 = sbr.rel (%p323) target = $region44
    $region43: #{asr_forward.3} parent=5 // pred_region
      %s326 = ssub.s32 %s17, 2
      // Predicated region
      $region45: #{asr_forward.3} parent=43 // pred_check
        %p327 = pneg %p114
      $region46: #{asr_forward.3} parent=43 // pred_check_branch
        %329 = sbr.rel (%p327) target = $region48
      $region47: #{asr_forward.3} parent=43 // pred_region
        %p330 = scmp.lt.s32.totalorder %s28, 1
        %s331 = scalar_select %p330, %s28, 1
        %p332 = scmp.lt.s32.totalorder %s29, 0
        %s333 = scalar_select %p332, %s29, 0
        %s334 = sadd.s32 %s333, %s331
        %s335 = scalar_lea.vmem %s3, %s334
      $region48: #{asr_forward.3} parent=43 // pred_fallthru
        _
    $region44: #{asr_forward.3} parent=5 // pred_fallthru
      _
  $region6: #{asr_forward.3} parent=0 // loop_footer
    %s21 = sadd.s32 1, %s17
  $region7: #{asr_forward.3} parent=0 // loop_footer_branch
    %16 = sbr.rel target = $region3
  $region8: #{asr_forward.3} parent=0 // loop_exit
    _

// kernel: asr_forward.2
$region0: #{asr_forward.2}
  #allocation0 [shape = 'u32[]', space=smem, size = 0x4, offset = 0x4, fixed_abs, tag = 'smem constant byte address 0x4 - core index']
  #allocation1 [shape = 'u32[72,128]{1,0:T(1,128)}', space=vmem, size = 0x9000, scoped, tag = 'internal scratch']
  #allocation2 [shape = 's32[1]{0}', space=sflag, size = 0x4, scoped, tag = 'scoped memory for asr_forward.2']
  #allocation3 [shape = 'u8[512]{0}', space=smem, size = 0x200, scoped, tag = 'prefetched SMEM operand 0']
  %s0 = inlined_call_operand.vmem [shape: s32[2], index: 0, kind: input, shape index: {}]
  %s1 = inlined_call_operand.vmem [shape: f32[2,32,160], index: 1, kind: input, shape index: {}]
  %s2 = inlined_call_operand.vmem [shape: f32[2,8,160], index: 2, kind: input, shape index: {}]
  %s3 = inlined_call_operand.hbm [shape: bf16[640,768], index: 3, kind: input, shape index: {}]
  %s4 = inlined_call_operand.vmem [shape: bf16[384,128], index: 4, kind: input, shape index: {}]
  %s5 = inlined_call_operand.vmem [shape: bf16[128,128], index: 5, kind: input, shape index: {}]
  %s6 = inlined_call_operand.vmem [shape: bf16[2,32,128], index: 6, kind: output, shape index: {0}]
  %s7 = inlined_call_operand.vmem [shape: f32[2,1,1,128], index: 7, kind: output, shape index: {1}]
  %8 = xla_tuple %s6, %s7
  %s9 = sld [smem:[#allocation0]]
  $region73: #{asr_forward.2} parent=0
    _
  %s11 = ssub.s32 1, %s9
  %s12 = scalar_select 0, %s11, %s9
  %s14 = sshll.u32 %s0, 4
  %s15 = int_to_ptr.vmem [resolvable:$true] %s14
  %17 = dma.vmem_to_smem %s15, 16, [#allocation3], [#allocation2]
  %19 = dma.done [#allocation2], 16
  %20 = sfence
  $region1: #{asr_forward.2} parent=0
    #allocation4 [shape = 'u8[983040]{0}', space=vmem, size = 0xf0000, scoped, tag = 'input window, operand 3, single buffered']
    #allocation5 [shape = 's32[2]{0}', space=sflag, size = 0x8, scoped, tag = 'scoped memory for asr_forward.2']
    %21 = vsyncpa [#allocation5], 0
    loop: start=0, step=1, limit=4
    $region2: #{asr_forward.2} parent=1 // loop_pre_header
      _
    $region3: #{asr_forward.2} parent=1 // loop_header
      %s23 = sphi 0, %s27
      %p24 = scmp.ge.s32.totalorder %s23, 4
      %s30 = sphi 0, %s42
      %s31 = sphi 0, %s38
      %s32 = sphi 0, %s30
      %s33 = sphi 0, %s31
      %s34 = sphi 0, %s32
      %s35 = sphi 0, %s33
      %s47 = sphi 0, %s49
      %s50 = sphi 0, %s47
      %s51 = sphi 0, %s50
      %s67 = sphi 0, %s51
      %s75 = sphi 0, %s77
      %s78 = sphi 0, %s75
      %s79 = sphi 0, %s78
      %s95 = sphi 0, %s79
      %s99 = sphi 0, %s99
      %s101 = sphi 0, %s99
      %s102 = sphi 0, %s101
      %s116 = sphi 0, %s102
      %s120 = sphi 0, %s120
      %s122 = sphi 0, %s120
      %s123 = sphi 0, %s122
      %s137 = sphi 0, %s123
      %s141 = sphi 0, %s141
      %s143 = sphi 0, %s141
      %s144 = sphi 0, %s143
      %s158 = sphi 0, %s144
      %s166 = sphi 0, %s168
      %s169 = sphi 0, %s166
      %s170 = sphi 0, %s169
      %s186 = sphi 0, %s170
      %s194 = sphi 0, %s196
      %s197 = sphi 0, %s194
      %s198 = sphi 0, %s197
      %s214 = sphi 0, %s198
    $region4: #{asr_forward.2} parent=1 // loop_header_branch
      %26 = sbr.rel (%p24) target = $region8
    $region5: #{asr_forward.2} parent=1 // loop_body
      %s28 = ssub.s32 %s23, 1
      %s29 = ssub.s32 %s23, 2
      %s36 = sadd.s32 1, %s31
      %p37 = scmp.ge.s32.totalorder %s36, 1
      %s38 = scalar_select %p37, 0, %s36
      %s39 = sadd.s32 1, %s30
      %s40 = scalar_select %p37, %s39, %s30
      %p41 = scmp.ge.s32.totalorder %s40, 2
      %s42 = scalar_select %p41, 0, %s40
      %s43 = ssub.s32 %s30, %s42
      %s44 = ssub.s32 %s31, %s38
      %s45 = sor.u32 %s43, %s44
      %p46 = scmp.eq.s32.totalorder %s45, 0
      %s48 = sadd.s32 %s47, 1
      %s49 = scalar_select %p46, %s47, %s48
      %p52 = pneg %p46
      %p53 = scmp.eq.s32.totalorder %s23, 1
      %p54 = por %p52, %p53
      %p55 = scmp.ne.s32.totalorder %s47, %s50
      %p56 = scmp.eq.s32.totalorder %s23, 0
      %p57 = por %p55, %p56
      %p58 = scmp.ne.s32.totalorder %s47, %s50
      %p59 = scmp.eq.s32.totalorder %s28, 1
      %p60 = por %p58, %p59
      %p61 = scmp.ne.s32.totalorder %s50, %s51
      %p62 = scmp.eq.s32.totalorder %s28, 0
      %p63 = por %p61, %p62
      %p64 = scmp.ne.s32.totalorder %s50, %s51
      %p65 = scmp.eq.s32.totalorder %s29, 1
      %p66 = por %p64, %p65
      %p68 = scmp.ne.s32.totalorder %s51, %s67
      %p69 = scmp.eq.s32.totalorder %s29, 0
      %p70 = por %p68, %p69
      %s71 = ssub.s32 %s30, %s42
      %s72 = ssub.s32 %s31, %s38
      %s73 = sor.u32 %s71, %s72
      %p74 = scmp.eq.s32.totalorder %s73, 0
      %s76 = sadd.s32 %s75, 1
      %s77 = scalar_select %p74, %s75, %s76
      %p80 = pneg %p74
      %p81 = scmp.eq.s32.totalorder %s23, 1
      %p82 = por %p80, %p81
      %p83 = scmp.ne.s32.totalorder %s75, %s78
      %p84 = scmp.eq.s32.totalorder %s23, 0
      %p85 = por %p83, %p84
      %p86 = scmp.ne.s32.totalorder %s75, %s78
      %p87 = scmp.eq.s32.totalorder %s28, 1
      %p88 = por %p86, %p87
      %p89 = scmp.ne.s32.totalorder %s78, %s79
      %p90 = scmp.eq.s32.totalorder %s28, 0
      %p91 = por %p89, %p90
      %p92 = scmp.ne.s32.totalorder %s78, %s79
      %p93 = scmp.eq.s32.totalorder %s29, 1
      %p94 = por %p92, %p93
      %p96 = scmp.ne.s32.totalorder %s79, %s95
      %p97 = scmp.eq.s32.totalorder %s29, 0
      %p98 = por %p96, %p97
      %s100 = sadd.s32 %s99, 1
      %p103 = scmp.eq.s32.totalorder %s23, 1
      %p104 = scmp.ne.s32.totalorder %s99, %s101
      %p105 = scmp.eq.s32.totalorder %s23, 0
      %p106 = por %p104, %p105
      %p107 = scmp.ne.s32.totalorder %s99, %s101
      %p108 = scmp.eq.s32.totalorder %s28, 1
      %p109 = por %p107, %p108
      %p110 = scmp.ne.s32.totalorder %s101, %s102
      %p111 = scmp.eq.s32.totalorder %s28, 0
      %p112 = por %p110, %p111
      %p113 = scmp.ne.s32.totalorder %s101, %s102
      %p114 = scmp.eq.s32.totalorder %s29, 1
      %p115 = por %p113, %p114
      %p117 = scmp.ne.s32.totalorder %s102, %s116
      %p118 = scmp.eq.s32.totalorder %s29, 0
      %p119 = por %p117, %p118
      %s121 = sadd.s32 %s120, 1
      %p124 = scmp.eq.s32.totalorder %s23, 1
      %p125 = scmp.ne.s32.totalorder %s120, %s122
      %p126 = scmp.eq.s32.totalorder %s23, 0
      %p127 = por %p125, %p126
      %p128 = scmp.ne.s32.totalorder %s120, %s122
      %p129 = scmp.eq.s32.totalorder %s28, 1
      %p130 = por %p128, %p129
      %p131 = scmp.ne.s32.totalorder %s122, %s123
      %p132 = scmp.eq.s32.totalorder %s28, 0
      %p133 = por %p131, %p132
      %p134 = scmp.ne.s32.totalorder %s122, %s123
      %p135 = scmp.eq.s32.totalorder %s29, 1
      %p136 = por %p134, %p135
      %p138 = scmp.ne.s32.totalorder %s123, %s137
      %p139 = scmp.eq.s32.totalorder %s29, 0
      %p140 = por %p138, %p139
      %s142 = sadd.s32 %s141, 1
      %p145 = scmp.eq.s32.totalorder %s23, 1
      %p146 = scmp.ne.s32.totalorder %s141, %s143
      %p147 = scmp.eq.s32.totalorder %s23, 0
      %p148 = por %p146, %p147
      %p149 = scmp.ne.s32.totalorder %s141, %s143
      %p150 = scmp.eq.s32.totalorder %s28, 1
      %p151 = por %p149, %p150
      %p152 = scmp.ne.s32.totalorder %s143, %s144
      %p153 = scmp.eq.s32.totalorder %s28, 0
      %p154 = por %p152, %p153
      %p155 = scmp.ne.s32.totalorder %s143, %s144
      %p156 = scmp.eq.s32.totalorder %s29, 1
      %p157 = por %p155, %p156
      %p159 = scmp.ne.s32.totalorder %s144, %s158
      %p160 = scmp.eq.s32.totalorder %s29, 0
      %p161 = por %p159, %p160
      %s162 = ssub.s32 %s30, %s42
      %s163 = ssub.s32 %s31, %s38
      %s164 = sor.u32 %s162, %s163
      %p165 = scmp.eq.s32.totalorder %s164, 0
      %s167 = sadd.s32 %s166, 1
      %s168 = scalar_select %p165, %s166, %s167
      %p171 = pneg %p165
      %p172 = scmp.eq.s32.totalorder %s23, 1
      %p173 = por %p171, %p172
      %p174 = scmp.ne.s32.totalorder %s166, %s169
      %p175 = scmp.eq.s32.totalorder %s23, 0
      %p176 = por %p174, %p175
      %p177 = scmp.ne.s32.totalorder %s166, %s169
      %p178 = scmp.eq.s32.totalorder %s28, 1
      %p179 = por %p177, %p178
      %p180 = scmp.ne.s32.totalorder %s169, %s170
      %p181 = scmp.eq.s32.totalorder %s28, 0
      %p182 = por %p180, %p181
      %p183 = scmp.ne.s32.totalorder %s169, %s170
      %p184 = scmp.eq.s32.totalorder %s29, 1
      %p185 = por %p183, %p184
      %p187 = scmp.ne.s32.totalorder %s170, %s186
      %p188 = scmp.eq.s32.totalorder %s29, 0
      %p189 = por %p187, %p188
      %s190 = ssub.s32 %s30, %s42
      %s191 = ssub.s32 %s31, %s38
      %s192 = sor.u32 %s190, %s191
      %p193 = scmp.eq.s32.totalorder %s192, 0
      %s195 = sadd.s32 %s194, 1
      %s196 = scalar_select %p193, %s194, %s195
      %p199 = pneg %p193
      %p200 = scmp.eq.s32.totalorder %s23, 1
      %p201 = por %p199, %p200
      %p202 = scmp.ne.s32.totalorder %s194, %s197
      %p203 = scmp.eq.s32.totalorder %s23, 0
      %p204 = por %p202, %p203
      %p205 = scmp.ne.s32.totalorder %s194, %s197
      %p206 = scmp.eq.s32.totalorder %s28, 1
      %p207 = por %p205, %p206
      %p208 = scmp.ne.s32.totalorder %s197, %s198
      %p209 = scmp.eq.s32.totalorder %s28, 0
      %p210 = por %p208, %p209
      %p211 = scmp.ne.s32.totalorder %s197, %s198
      %p212 = scmp.eq.s32.totalorder %s29, 1
      %p213 = por %p211, %p212
      %p215 = scmp.ne.s32.totalorder %s198, %s214
      %p216 = scmp.eq.s32.totalorder %s29, 0
      %p217 = por %p215, %p216
      %p218 = scmp.le.s32.totalorder 1, %s23
      %p219 = scmp.lt.s32.totalorder %s23, 3
      %p220 = pnand %p218, %p219
      %p221 = pneg %p220
      // Predicated region
      $region9: #{asr_forward.2} parent=5 // pred_check
        _
      $region10: #{asr_forward.2} parent=5 // pred_check_branch
        %223 = sbr.rel (%p220) target = $region12
      $region11: #{asr_forward.2} parent=5 // pred_region
        %s224 = ssub.s32 %s23, 1
        // Predicated region
        $region13: #{asr_forward.2} parent=11 // pred_check
          %p225 = pneg %p112
        $region14: #{asr_forward.2} parent=11 // pred_check_branch
          %227 = sbr.rel (%p225) target = $region16
        $region15: #{asr_forward.2} parent=11 // pred_region
          %229 = vsyncadd [#allocation5], 0
          %s230 = sshll.u32 %s3, 4
          %s231 = int_to_ptr.hbm [resolvable:$true] %s230
          %s232 = sshll.u32 [#allocation4], 4
          %s233 = int_to_ptr.vmem [resolvable:$true] %s232
          %238 = dma.hbm_to_vmem [thread:$0]  %s231, 30720, %s233, [#allocation5], 384, 384, 24
        $region16: #{asr_forward.2} parent=11 // pred_fallthru
          _
        // Predicated region
        $region17: #{asr_forward.2} parent=11 // pred_check
          %p239 = pneg %p133
        $region18: #{asr_forward.2} parent=11 // pred_check_branch
          %241 = sbr.rel (%p239) target = $region20
        $region19: #{asr_forward.2} parent=11 // pred_region
          _
        $region20: #{asr_forward.2} parent=11 // pred_fallthru
          _
        // Predicated region
        $region21: #{asr_forward.2} parent=11 // pred_check
          %p242 = pneg %p154
        $region22: #{asr_forward.2} parent=11 // pred_check_branch
          %244 = sbr.rel (%p242) target = $region24
        $region23: #{asr_forward.2} parent=11 // pred_region
          _
        $region24: #{asr_forward.2} parent=11 // pred_fallthru
          _
      $region12: #{asr_forward.2} parent=5 // pred_fallthru
        _
      %p245 = scmp.lt.s32.totalorder %s23, 2
      // Predicated region
      $region25: #{asr_forward.2} parent=5 // pred_check
        %p246 = pneg %p245
      $region26: #{asr_forward.2} parent=5 // pred_check_branch
        %248 = sbr.rel (%p246) target = $region28
      $region27: #{asr_forward.2} parent=5 // pred_region
        // Predicated region
        $region29: #{asr_forward.2} parent=27 // pred_check
          %p249 = pneg %p57
        $region30: #{asr_forward.2} parent=27 // pred_check_branch
          %251 = sbr.rel (%p249) target = $region32
        $region31: #{asr_forward.2} parent=27 // pred_region
          %s252 = smul.u32 4, %s31
          %p253 = scmp.lt.s32.totalorder %s30, 1
          %s254 = scalar_select %p253, %s30, 1
          %p255 = scmp.lt.s32.totalorder %s252, 3
          %s256 = scalar_select %p255, %s252, 3
          %s257 = smul.addr %s256, 2
          %s258 = smul.addr %s254, 8
          %s259 = sadd.s32 %s257, %s258
          %s260 = smul.addr %s259, 8
          %s261 = scalar_lea.vmem %s1, %s260
          %s262 = smul.u32 4, %s31
        $region32: #{asr_forward.2} parent=27 // pred_fallthru
          _
        // Predicated region
        $region33: #{asr_forward.2} parent=27 // pred_check
          %p263 = pneg %p85
        $region34: #{asr_forward.2} parent=27 // pred_check_branch
          %265 = sbr.rel (%p263) target = $region36
        $region35: #{asr_forward.2} parent=27 // pred_region
          %p266 = scmp.lt.s32.totalorder %s30, 1
          %s267 = scalar_select %p266, %s30, 1
          %p268 = scmp.lt.s32.totalorder %s31, 0
          %s269 = scalar_select %p268, %s31, 0
          %s270 = smul.addr %s269, 2
          %s271 = smul.addr %s267, 2
          %s272 = sadd.s32 %s270, %s271
          %s273 = smul.addr %s272, 8
          %s274 = scalar_lea.vmem %s2, %s273
        $region36: #{asr_forward.2} parent=27 // pred_fallthru
          _
      $region28: #{asr_forward.2} parent=5 // pred_fallthru
        _
      %p275 = scmp.le.s32.totalorder 1, %s23
      %p276 = scmp.lt.s32.totalorder %s23, 3
      %p277 = pnand %p275, %p276
      %p278 = pneg %p277
      // Predicated region
      $region37: #{asr_forward.2} parent=5 // pred_check
        _
      $region38: #{asr_forward.2} parent=5 // pred_check_branch
        %280 = sbr.rel (%p277) target = $region40
      $region39: #{asr_forward.2} parent=5 // pred_region
        %s281 = ssub.s32 %s23, 1
        // Predicated region
        $region41: #{asr_forward.2} parent=39 // pred_check
          %p282 = pneg %p112
        $region42: #{asr_forward.2} parent=39 // pred_check_branch
          %284 = sbr.rel (%p282) target = $region44
        $region43: #{asr_forward.2} parent=39 // pred_region
          %286 = dma.done [#allocation5], 30720
        $region44: #{asr_forward.2} parent=39 // pred_fallthru
          _
        %s287 = smul.u32 4, %s33
        %p288 = scmp.lt.s32.totalorder %s32, 1
        %s289 = scalar_select %p288, %s32, 1
        %p290 = scmp.lt.s32.totalorder %s287, 3
        %s291 = scalar_select %p290, %s287, 3
        %s292 = smul.addr %s291, 2
        %s293 = smul.addr %s289, 8
        %s294 = sadd.s32 %s292, %s293
        %s295 = smul.addr %s294, 8
        %s296 = scalar_lea.vmem %s1, %s295
        %p297 = pneg %p63
        %p298 = pneg %p60
        %p299 = scmp.lt.s32.totalorder %s32, 1
        %s300 = scalar_select %p299, %s32, 1
        %p301 = scmp.lt.s32.totalorder %s33, 0
        %s302 = scalar_select %p301, %s33, 0
        %s303 = smul.addr %s302, 2
        %s304 = smul.addr %s300, 2
        %s305 = sadd.s32 %s303, %s304
        %s306 = smul.addr %s305, 8
        %s307 = scalar_lea.vmem %s2, %s306
        %p308 = pneg %p91
        %p309 = pneg %p88
        %p310 = pneg %p112
        %p311 = pneg %p109
        %p312 = pneg %p133
        %p313 = pneg %p130
        %p314 = pneg %p154
        %p315 = pneg %p151
        %p316 = pneg %p182
        %p317 = pneg %p179
        %s318 = smul.u32 4, %s33
        %p319 = scmp.lt.s32.totalorder %s32, 1
        %s320 = scalar_select %p319, %s32, 1
        %p321 = scmp.lt.s32.totalorder %s318, 3
        %s322 = scalar_select %p321, %s318, 3
        %s323 = smul.addr %s320, 4
        %s324 = sadd.s32 %s322, %s323
        %s325 = smul.addr %s324, 4
        %s326 = scalar_lea.vmem %s6, %s325
        %p327 = pneg %p210
        %p328 = pneg %p207
        %p329 = scmp.lt.s32.totalorder %s32, 1
        %s330 = scalar_select %p329, %s32, 1
        %p331 = scmp.lt.s32.totalorder %s33, 0
        %s332 = scalar_select %p331, %s33, 0
        %s333 = sadd.s32 %s332, %s330
        %s334 = scalar_lea.vmem %s7, %s333
        %s335 = smul.u32 4, %s33
        %p336 = scmp.lt.s32.totalorder %s32, 1
        %s337 = scalar_select %p336, %s32, 1
        %p338 = scmp.lt.s32.totalorder %s335, 3
        %s339 = scalar_select %p338, %s335, 3
        %s340 = smul.addr %s339, 2
        %s341 = smul.addr %s337, 8
        %s342 = sadd.s32 %s340, %s341
        %s343 = smul.addr %s342, 8
        %s344 = scalar_lea.vmem %s1, %s343
        %s345 = smul.u32 4, %s33
        %p346 = scmp.lt.s32.totalorder %s32, 1
        %s347 = scalar_select %p346, %s32, 1
        %p348 = scmp.lt.s32.totalorder %s33, 0
        %s349 = scalar_select %p348, %s33, 0
        %s350 = smul.addr %s349, 2
        %s351 = smul.addr %s347, 2
        %s352 = sadd.s32 %s350, %s351
        %s353 = smul.addr %s352, 8
        %s354 = scalar_lea.vmem %s2, %s353
        %s355 = smul.u32 4, %s33
        %p356 = scmp.lt.s32.totalorder %s32, 1
        %s357 = scalar_select %p356, %s32, 1
        %p358 = scmp.lt.s32.totalorder %s355, 3
        %s359 = scalar_select %p358, %s355, 3
        %s360 = smul.addr %s357, 4
        %s361 = sadd.s32 %s359, %s360
        %s362 = smul.addr %s361, 4
        %s363 = scalar_lea.vmem %s6, %s362
        %s364 = smul.u32 4, %s33
        %p365 = scmp.lt.s32.totalorder %s32, 1
        %s366 = scalar_select %p365, %s32, 1
        %p367 = scmp.lt.s32.totalorder %s33, 0
        %s368 = scalar_select %p367, %s33, 0
        %s369 = sadd.s32 %s368, %s366
        %s370 = scalar_lea.vmem %s7, %s369
        %s372 = sld [smem:[#allocation3 + %s32]]
        %s373 = smul.u32 %s33, 32
        %p374 = scmp.lt.s32.totalorder %s373, %s372
        // Predicated region
        $region45: #{asr_forward.2} parent=39 // pred_check
          %p375 = pneg %p374
        $region46: #{asr_forward.2} parent=39 // pred_check_branch
          %377 = sbr.rel (%p375) target = $region48
        $region47: #{asr_forward.2} parent=39 // pred_region
          %v378 = vld [vmem:[%s344] sm:$0xff]
          %v379 = vld [vmem:[%s344 + $0x8] sm:$0xff]
          %v380 = vld [vmem:[%s344 + $0x10] sm:$0xff]
          %v381 = vld [vmem:[%s344 + $0x18] sm:$0xff]
          %v382 = vld [vmem:[%s344 + $0x20] sm:$0xff]
          %v383 = vld [vmem:[%s344 + $0x28] sm:$0xff]
          %v384 = vld [vmem:[%s344 + $0x30] sm:$0xff]
          %v385 = vld [vmem:[%s344 + $0x38] sm:$0xff]
          %v386 = vld [vmem:[%s354] sm:$0xff]
          %v387 = vld [vmem:[%s354 + $0x8] sm:$0xff]
          %v388 = vpack.c.bf16 %v380, %v378
          %v389 = vpack.c.bf16 %v381, %v379
          %v390 = vpack.c.bf16 %v384, %v382
          %v391 = vpack.c.bf16 %v385, %v383
          %v392 = vld [vmem:[#allocation4] sm:$0xff]
          %v393 = vld [vmem:[#allocation4 + $0x8] sm:$0xff]
          %v394 = vld [vmem:[#allocation4 + $0x10] sm:$0xff]
          %v395 = vld [vmem:[#allocation4 + $0x18] sm:$0xff]
          %v396 = vld [vmem:[#allocation4 + $0x20] sm:$0xff]
          %v397 = vld [vmem:[#allocation4 + $0x28] sm:$0xff]
          %v398 = vld [vmem:[#allocation4 + $0x30] sm:$0xff]
          %v399 = vld [vmem:[#allocation4 + $0x38] sm:$0xff]
          %v400 = vld [vmem:[#allocation4 + $0x40] sm:$0xff]
          %v401 = vld [vmem:[#allocation4 + $0x48] sm:$0xff]
          %v402 = vld [vmem:[#allocation4 + $0x50] sm:$0xff]
          %v403 = vld [vmem:[#allocation4 + $0x58] sm:$0xff]
          %v404 = vld [vmem:[#allocation4 + $0x60] sm:$0xff]
          %v405 = vld [vmem:[#allocation4 + $0x68] sm:$0xff]
          %v406 = vld [vmem:[#allocation4 + $0x70] sm:$0xff]
          %v407 = vld [vmem:[#allocation4 + $0x78] sm:$0xff]
          %v408 = vld [vmem:[#allocation4 + $0x80] sm:$0xff]
          %v409 = vld [vmem:[#allocation4 + $0x88] sm:$0xff]
          %v410 = vld [vmem:[#allocation4 + $0x90] sm:$0xff]
          %v411 = vld [vmem:[#allocation4 + $0x98] sm:$0xff]
          %v412 = vld [vmem:[#allocation4 + $0xa0] sm:$0xff]
          %v413 = vld [vmem:[#allocation4 + $0xa8] sm:$0xff]
          %v414 = vld [vmem:[#allocation4 + $0xb0] sm:$0xff]
          %v415 = vld [vmem:[#allocation4 + $0xb8] sm:$0xff]
          %v416 = vld [vmem:[#allocation4 + $0xc0] sm:$0xff]
          %v417 = vld [vmem:[#allocation4 + $0xc8] sm:$0xff]
          %v418 = vld [vmem:[#allocation4 + $0xd0] sm:$0xff]
          %v419 = vld [vmem:[#allocation4 + $0xd8] sm:$0xff]
          %v420 = vld [vmem:[#allocation4 + $0xe0] sm:$0xff]
          %v421 = vld [vmem:[#allocation4 + $0xe8] sm:$0xff]
          %v422 = vld [vmem:[#allocation4 + $0xf0] sm:$0xff]
          %v423 = vld [vmem:[#allocation4 + $0xf8] sm:$0xff]
          %v424 = vld [vmem:[#allocation4 + $0x100] sm:$0xff]
          %v425 = vld [vmem:[#allocation4 + $0x108] sm:$0xff]
          %v426 = vld [vmem:[#allocation4 + $0x110] sm:$0xff]
          %v427 = vld [vmem:[#allocation4 + $0x118] sm:$0xff]
          %v428 = vld [vmem:[#allocation4 + $0x120] sm:$0xff]
          %v429 = vld [vmem:[#allocation4 + $0x128] sm:$0xff]
          %v430 = vld [vmem:[#allocation4 + $0x130] sm:$0xff]
          %v431 = vld [vmem:[#allocation4 + $0x138] sm:$0xff]
          %v432 = vld [vmem:[#allocation4 + $0x140] sm:$0xff]
          %v433 = vld [vmem:[#allocation4 + $0x148] sm:$0xff]
          %v434 = vld [vmem:[#allocation4 + $0x150] sm:$0xff]
          %v435 = vld [vmem:[#allocation4 + $0x158] sm:$0xff]
          %v436 = vld [vmem:[#allocation4 + $0x160] sm:$0xff]
          %v437 = vld [vmem:[#allocation4 + $0x168] sm:$0xff]
          %v438 = vld [vmem:[#allocation4 + $0x170] sm:$0xff]
          %v439 = vld [vmem:[#allocation4 + $0x178] sm:$0xff]
          %v440 = vld [vmem:[#allocation4 + $0x180] sm:$0xff]
          %v441 = vld [vmem:[#allocation4 + $0x188] sm:$0xff]
          %v442 = vld [vmem:[#allocation4 + $0x190] sm:$0xff]
          %v443 = vld [vmem:[#allocation4 + $0x198] sm:$0xff]
          %v444 = vld [vmem:[#allocation4 + $0x1a0] sm:$0xff]
          %v445 = vld [vmem:[#allocation4 + $0x1a8] sm:$0xff]
          %v446 = vld [vmem:[#allocation4 + $0x1b0] sm:$0xff]
          %v447 = vld [vmem:[#allocation4 + $0x1b8] sm:$0xff]
          %v448 = vld [vmem:[#allocation4 + $0x1c0] sm:$0xff]
          %v449 = vld [vmem:[#allocation4 + $0x1c8] sm:$0xff]
          %v450 = vld [vmem:[#allocation4 + $0x1d0] sm:$0xff]
          %v451 = vld [vmem:[#allocation4 + $0x1d8] sm:$0xff]
          %v452 = vpack.c.bf16 %v386, %v386
          %v453 = vpack.c.bf16 %v387, %v387
          %v454 = vld [vmem:[#allocation4 + $0x1e0] sm:$0xff]
          %v455 = vld [vmem:[#allocation4 + $0x1e8] sm:$0xff]
          %v456 = vld [vmem:[#allocation4 + $0x1f0] sm:$0xff]
          %v457 = vld [vmem:[#allocation4 + $0x1f8] sm:$0xff]
          %v458 = vld [vmem:[#allocation4 + $0x200] sm:$0xff]
          %v459 = vld [vmem:[#allocation4 + $0x208] sm:$0xff]
          %v460 = vld [vmem:[#allocation4 + $0x210] sm:$0xff]
          %v461 = vld [vmem:[#allocation4 + $0x218] sm:$0xff]
          %v462 = vld [vmem:[#allocation4 + $0x220] sm:$0xff]
          %v463 = vld [vmem:[#allocation4 + $0x228] sm:$0xff]
          %v464 = vld [vmem:[#allocation4 + $0x230] sm:$0xff]
          %v465 = vld [vmem:[#allocation4 + $0x238] sm:$0xff]
          %v466 = vld [vmem:[#allocation4 + $0x240] sm:$0xff]
          %v467 = vld [vmem:[#allocation4 + $0x248] sm:$0xff]
          %v468 = vld [vmem:[#allocation4 + $0x250] sm:$0xff]
          %v469 = vld [vmem:[#allocation4 + $0x258] sm:$0xff]
          %v470 = vld [vmem:[#allocation4 + $0x260] sm:$0xff]
          %v471 = vld [vmem:[#allocation4 + $0x268] sm:$0xff]
          %v472 = vld [vmem:[#allocation4 + $0x270] sm:$0xff]
          %v473 = vld [vmem:[#allocation4 + $0x278] sm:$0xff]
          %v474 = vld [vmem:[#allocation4 + $0x280] sm:$0xff]
          %v475 = vld [vmem:[#allocation4 + $0x288] sm:$0xff]
          %v476 = vld [vmem:[#allocation4 + $0x290] sm:$0xff]
          %v477 = vld [vmem:[#allocation4 + $0x298] sm:$0xff]
          %v478 = vld [vmem:[#allocation4 + $0x2a0] sm:$0xff]
          %v479 = vld [vmem:[#allocation4 + $0x2a8] sm:$0xff]
          %v480 = vld [vmem:[#allocation4 + $0x2b0] sm:$0xff]
          %v481 = vld [vmem:[#allocation4 + $0x2b8] sm:$0xff]
          %v482 = vld [vmem:[#allocation4 + $0x2c0] sm:$0xff]
          %v483 = vld [vmem:[#allocation4 + $0x2c8] sm:$0xff]
          %v484 = vld [vmem:[#allocation4 + $0x2d0] sm:$0xff]
          %v485 = vld [vmem:[#allocation4 + $0x2d8] sm:$0xff]
          %v486 = vld [vmem:[#allocation4 + $0x2e0] sm:$0xff]
          %v487 = vld [vmem:[#allocation4 + $0x2e8] sm:$0xff]
          %v488 = vld [vmem:[#allocation4 + $0x2f0] sm:$0xff]
          %v489 = vld [vmem:[#allocation4 + $0x2f8] sm:$0xff]
          %v490 = vld [vmem:[#allocation4 + $0x300] sm:$0xff]
          %v491 = vld [vmem:[#allocation4 + $0x308] sm:$0xff]
          %v492 = vld [vmem:[#allocation4 + $0x310] sm:$0xff]
          %v493 = vld [vmem:[#allocation4 + $0x318] sm:$0xff]
          %v494 = vld [vmem:[#allocation4 + $0x320] sm:$0xff]
          %v495 = vld [vmem:[#allocation4 + $0x328] sm:$0xff]
          %v496 = vld [vmem:[#allocation4 + $0x330] sm:$0xff]
          %v497 = vld [vmem:[#allocation4 + $0x338] sm:$0xff]
          %v498 = vld [vmem:[#allocation4 + $0x340] sm:$0xff]
          %v499 = vld [vmem:[#allocation4 + $0x348] sm:$0xff]
          %v500 = vld [vmem:[#allocation4 + $0x350] sm:$0xff]
          %v501 = vld [vmem:[#allocation4 + $0x358] sm:$0xff]
          %v502 = vld [vmem:[#allocation4 + $0x360] sm:$0xff]
          %v503 = vld [vmem:[#allocation4 + $0x368] sm:$0xff]
          %v504 = vld [vmem:[#allocation4 + $0x370] sm:$0xff]
          %v505 = vld [vmem:[#allocation4 + $0x378] sm:$0xff]
          %v506 = vld [vmem:[#allocation4 + $0x380] sm:$0xff]
          %v507 = vld [vmem:[#allocation4 + $0x388] sm:$0xff]
          %v508 = vld [vmem:[#allocation4 + $0x390] sm:$0xff]
          %v509 = vld [vmem:[#allocation4 + $0x398] sm:$0xff]
          %v510 = vld [vmem:[#allocation4 + $0x3a0] sm:$0xff]
          %v511 = vld [vmem:[#allocation4 + $0x3a8] sm:$0xff]
          %v512 = vld [vmem:[#allocation4 + $0x3b0] sm:$0xff]
          %v513 = vld [vmem:[#allocation4 + $0x3b8] sm:$0xff]
          %vm514 = vsmask.f32 7424
          %v516 = vshrl.u32 %v388, 16
          %v518 = vshll.u32 %v388, 16
          %v520 = vrot.slane %v518, 1
          %v521 = vor.u32 %v516, %v520
          %v523 = vshll.u32 %v390, 16
          %v525 = vrot.slane %v523, 1
          %v526 = vsel %vm514, %v521, %v525
          %v528 = vshrl.u32 %v389, 16
          %v530 = vshll.u32 %v389, 16
          %v532 = vrot.slane %v530, 1
          %v533 = vor.u32 %v528, %v532
          %v535 = vshll.u32 %v391, 16
          %v537 = vrot.slane %v535, 1
          %v538 = vsel %vm514, %v533, %v537
          %v539 = vshrl.u32 %v390, 16
          %v541 = vor.u32 %v539, %v525
          %v543 = vshll.u32 %v452, 16
          %v545 = vrot.slane %v543, 1
          %v546 = vsel %vm514, %v541, %v545
          %v547 = vshrl.u32 %v391, 16
          %v549 = vor.u32 %v547, %v537
          %v551 = vshll.u32 %v453, 16
          %v553 = vrot.slane %v551, 1
          %v554 = vsel %vm514, %v549, %v553
          %v617 = vunpack.c.l.b16 %v454
          %v618 = vunpack.c.h.b16 %v454
          %v619 = vunpack.c.l.b16 %v455
          %v620 = vunpack.c.h.b16 %v455
          %v621 = vunpack.c.l.b16 %v456
          %v622 = vunpack.c.h.b16 %v456
          %v623 = vunpack.c.l.b16 %v457
          %v624 = vunpack.c.h.b16 %v457
          %v625 = vunpack.c.l.b16 %v458
          %v626 = vunpack.c.h.b16 %v458
          %v627 = vunpack.c.l.b16 %v459
          %v628 = vunpack.c.h.b16 %v459
          %v629 = vunpack.c.l.b16 %v460
          %v630 = vunpack.c.h.b16 %v460
          %v631 = vunpack.c.l.b16 %v461
          %v632 = vunpack.c.h.b16 %v461
          %v633 = vunpack.c.l.b16 %v462
          %v634 = vunpack.c.h.b16 %v462
          %v635 = vunpack.c.l.b16 %v463
          %v636 = vunpack.c.h.b16 %v463
          %v637 = vunpack.c.l.b16 %v464
          %v638 = vunpack.c.h.b16 %v464
          %v639 = vunpack.c.l.b16 %v465
          %v640 = vunpack.c.h.b16 %v465
          %v641 = vunpack.c.l.b16 %v466
          %v642 = vunpack.c.h.b16 %v466
          %v643 = vunpack.c.l.b16 %v467
          %v644 = vunpack.c.h.b16 %v467
          %v645 = vunpack.c.l.b16 %v468
          %v646 = vunpack.c.h.b16 %v468
          %v647 = vunpack.c.l.b16 %v469
          %v648 = vunpack.c.h.b16 %v469
          %v649 = vunpack.c.l.b16 %v470
          %v650 = vunpack.c.h.b16 %v470
          %v651 = vunpack.c.l.b16 %v471
          %v652 = vunpack.c.h.b16 %v471
          %v653 = vunpack.c.l.b16 %v472
          %v654 = vunpack.c.h.b16 %v472
          %v655 = vunpack.c.l.b16 %v473
          %v656 = vunpack.c.h.b16 %v473
          %v657 = vunpack.c.l.b16 %v474
          %v658 = vunpack.c.h.b16 %v474
          %v659 = vunpack.c.l.b16 %v475
          %v660 = vunpack.c.h.b16 %v475
          %v661 = vunpack.c.l.b16 %v476
          %v662 = vunpack.c.h.b16 %v476
          %v663 = vunpack.c.l.b16 %v477
          %v664 = vunpack.c.h.b16 %v477
          %v665 = vunpack.c.l.b16 %v478
          %v666 = vunpack.c.h.b16 %v478
          %v667 = vunpack.c.l.b16 %v479
          %v668 = vunpack.c.h.b16 %v479
          %v669 = vunpack.c.l.b16 %v480
          %v670 = vunpack.c.h.b16 %v480
          %v671 = vunpack.c.l.b16 %v481
          %v672 = vunpack.c.h.b16 %v481
          %v673 = vunpack.c.l.b16 %v482
          %v674 = vunpack.c.h.b16 %v482
          %v675 = vunpack.c.l.b16 %v483
          %v676 = vunpack.c.h.b16 %v483
          %v677 = vunpack.c.l.b16 %v484
          %v678 = vunpack.c.h.b16 %v484
          %v679 = vunpack.c.l.b16 %v485
          %v680 = vunpack.c.h.b16 %v485
          %v681 = vunpack.c.l.b16 %v486
          %v682 = vunpack.c.h.b16 %v486
          %v683 = vunpack.c.l.b16 %v487
          %v684 = vunpack.c.h.b16 %v487
          %v685 = vunpack.c.l.b16 %v488
          %v686 = vunpack.c.h.b16 %v488
          %v687 = vunpack.c.l.b16 %v489
          %v688 = vunpack.c.h.b16 %v489
          %v689 = vunpack.c.l.b16 %v490
          %v690 = vunpack.c.h.b16 %v490
          %v691 = vunpack.c.l.b16 %v491
          %v692 = vunpack.c.h.b16 %v491
          %v693 = vunpack.c.l.b16 %v492
          %v694 = vunpack.c.h.b16 %v492
          %v695 = vunpack.c.l.b16 %v493
          %v696 = vunpack.c.h.b16 %v493
          %v697 = vunpack.c.l.b16 %v494
          %v698 = vunpack.c.h.b16 %v494
          %v699 = vunpack.c.l.b16 %v495
          %v700 = vunpack.c.h.b16 %v495
          %v701 = vunpack.c.l.b16 %v496
          %v702 = vunpack.c.h.b16 %v496
          %v703 = vunpack.c.l.b16 %v497
          %v704 = vunpack.c.h.b16 %v497
          %v705 = vunpack.c.l.b16 %v498
          %v706 = vunpack.c.h.b16 %v498
          %v707 = vunpack.c.l.b16 %v499
          %v708 = vunpack.c.h.b16 %v499
          %v709 = vunpack.c.l.b16 %v500
          %v710 = vunpack.c.h.b16 %v500
          %v711 = vunpack.c.l.b16 %v501
          %v712 = vunpack.c.h.b16 %v501
          %v713 = vunpack.c.l.b16 %v502
          %v714 = vunpack.c.h.b16 %v502
          %v715 = vunpack.c.l.b16 %v503
          %v716 = vunpack.c.h.b16 %v503
          %v717 = vunpack.c.l.b16 %v504
          %v718 = vunpack.c.h.b16 %v504
          %v719 = vunpack.c.l.b16 %v505
          %v720 = vunpack.c.h.b16 %v505
          %v721 = vunpack.c.l.b16 %v506
          %v722 = vunpack.c.h.b16 %v506
          %v723 = vunpack.c.l.b16 %v507
          %v724 = vunpack.c.h.b16 %v507
          %v725 = vunpack.c.l.b16 %v508
          %v726 = vunpack.c.h.b16 %v508
          %v727 = vunpack.c.l.b16 %v509
          %v728 = vunpack.c.h.b16 %v509
          %v729 = vunpack.c.l.b16 %v510
          %v730 = vunpack.c.h.b16 %v510
          %v731 = vunpack.c.l.b16 %v511
          %v732 = vunpack.c.h.b16 %v511
          %v733 = vunpack.c.l.b16 %v512
          %v734 = vunpack.c.h.b16 %v512
          %v735 = vunpack.c.l.b16 %v513
          %v736 = vunpack.c.h.b16 %v513
          %v737 = vpack.c.b16 %v623, %v617
          %v738 = vpack.c.b16 %v624, %v618
          %v739 = vpack.c.b16 %v625, %v619
          %v740 = vpack.c.b16 %v626, %v620
          %v741 = vpack.c.b16 %v627, %v621
          %v742 = vpack.c.b16 %v628, %v622
          %v743 = vpack.c.b16 %v635, %v629
          %v744 = vpack.c.b16 %v636, %v630
          %v745 = vpack.c.b16 %v637, %v631
          %v746 = vpack.c.b16 %v638, %v632
          %v747 = vpack.c.b16 %v639, %v633
          %v748 = vpack.c.b16 %v640, %v634
          %v749 = vpack.c.b16 %v647, %v641
          %v750 = vpack.c.b16 %v648, %v642
          %v751 = vpack.c.b16 %v649, %v643
          %v752 = vpack.c.b16 %v650, %v644
          %v753 = vpack.c.b16 %v651, %v645
          %v754 = vpack.c.b16 %v652, %v646
          %v755 = vpack.c.b16 %v659, %v653
          %v756 = vpack.c.b16 %v660, %v654
          %v757 = vpack.c.b16 %v661, %v655
          %v758 = vpack.c.b16 %v662, %v656
          %v759 = vpack.c.b16 %v663, %v657
          %v760 = vpack.c.b16 %v664, %v658
          %v761 = vpack.c.b16 %v671, %v665
          %v762 = vpack.c.b16 %v672, %v666
          %v763 = vpack.c.b16 %v673, %v667
          %v764 = vpack.c.b16 %v674, %v668
          %v765 = vpack.c.b16 %v675, %v669
          %v766 = vpack.c.b16 %v676, %v670
          %v767 = vpack.c.b16 %v683, %v677
          %v768 = vpack.c.b16 %v684, %v678
          %v769 = vpack.c.b16 %v685, %v679
          %v770 = vpack.c.b16 %v686, %v680
          %v771 = vpack.c.b16 %v687, %v681
          %v772 = vpack.c.b16 %v688, %v682
          %v773 = vpack.c.b16 %v695, %v689
          %v774 = vpack.c.b16 %v696, %v690
          %v775 = vpack.c.b16 %v697, %v691
          %v776 = vpack.c.b16 %v698, %v692
          %v777 = vpack.c.b16 %v699, %v693
          %v778 = vpack.c.b16 %v700, %v694
          %v779 = vpack.c.b16 %v707, %v701
          %v780 = vpack.c.b16 %v708, %v702
          %v781 = vpack.c.b16 %v709, %v703
          %v782 = vpack.c.b16 %v710, %v704
          %v783 = vpack.c.b16 %v711, %v705
          %v784 = vpack.c.b16 %v712, %v706
          %v785 = vpack.c.b16 %v719, %v713
          %v786 = vpack.c.b16 %v720, %v714
          %v787 = vpack.c.b16 %v721, %v715
          %v788 = vpack.c.b16 %v722, %v716
          %v789 = vpack.c.b16 %v723, %v717
          %v790 = vpack.c.b16 %v724, %v718
          %v791 = vpack.c.b16 %v731, %v725
          %v792 = vpack.c.b16 %v732, %v726
          %v793 = vpack.c.b16 %v733, %v727
          %v794 = vpack.c.b16 %v734, %v728
          %v795 = vpack.c.b16 %v735, %v729
          %v796 = vpack.c.b16 %v736, %v730
          %vm857 = vcmask 261120
          %v859 = vsel %vm857, %v538, 0
          %v862 = vsel %vm857, %v554, 0
          %864 = vmatpush.bf16.msra.mxu0 %v779
          %865 = vmatpush.bf16.msra.mxu0 %v773
          %866 = vmatpush.bf16.msra.mxu0 %v767
          %867 = vmatpush.bf16.msra.mxu0 %v761
          %868 = vmatpush.bf16.msra.mxu0 %v755
          %869 = vmatpush.bf16.msra.mxu0 %v749
          %870 = vmatpush.bf16.msra.mxu0 %v743
          %871 = vmatpush.bf16.msra.mxu0 %v737
          %872 = vmatmul.bf16.gmra.mxu0 %v526
          %v873 = vpop.f32.mrf.mxu0
          %v874 = vadd.f32 0.0, %v873
          %v875 = vpop.f32.mrf.mxu0
          %v876 = vadd.f32 0.0, %v875
          %877 = vmatmul.bf16.gmra.mxu0 %v546
          %v878 = vpop.f32.mrf.mxu0
          %v879 = vadd.f32 0.0, %v878
          %v880 = vpop.f32.mrf.mxu0
          %v881 = vadd.f32 0.0, %v880
          %882 = vdwg.mxu0
          %883 = vmatpush.bf16.msra.mxu0 0
          %884 = vmatpush.bf16.msra.mxu0 0
          %885 = vmatpush.bf16.msra.mxu0 0
          %886 = vmatpush.bf16.msra.mxu0 0
          %887 = vmatpush.bf16.msra.mxu0 0
          %888 = vmatpush.bf16.msra.mxu0 0
          %889 = vmatpush.bf16.msra.mxu0 %v791
          %890 = vmatpush.bf16.msra.mxu0 %v785
          %891 = vmatmul.bf16.gmra.mxu0 %v859
          %v892 = vpop.f32.mrf.mxu0
          %v893 = vadd.f32 %v874, %v892
          %v894 = vpop.f32.mrf.mxu0
          %v895 = vadd.f32 %v876, %v894
          %896 = vmatmul.bf16.gmra.mxu0 %v862
          %v897 = vpop.f32.mrf.mxu0
          %v898 = vadd.f32 %v879, %v897
          %v899 = vpop.f32.mrf.mxu0
          %v900 = vadd.f32 %v881, %v899
          %901 = vdwg.mxu0
          %902 = vmatpush.bf16.msra.mxu0 %v780
          %903 = vmatpush.bf16.msra.mxu0 %v774
          %904 = vmatpush.bf16.msra.mxu0 %v768
          %905 = vmatpush.bf16.msra.mxu0 %v762
          %906 = vmatpush.bf16.msra.mxu0 %v756
          %907 = vmatpush.bf16.msra.mxu0 %v750
          %908 = vmatpush.bf16.msra.mxu0 %v744
          %909 = vmatpush.bf16.msra.mxu0 %v738
          %910 = vmatmul.bf16.gmra.mxu0 %v526
          %v911 = vpop.f32.mrf.mxu0
          %v912 = vadd.f32 0.0, %v911
          %v913 = vpop.f32.mrf.mxu0
          %v914 = vadd.f32 0.0, %v913
          %915 = vmatmul.bf16.gmra.mxu0 %v546
          %v916 = vpop.f32.mrf.mxu0
          %v917 = vadd.f32 0.0, %v916
          %v918 = vpop.f32.mrf.mxu0
          %v919 = vadd.f32 0.0, %v918
          %920 = vdwg.mxu0
          %921 = vmatpush.bf16.msra.mxu0 0
          %922 = vmatpush.bf16.msra.mxu0 0
          %923 = vmatpush.bf16.msra.mxu0 0
          %924 = vmatpush.bf16.msra.mxu0 0
          %925 = vmatpush.bf16.msra.mxu0 0
          %926 = vmatpush.bf16.msra.mxu0 0
          %927 = vmatpush.bf16.msra.mxu0 %v792
          %928 = vmatpush.bf16.msra.mxu0 %v786
          %929 = vmatmul.bf16.gmra.mxu0 %v859
          %v930 = vpop.f32.mrf.mxu0
          %v931 = vadd.f32 %v912, %v930
          %v932 = vpop.f32.mrf.mxu0
          %v933 = vadd.f32 %v914, %v932
          %934 = vmatmul.bf16.gmra.mxu0 %v862
          %v935 = vpop.f32.mrf.mxu0
          %v936 = vadd.f32 %v917, %v935
          %v937 = vpop.f32.mrf.mxu0
          %v938 = vadd.f32 %v919, %v937
          %939 = vdwg.mxu0
          %940 = vmatpush.bf16.msra.mxu0 %v781
          %941 = vmatpush.bf16.msra.mxu0 %v775
          %942 = vmatpush.bf16.msra.mxu0 %v769
          %943 = vmatpush.bf16.msra.mxu0 %v763
          %944 = vmatpush.bf16.msra.mxu0 %v757
          %945 = vmatpush.bf16.msra.mxu0 %v751
          %946 = vmatpush.bf16.msra.mxu0 %v745
          %947 = vmatpush.bf16.msra.mxu0 %v739
          %948 = vmatmul.bf16.gmra.mxu0 %v526
          %v949 = vpop.f32.mrf.mxu0
          %v950 = vadd.f32 0.0, %v949
          %v951 = vpop.f32.mrf.mxu0
          %v952 = vadd.f32 0.0, %v951
          %953 = vmatmul.bf16.gmra.mxu0 %v546
          %v954 = vpop.f32.mrf.mxu0
          %v955 = vadd.f32 0.0, %v954
          %v956 = vpop.f32.mrf.mxu0
          %v957 = vadd.f32 0.0, %v956
          %958 = vdwg.mxu0
          %959 = vmatpush.bf16.msra.mxu0 0
          %960 = vmatpush.bf16.msra.mxu0 0
          %961 = vmatpush.bf16.msra.mxu0 0
          %962 = vmatpush.bf16.msra.mxu0 0
          %963 = vmatpush.bf16.msra.mxu0 0
          %964 = vmatpush.bf16.msra.mxu0 0
          %965 = vmatpush.bf16.msra.mxu0 %v793
          %966 = vmatpush.bf16.msra.mxu0 %v787
          %967 = vmatmul.bf16.gmra.mxu0 %v859
          %v968 = vpop.f32.mrf.mxu0
          %v969 = vadd.f32 %v950, %v968
          %v970 = vpop.f32.mrf.mxu0
          %v971 = vadd.f32 %v952, %v970
          %972 = vmatmul.bf16.gmra.mxu0 %v862
          %v973 = vpop.f32.mrf.mxu0
          %v974 = vadd.f32 %v955, %v973
          %v975 = vpop.f32.mrf.mxu0
          %v976 = vadd.f32 %v957, %v975
          %977 = vdwg.mxu0
          %978 = vmatpush.bf16.msra.mxu0 %v782
          %979 = vmatpush.bf16.msra.mxu0 %v776
          %980 = vmatpush.bf16.msra.mxu0 %v770
          %981 = vmatpush.bf16.msra.mxu0 %v764
          %982 = vmatpush.bf16.msra.mxu0 %v758
          %983 = vmatpush.bf16.msra.mxu0 %v752
          %984 = vmatpush.bf16.msra.mxu0 %v746
          %985 = vmatpush.bf16.msra.mxu0 %v740
          %986 = vmatmul.bf16.gmra.mxu0 %v526
          %v987 = vpop.f32.mrf.mxu0
          %v988 = vadd.f32 0.0, %v987
          %v989 = vpop.f32.mrf.mxu0
          %v990 = vadd.f32 0.0, %v989
          %991 = vmatmul.bf16.gmra.mxu0 %v546
          %v992 = vpop.f32.mrf.mxu0
          %v993 = vadd.f32 0.0, %v992
          %v994 = vpop.f32.mrf.mxu0
          %v995 = vadd.f32 0.0, %v994
          %996 = vdwg.mxu0
          %997 = vmatpush.bf16.msra.mxu0 0
          %998 = vmatpush.bf16.msra.mxu0 0
          %999 = vmatpush.bf16.msra.mxu0 0
          %1000 = vmatpush.bf16.msra.mxu0 0
          %1001 = vmatpush.bf16.msra.mxu0 0
          %1002 = vmatpush.bf16.msra.mxu0 0
          %1003 = vmatpush.bf16.msra.mxu0 %v794
          %1004 = vmatpush.bf16.msra.mxu0 %v788
          %1005 = vmatmul.bf16.gmra.mxu0 %v859
          %v1006 = vpop.f32.mrf.mxu0
          %v1007 = vadd.f32 %v988, %v1006
          %v1008 = vpop.f32.mrf.mxu0
          %v1009 = vadd.f32 %v990, %v1008
          %1010 = vmatmul.bf16.gmra.mxu0 %v862
          %v1011 = vpop.f32.mrf.mxu0
          %v1012 = vadd.f32 %v993, %v1011
          %v1013 = vpop.f32.mrf.mxu0
          %v1014 = vadd.f32 %v995, %v1013
          %1015 = vdwg.mxu0
          %1016 = vmatpush.bf16.msra.mxu0 %v783
          %1017 = vmatpush.bf16.msra.mxu0 %v777
          %1018 = vmatpush.bf16.msra.mxu0 %v771
          %1019 = vmatpush.bf16.msra.mxu0 %v765
          %1020 = vmatpush.bf16.msra.mxu0 %v759
          %1021 = vmatpush.bf16.msra.mxu0 %v753
          %1022 = vmatpush.bf16.msra.mxu0 %v747
          %1023 = vmatpush.bf16.msra.mxu0 %v741
          %1024 = vmatmul.bf16.gmra.mxu0 %v526
          %v1025 = vpop.f32.mrf.mxu0
          %v1026 = vadd.f32 0.0, %v1025
          %v1027 = vpop.f32.mrf.mxu0
          %v1028 = vadd.f32 0.0, %v1027
          %1029 = vmatmul.bf16.gmra.mxu0 %v546
          %v1030 = vpop.f32.mrf.mxu0
          %v1031 = vadd.f32 0.0, %v1030
          %v1032 = vpop.f32.mrf.mxu0
          %v1033 = vadd.f32 0.0, %v1032
          %1034 = vdwg.mxu0
          %1035 = vmatpush.bf16.msra.mxu0 0
          %1036 = vmatpush.bf16.msra.mxu0 0
          %1037 = vmatpush.bf16.msra.mxu0 0
          %1038 = vmatpush.bf16.msra.mxu0 0
          %1039 = vmatpush.bf16.msra.mxu0 0
          %1040 = vmatpush.bf16.msra.mxu0 0
          %1041 = vmatpush.bf16.msra.mxu0 %v795
          %1042 = vmatpush.bf16.msra.mxu0 %v789
          %1043 = vmatmul.bf16.gmra.mxu0 %v859
          %v1044 = vpop.f32.mrf.mxu0
          %v1045 = vadd.f32 %v1026, %v1044
          %v1046 = vpop.f32.mrf.mxu0
          %v1047 = vadd.f32 %v1028, %v1046
          %1048 = vmatmul.bf16.gmra.mxu0 %v862
          %v1049 = vpop.f32.mrf.mxu0
          %v1050 = vadd.f32 %v1031, %v1049
          %v1051 = vpop.f32.mrf.mxu0
          %v1052 = vadd.f32 %v1033, %v1051
          %1053 = vdwg.mxu0
          %1054 = vmatpush.bf16.msra.mxu0 %v784
          %1055 = vmatpush.bf16.msra.mxu0 %v778
          %1056 = vmatpush.bf16.msra.mxu0 %v772
          %1057 = vmatpush.bf16.msra.mxu0 %v766
          %1058 = vmatpush.bf16.msra.mxu0 %v760
          %1059 = vmatpush.bf16.msra.mxu0 %v754
          %1060 = vmatpush.bf16.msra.mxu0 %v748
          %1061 = vmatpush.bf16.msra.mxu0 %v742
          %1062 = vmatmul.bf16.gmra.mxu0 %v526
          %v1063 = vpop.f32.mrf.mxu0
          %v1064 = vadd.f32 0.0, %v1063
          %v1065 = vpop.f32.mrf.mxu0
          %v1066 = vadd.f32 0.0, %v1065
          %1067 = vmatmul.bf16.gmra.mxu0 %v546
          %v1068 = vpop.f32.mrf.mxu0
          %v1069 = vadd.f32 0.0, %v1068
          %v1070 = vpop.f32.mrf.mxu0
          %v1071 = vadd.f32 0.0, %v1070
          %1072 = vdwg.mxu0
          %1073 = vmatpush.bf16.msra.mxu0 0
          %1074 = vmatpush.bf16.msra.mxu0 0
          %1075 = vmatpush.bf16.msra.mxu0 0
          %1076 = vmatpush.bf16.msra.mxu0 0
          %1077 = vmatpush.bf16.msra.mxu0 0
          %1078 = vmatpush.bf16.msra.mxu0 0
          %1079 = vmatpush.bf16.msra.mxu0 %v796
          %1080 = vmatpush.bf16.msra.mxu0 %v790
          %1081 = vmatmul.bf16.gmra.mxu0 %v859
          %v1082 = vpop.f32.mrf.mxu0
          %v1083 = vadd.f32 %v1064, %v1082
          %v1084 = vpop.f32.mrf.mxu0
          %v1085 = vadd.f32 %v1066, %v1084
          %1086 = vmatmul.bf16.gmra.mxu0 %v862
          %v1087 = vpop.f32.mrf.mxu0
          %v1088 = vadd.f32 %v1069, %v1087
          %v1089 = vpop.f32.mrf.mxu0
          %v1090 = vadd.f32 %v1071, %v1089
          %1091 = vdwg.mxu0
          %v1152 = vunpack.c.l.b16 %v392
          %v1153 = vunpack.c.h.b16 %v392
          %v1154 = vunpack.c.l.b16 %v393
          %v1155 = vunpack.c.h.b16 %v393
          %v1156 = vunpack.c.l.b16 %v394
          %v1157 = vunpack.c.h.b16 %v394
          %v1158 = vunpack.c.l.b16 %v395
          %v1159 = vunpack.c.h.b16 %v395
          %v1160 = vunpack.c.l.b16 %v396
          %v1161 = vunpack.c.h.b16 %v396
          %v1162 = vunpack.c.l.b16 %v397
          %v1163 = vunpack.c.h.b16 %v397
          %v1164 = vunpack.c.l.b16 %v398
          %v1165 = vunpack.c.h.b16 %v398
          %v1166 = vunpack.c.l.b16 %v399
          %v1167 = vunpack.c.h.b16 %v399
          %v1168 = vunpack.c.l.b16 %v400
          %v1169 = vunpack.c.h.b16 %v400
          %v1170 = vunpack.c.l.b16 %v401
          %v1171 = vunpack.c.h.b16 %v401
          %v1172 = vunpack.c.l.b16 %v402
          %v1173 = vunpack.c.h.b16 %v402
          %v1174 = vunpack.c.l.b16 %v403
          %v1175 = vunpack.c.h.b16 %v403
          %v1176 = vunpack.c.l.b16 %v404
          %v1177 = vunpack.c.h.b16 %v404
          %v1178 = vunpack.c.l.b16 %v405
          %v1179 = vunpack.c.h.b16 %v405
          %v1180 = vunpack.c.l.b16 %v406
          %v1181 = vunpack.c.h.b16 %v406
          %v1182 = vunpack.c.l.b16 %v407
          %v1183 = vunpack.c.h.b16 %v407
          %v1184 = vunpack.c.l.b16 %v408
          %v1185 = vunpack.c.h.b16 %v408
          %v1186 = vunpack.c.l.b16 %v409
          %v1187 = vunpack.c.h.b16 %v409
          %v1188 = vunpack.c.l.b16 %v410
          %v1189 = vunpack.c.h.b16 %v410
          %v1190 = vunpack.c.l.b16 %v411
          %v1191 = vunpack.c.h.b16 %v411
          %v1192 = vunpack.c.l.b16 %v412
          %v1193 = vunpack.c.h.b16 %v412
          %v1194 = vunpack.c.l.b16 %v413
          %v1195 = vunpack.c.h.b16 %v413
          %v1196 = vunpack.c.l.b16 %v414
          %v1197 = vunpack.c.h.b16 %v414
          %v1198 = vunpack.c.l.b16 %v415
          %v1199 = vunpack.c.h.b16 %v415
          %v1200 = vunpack.c.l.b16 %v416
          %v1201 = vunpack.c.h.b16 %v416
          %v1202 = vunpack.c.l.b16 %v417
          %v1203 = vunpack.c.h.b16 %v417
          %v1204 = vunpack.c.l.b16 %v418
          %v1205 = vunpack.c.h.b16 %v418
          %v1206 = vunpack.c.l.b16 %v419
          %v1207 = vunpack.c.h.b16 %v419
          %v1208 = vunpack.c.l.b16 %v420
          %v1209 = vunpack.c.h.b16 %v420
          %v1210 = vunpack.c.l.b16 %v421
          %v1211 = vunpack.c.h.b16 %v421
          %v1212 = vunpack.c.l.b16 %v422
          %v1213 = vunpack.c.h.b16 %v422
          %v1214 = vunpack.c.l.b16 %v423
          %v1215 = vunpack.c.h.b16 %v423
          %v1216 = vunpack.c.l.b16 %v424
          %v1217 = vunpack.c.h.b16 %v424
          %v1218 = vunpack.c.l.b16 %v425
          %v1219 = vunpack.c.h.b16 %v425
          %v1220 = vunpack.c.l.b16 %v426
          %v1221 = vunpack.c.h.b16 %v426
          %v1222 = vunpack.c.l.b16 %v427
          %v1223 = vunpack.c.h.b16 %v427
          %v1224 = vunpack.c.l.b16 %v428
          %v1225 = vunpack.c.h.b16 %v428
          %v1226 = vunpack.c.l.b16 %v429
          %v1227 = vunpack.c.h.b16 %v429
          %v1228 = vunpack.c.l.b16 %v430
          %v1229 = vunpack.c.h.b16 %v430
          %v1230 = vunpack.c.l.b16 %v431
          %v1231 = vunpack.c.h.b16 %v431
          %v1232 = vunpack.c.l.b16 %v432
          %v1233 = vunpack.c.h.b16 %v432
          %v1234 = vunpack.c.l.b16 %v433
          %v1235 = vunpack.c.h.b16 %v433
          %v1236 = vunpack.c.l.b16 %v434
          %v1237 = vunpack.c.h.b16 %v434
          %v1238 = vunpack.c.l.b16 %v435
          %v1239 = vunpack.c.h.b16 %v435
          %v1240 = vunpack.c.l.b16 %v436
          %v1241 = vunpack.c.h.b16 %v436
          %v1242 = vunpack.c.l.b16 %v437
          %v1243 = vunpack.c.h.b16 %v437
          %v1244 = vunpack.c.l.b16 %v438
          %v1245 = vunpack.c.h.b16 %v438
          %v1246 = vunpack.c.l.b16 %v439
          %v1247 = vunpack.c.h.b16 %v439
          %v1248 = vunpack.c.l.b16 %v440
          %v1249 = vunpack.c.h.b16 %v440
          %v1250 = vunpack.c.l.b16 %v441
          %v1251 = vunpack.c.h.b16 %v441
          %v1252 = vunpack.c.l.b16 %v442
          %v1253 = vunpack.c.h.b16 %v442
          %v1254 = vunpack.c.l.b16 %v443
          %v1255 = vunpack.c.h.b16 %v443
          %v1256 = vunpack.c.l.b16 %v444
          %v1257 = vunpack.c.h.b16 %v444
          %v1258 = vunpack.c.l.b16 %v445
          %v1259 = vunpack.c.h.b16 %v445
          %v1260 = vunpack.c.l.b16 %v446
          %v1261 = vunpack.c.h.b16 %v446
          %v1262 = vunpack.c.l.b16 %v447
          %v1263 = vunpack.c.h.b16 %v447
          %v1264 = vunpack.c.l.b16 %v448
          %v1265 = vunpack.c.h.b16 %v448
          %v1266 = vunpack.c.l.b16 %v449
          %v1267 = vunpack.c.h.b16 %v449
          %v1268 = vunpack.c.l.b16 %v450
          %v1269 = vunpack.c.h.b16 %v450
          %v1270 = vunpack.c.l.b16 %v451
          %v1271 = vunpack.c.h.b16 %v451
          %v1272 = vpack.c.b16 %v1158, %v1152
          %v1273 = vpack.c.b16 %v1159, %v1153
          %v1274 = vpack.c.b16 %v1160, %v1154
          %v1275 = vpack.c.b16 %v1161, %v1155
          %v1276 = vpack.c.b16 %v1162, %v1156
          %v1277 = vpack.c.b16 %v1163, %v1157
          %v1278 = vpack.c.b16 %v1170, %v1164
          %v1279 = vpack.c.b16 %v1171, %v1165
          %v1280 = vpack.c.b16 %v1172, %v1166
          %v1281 = vpack.c.b16 %v1173, %v1167
          %v1282 = vpack.c.b16 %v1174, %v1168
          %v1283 = vpack.c.b16 %v1175, %v1169
          %v1284 = vpack.c.b16 %v1182, %v1176
          %v1285 = vpack.c.b16 %v1183, %v1177
          %v1286 = vpack.c.b16 %v1184, %v1178
          %v1287 = vpack.c.b16 %v1185, %v1179
          %v1288 = vpack.c.b16 %v1186, %v1180
          %v1289 = vpack.c.b16 %v1187, %v1181
          %v1290 = vpack.c.b16 %v1194, %v1188
          %v1291 = vpack.c.b16 %v1195, %v1189
          %v1292 = vpack.c.b16 %v1196, %v1190
          %v1293 = vpack.c.b16 %v1197, %v1191
          %v1294 = vpack.c.b16 %v1198, %v1192
          %v1295 = vpack.c.b16 %v1199, %v1193
          %v1296 = vpack.c.b16 %v1206, %v1200
          %v1297 = vpack.c.b16 %v1207, %v1201
          %v1298 = vpack.c.b16 %v1208, %v1202
          %v1299 = vpack.c.b16 %v1209, %v1203
          %v1300 = vpack.c.b16 %v1210, %v1204
          %v1301 = vpack.c.b16 %v1211, %v1205
          %v1302 = vpack.c.b16 %v1218, %v1212
          %v1303 = vpack.c.b16 %v1219, %v1213
          %v1304 = vpack.c.b16 %v1220, %v1214
          %v1305 = vpack.c.b16 %v1221, %v1215
          %v1306 = vpack.c.b16 %v1222, %v1216
          %v1307 = vpack.c.b16 %v1223, %v1217
          %v1308 = vpack.c.b16 %v1230, %v1224
          %v1309 = vpack.c.b16 %v1231, %v1225
          %v1310 = vpack.c.b16 %v1232, %v1226
          %v1311 = vpack.c.b16 %v1233, %v1227
          %v1312 = vpack.c.b16 %v1234, %v1228
          %v1313 = vpack.c.b16 %v1235, %v1229
          %v1314 = vpack.c.b16 %v1242, %v1236
          %v1315 = vpack.c.b16 %v1243, %v1237
          %v1316 = vpack.c.b16 %v1244, %v1238
          %v1317 = vpack.c.b16 %v1245, %v1239
          %v1318 = vpack.c.b16 %v1246, %v1240
          %v1319 = vpack.c.b16 %v1247, %v1241
          %v1320 = vpack.c.b16 %v1254, %v1248
          %v1321 = vpack.c.b16 %v1255, %v1249
          %v1322 = vpack.c.b16 %v1256, %v1250
          %v1323 = vpack.c.b16 %v1257, %v1251
          %v1324 = vpack.c.b16 %v1258, %v1252
          %v1325 = vpack.c.b16 %v1259, %v1253
          %v1326 = vpack.c.b16 %v1266, %v1260
          %v1327 = vpack.c.b16 %v1267, %v1261
          %v1328 = vpack.c.b16 %v1268, %v1262
          %v1329 = vpack.c.b16 %v1269, %v1263
          %v1330 = vpack.c.b16 %v1270, %v1264
          %v1331 = vpack.c.b16 %v1271, %v1265
          %v1392 = vsel %vm857, %v389, 0
          %v1394 = vsel %vm857, %v391, 0
          %1396 = vmatpush.bf16.msra.mxu0 %v1314
          %1397 = vmatpush.bf16.msra.mxu0 %v1308
          %1398 = vmatpush.bf16.msra.mxu0 %v1302
          %1399 = vmatpush.bf16.msra.mxu0 %v1296
          %1400 = vmatpush.bf16.msra.mxu0 %v1290
          %1401 = vmatpush.bf16.msra.mxu0 %v1284
          %1402 = vmatpush.bf16.msra.mxu0 %v1278
          %1403 = vmatpush.bf16.msra.mxu0 %v1272
          %1404 = vmatmul.bf16.gmra.mxu0 %v388
          %v1405 = vpop.f32.mrf.mxu0
          %v1406 = vadd.f32 %v893, %v1405
          %v1407 = vpop.f32.mrf.mxu0
          %v1408 = vadd.f32 %v895, %v1407
          %1409 = vmatmul.bf16.gmra.mxu0 %v390
          %v1410 = vpop.f32.mrf.mxu0
          %v1411 = vadd.f32 %v898, %v1410
          %v1412 = vpop.f32.mrf.mxu0
          %v1413 = vadd.f32 %v900, %v1412
          %1414 = vdwg.mxu0
          %1415 = vmatpush.bf16.msra.mxu0 0
          %1416 = vmatpush.bf16.msra.mxu0 0
          %1417 = vmatpush.bf16.msra.mxu0 0
          %1418 = vmatpush.bf16.msra.mxu0 0
          %1419 = vmatpush.bf16.msra.mxu0 0
          %1420 = vmatpush.bf16.msra.mxu0 0
          %1421 = vmatpush.bf16.msra.mxu0 %v1326
          %1422 = vmatpush.bf16.msra.mxu0 %v1320
          %1423 = vmatmul.bf16.gmra.mxu0 %v1392
          %v1424 = vpop.f32.mrf.mxu0
          %v1425 = vadd.f32 %v1406, %v1424
          %v1426 = vpop.f32.mrf.mxu0
          %v1427 = vadd.f32 %v1408, %v1426
          %1428 = vmatmul.bf16.gmra.mxu0 %v1394
          %v1429 = vpop.f32.mrf.mxu0
          %v1430 = vadd.f32 %v1411, %v1429
          %v1431 = vpop.f32.mrf.mxu0
          %v1432 = vadd.f32 %v1413, %v1431
          %1433 = vdwg.mxu0
          %1434 = vmatpush.bf16.msra.mxu0 %v1315
          %1435 = vmatpush.bf16.msra.mxu0 %v1309
          %1436 = vmatpush.bf16.msra.mxu0 %v1303
          %1437 = vmatpush.bf16.msra.mxu0 %v1297
          %1438 = vmatpush.bf16.msra.mxu0 %v1291
          %1439 = vmatpush.bf16.msra.mxu0 %v1285
          %1440 = vmatpush.bf16.msra.mxu0 %v1279
          %1441 = vmatpush.bf16.msra.mxu0 %v1273
          %1442 = vmatmul.bf16.gmra.mxu0 %v388
          %v1443 = vpop.f32.mrf.mxu0
          %v1444 = vadd.f32 %v931, %v1443
          %v1445 = vpop.f32.mrf.mxu0
          %v1446 = vadd.f32 %v933, %v1445
          %1447 = vmatmul.bf16.gmra.mxu0 %v390
          %v1448 = vpop.f32.mrf.mxu0
          %v1449 = vadd.f32 %v936, %v1448
          %v1450 = vpop.f32.mrf.mxu0
          %v1451 = vadd.f32 %v938, %v1450
          %1452 = vdwg.mxu0
          %1453 = vmatpush.bf16.msra.mxu0 0
          %1454 = vmatpush.bf16.msra.mxu0 0
          %1455 = vmatpush.bf16.msra.mxu0 0
          %1456 = vmatpush.bf16.msra.mxu0 0
          %1457 = vmatpush.bf16.msra.mxu0 0
          %1458 = vmatpush.bf16.msra.mxu0 0
          %1459 = vmatpush.bf16.msra.mxu0 %v1327
          %1460 = vmatpush.bf16.msra.mxu0 %v1321
          %1461 = vmatmul.bf16.gmra.mxu0 %v1392
          %v1462 = vpop.f32.mrf.mxu0
          %v1463 = vadd.f32 %v1444, %v1462
          %v1464 = vpop.f32.mrf.mxu0
          %v1465 = vadd.f32 %v1446, %v1464
          %1466 = vmatmul.bf16.gmra.mxu0 %v1394
          %v1467 = vpop.f32.mrf.mxu0
          %v1468 = vadd.f32 %v1449, %v1467
          %v1469 = vpop.f32.mrf.mxu0
          %v1470 = vadd.f32 %v1451, %v1469
          %1471 = vdwg.mxu0
          %1472 = vmatpush.bf16.msra.mxu0 %v1316
          %1473 = vmatpush.bf16.msra.mxu0 %v1310
          %1474 = vmatpush.bf16.msra.mxu0 %v1304
          %1475 = vmatpush.bf16.msra.mxu0 %v1298
          %1476 = vmatpush.bf16.msra.mxu0 %v1292
          %1477 = vmatpush.bf16.msra.mxu0 %v1286
          %1478 = vmatpush.bf16.msra.mxu0 %v1280
          %1479 = vmatpush.bf16.msra.mxu0 %v1274
          %1480 = vmatmul.bf16.gmra.mxu0 %v388
          %v1481 = vpop.f32.mrf.mxu0
          %v1482 = vadd.f32 %v969, %v1481
          %v1483 = vpop.f32.mrf.mxu0
          %v1484 = vadd.f32 %v971, %v1483
          %1485 = vmatmul.bf16.gmra.mxu0 %v390
          %v1486 = vpop.f32.mrf.mxu0
          %v1487 = vadd.f32 %v974, %v1486
          %v1488 = vpop.f32.mrf.mxu0
          %v1489 = vadd.f32 %v976, %v1488
          %1490 = vdwg.mxu0
          %1491 = vmatpush.bf16.msra.mxu0 0
          %1492 = vmatpush.bf16.msra.mxu0 0
          %1493 = vmatpush.bf16.msra.mxu0 0
          %1494 = vmatpush.bf16.msra.mxu0 0
          %1495 = vmatpush.bf16.msra.mxu0 0
          %1496 = vmatpush.bf16.msra.mxu0 0
          %1497 = vmatpush.bf16.msra.mxu0 %v1328
          %1498 = vmatpush.bf16.msra.mxu0 %v1322
          %1499 = vmatmul.bf16.gmra.mxu0 %v1392
          %v1500 = vpop.f32.mrf.mxu0
          %v1501 = vadd.f32 %v1482, %v1500
          %v1502 = vpop.f32.mrf.mxu0
          %v1503 = vadd.f32 %v1484, %v1502
          %1504 = vmatmul.bf16.gmra.mxu0 %v1394
          %v1505 = vpop.f32.mrf.mxu0
          %v1506 = vadd.f32 %v1487, %v1505
          %v1507 = vpop.f32.mrf.mxu0
          %v1508 = vadd.f32 %v1489, %v1507
          %1509 = vdwg.mxu0
          %1510 = vmatpush.bf16.msra.mxu0 %v1317
          %1511 = vmatpush.bf16.msra.mxu0 %v1311
          %1512 = vmatpush.bf16.msra.mxu0 %v1305
          %1513 = vmatpush.bf16.msra.mxu0 %v1299
          %1514 = vmatpush.bf16.msra.mxu0 %v1293
          %1515 = vmatpush.bf16.msra.mxu0 %v1287
          %1516 = vmatpush.bf16.msra.mxu0 %v1281
          %1517 = vmatpush.bf16.msra.mxu0 %v1275
          %1518 = vmatmul.bf16.gmra.mxu0 %v388
          %v1519 = vpop.f32.mrf.mxu0
          %v1520 = vadd.f32 %v1007, %v1519
          %v1521 = vpop.f32.mrf.mxu0
          %v1522 = vadd.f32 %v1009, %v1521
          %1523 = vmatmul.bf16.gmra.mxu0 %v390
          %v1524 = vpop.f32.mrf.mxu0
          %v1525 = vadd.f32 %v1012, %v1524
          %v1526 = vpop.f32.mrf.mxu0
          %v1527 = vadd.f32 %v1014, %v1526
          %1528 = vdwg.mxu0
          %1529 = vmatpush.bf16.msra.mxu0 0
          %1530 = vmatpush.bf16.msra.mxu0 0
          %1531 = vmatpush.bf16.msra.mxu0 0
          %1532 = vmatpush.bf16.msra.mxu0 0
          %1533 = vmatpush.bf16.msra.mxu0 0
          %1534 = vmatpush.bf16.msra.mxu0 0
          %1535 = vmatpush.bf16.msra.mxu0 %v1329
          %1536 = vmatpush.bf16.msra.mxu0 %v1323
          %1537 = vmatmul.bf16.gmra.mxu0 %v1392
          %v1538 = vpop.f32.mrf.mxu0
          %v1539 = vadd.f32 %v1520, %v1538
          %v1540 = vpop.f32.mrf.mxu0
          %v1541 = vadd.f32 %v1522, %v1540
          %1542 = vmatmul.bf16.gmra.mxu0 %v1394
          %v1543 = vpop.f32.mrf.mxu0
          %v1544 = vadd.f32 %v1525, %v1543
          %v1545 = vpop.f32.mrf.mxu0
          %v1546 = vadd.f32 %v1527, %v1545
          %1547 = vdwg.mxu0
          %1548 = vmatpush.bf16.msra.mxu0 %v1318
          %1549 = vmatpush.bf16.msra.mxu0 %v1312
          %1550 = vmatpush.bf16.msra.mxu0 %v1306
          %1551 = vmatpush.bf16.msra.mxu0 %v1300
          %1552 = vmatpush.bf16.msra.mxu0 %v1294
          %1553 = vmatpush.bf16.msra.mxu0 %v1288
          %1554 = vmatpush.bf16.msra.mxu0 %v1282
          %1555 = vmatpush.bf16.msra.mxu0 %v1276
          %1556 = vmatmul.bf16.gmra.mxu0 %v388
          %v1557 = vpop.f32.mrf.mxu0
          %v1558 = vadd.f32 %v1045, %v1557
          %v1559 = vpop.f32.mrf.mxu0
          %v1560 = vadd.f32 %v1047, %v1559
          %1561 = vmatmul.bf16.gmra.mxu0 %v390
          %v1562 = vpop.f32.mrf.mxu0
          %v1563 = vadd.f32 %v1050, %v1562
          %v1564 = vpop.f32.mrf.mxu0
          %v1565 = vadd.f32 %v1052, %v1564
          %1566 = vdwg.mxu0
          %1567 = vmatpush.bf16.msra.mxu0 0
          %1568 = vmatpush.bf16.msra.mxu0 0
          %1569 = vmatpush.bf16.msra.mxu0 0
          %1570 = vmatpush.bf16.msra.mxu0 0
          %1571 = vmatpush.bf16.msra.mxu0 0
          %1572 = vmatpush.bf16.msra.mxu0 0
          %1573 = vmatpush.bf16.msra.mxu0 %v1330
          %1574 = vmatpush.bf16.msra.mxu0 %v1324
          %1575 = vmatmul.bf16.gmra.mxu0 %v1392
          %v1576 = vpop.f32.mrf.mxu0
          %v1577 = vadd.f32 %v1558, %v1576
          %v1578 = vpop.f32.mrf.mxu0
          %v1579 = vadd.f32 %v1560, %v1578
          %1580 = vmatmul.bf16.gmra.mxu0 %v1394
          %v1581 = vpop.f32.mrf.mxu0
          %v1582 = vadd.f32 %v1563, %v1581
          %v1583 = vpop.f32.mrf.mxu0
          %v1584 = vadd.f32 %v1565, %v1583
          %1585 = vdwg.mxu0
          %1586 = vmatpush.bf16.msra.mxu0 %v1319
          %1587 = vmatpush.bf16.msra.mxu0 %v1313
          %1588 = vmatpush.bf16.msra.mxu0 %v1307
          %1589 = vmatpush.bf16.msra.mxu0 %v1301
          %1590 = vmatpush.bf16.msra.mxu0 %v1295
          %1591 = vmatpush.bf16.msra.mxu0 %v1289
          %1592 = vmatpush.bf16.msra.mxu0 %v1283
          %1593 = vmatpush.bf16.msra.mxu0 %v1277
          %1594 = vmatmul.bf16.gmra.mxu0 %v388
          %v1595 = vpop.f32.mrf.mxu0
          %v1596 = vadd.f32 %v1083, %v1595
          %v1597 = vpop.f32.mrf.mxu0
          %v1598 = vadd.f32 %v1085, %v1597
          %1599 = vmatmul.bf16.gmra.mxu0 %v390
          %v1600 = vpop.f32.mrf.mxu0
          %v1601 = vadd.f32 %v1088, %v1600
          %v1602 = vpop.f32.mrf.mxu0
          %v1603 = vadd.f32 %v1090, %v1602
          %1604 = vdwg.mxu0
          %1605 = vmatpush.bf16.msra.mxu0 0
          %1606 = vmatpush.bf16.msra.mxu0 0
          %1607 = vmatpush.bf16.msra.mxu0 0
          %1608 = vmatpush.bf16.msra.mxu0 0
          %1609 = vmatpush.bf16.msra.mxu0 0
          %1610 = vmatpush.bf16.msra.mxu0 0
          %1611 = vmatpush.bf16.msra.mxu0 %v1331
          %1612 = vmatpush.bf16.msra.mxu0 %v1325
          %1613 = vmatmul.bf16.gmra.mxu0 %v1392
          %v1614 = vpop.f32.mrf.mxu0
          %v1615 = vadd.f32 %v1596, %v1614
          %v1616 = vpop.f32.mrf.mxu0
          %v1617 = vadd.f32 %v1598, %v1616
          %1618 = vmatmul.bf16.gmra.mxu0 %v1394
          %v1619 = vpop.f32.mrf.mxu0
          %v1620 = vadd.f32 %v1601, %v1619
          %v1621 = vpop.f32.mrf.mxu0
          %v1622 = vadd.f32 %v1603, %v1621
          %1623 = vdwg.mxu0
          %v1624 = vld [vmem:[#allocation4 + $0x3c0] sm:$0xff]
          %v1625 = vld [vmem:[#allocation4 + $0x3c8] sm:$0xff]
          %v1626 = vld [vmem:[#allocation4 + $0x3d0] sm:$0xff]
          %v1627 = vld [vmem:[#allocation4 + $0x3d8] sm:$0xff]
          %v1628 = vld [vmem:[#allocation4 + $0x3e0] sm:$0xff]
          %v1629 = vld [vmem:[#allocation4 + $0x3e8] sm:$0xff]
          %v1630 = vld [vmem:[#allocation4 + $0x3f0] sm:$0xff]
          %v1631 = vld [vmem:[#allocation4 + $0x3f8] sm:$0xff]
          %v1632 = vld [vmem:[#allocation4 + $0x400] sm:$0xff]
          %v1633 = vld [vmem:[#allocation4 + $0x408] sm:$0xff]
          %v1634 = vld [vmem:[#allocation4 + $0x410] sm:$0xff]
          %v1635 = vld [vmem:[#allocation4 + $0x418] sm:$0xff]
          %v1636 = vld [vmem:[#allocation4 + $0x420] sm:$0xff]
          %v1637 = vld [vmem:[#allocation4 + $0x428] sm:$0xff]
          %v1638 = vld [vmem:[#allocation4 + $0x430] sm:$0xff]
          %v1639 = vld [vmem:[#allocation4 + $0x438] sm:$0xff]
          %v1640 = vld [vmem:[#allocation4 + $0x440] sm:$0xff]
          %v1641 = vld [vmem:[#allocation4 + $0x448] sm:$0xff]
          %v1642 = vld [vmem:[#allocation4 + $0x450] sm:$0xff]
          %v1643 = vld [vmem:[#allocation4 + $0x458] sm:$0xff]
          %v1644 = vld [vmem:[#allocation4 + $0x460] sm:$0xff]
          %v1645 = vld [vmem:[#allocation4 + $0x468] sm:$0xff]
          %v1646 = vld [vmem:[#allocation4 + $0x470] sm:$0xff]
          %v1647 = vld [vmem:[#allocation4 + $0x478] sm:$0xff]
          %v1648 = vld [vmem:[#allocation4 + $0x480] sm:$0xff]
          %v1649 = vld [vmem:[#allocation4 + $0x488] sm:$0xff]
          %v1650 = vld [vmem:[#allocation4 + $0x490] sm:$0xff]
          %v1651 = vld [vmem:[#allocation4 + $0x498] sm:$0xff]
          %v1652 = vld [vmem:[#allocation4 + $0x4a0] sm:$0xff]
          %v1653 = vld [vmem:[#allocation4 + $0x4a8] sm:$0xff]
          %v1654 = vld [vmem:[#allocation4 + $0x4b0] sm:$0xff]
          %v1655 = vld [vmem:[#allocation4 + $0x4b8] sm:$0xff]
          %v1656 = vld [vmem:[#allocation4 + $0x4c0] sm:$0xff]
          %v1657 = vld [vmem:[#allocation4 + $0x4c8] sm:$0xff]
          %v1658 = vld [vmem:[#allocation4 + $0x4d0] sm:$0xff]
          %v1659 = vld [vmem:[#allocation4 + $0x4d8] sm:$0xff]
          %v1660 = vld [vmem:[#allocation4 + $0x4e0] sm:$0xff]
          %v1661 = vld [vmem:[#allocation4 + $0x4e8] sm:$0xff]
          %v1662 = vld [vmem:[#allocation4 + $0x4f0] sm:$0xff]
          %v1663 = vld [vmem:[#allocation4 + $0x4f8] sm:$0xff]
          %v1664 = vld [vmem:[#allocation4 + $0x500] sm:$0xff]
          %v1665 = vld [vmem:[#allocation4 + $0x508] sm:$0xff]
          %v1666 = vld [vmem:[#allocation4 + $0x510] sm:$0xff]
          %v1667 = vld [vmem:[#allocation4 + $0x518] sm:$0xff]
          %v1668 = vld [vmem:[#allocation4 + $0x520] sm:$0xff]
          %v1669 = vld [vmem:[#allocation4 + $0x528] sm:$0xff]
          %v1670 = vld [vmem:[#allocation4 + $0x530] sm:$0xff]
          %v1671 = vld [vmem:[#allocation4 + $0x538] sm:$0xff]
          %v1672 = vld [vmem:[#allocation4 + $0x540] sm:$0xff]
          %v1673 = vld [vmem:[#allocation4 + $0x548] sm:$0xff]
          %v1674 = vld [vmem:[#allocation4 + $0x550] sm:$0xff]
          %v1675 = vld [vmem:[#allocation4 + $0x558] sm:$0xff]
          %v1676 = vld [vmem:[#allocation4 + $0x560] sm:$0xff]
          %v1677 = vld [vmem:[#allocation4 + $0x568] sm:$0xff]
          %v1678 = vld [vmem:[#allocation4 + $0x570] sm:$0xff]
          %v1679 = vld [vmem:[#allocation4 + $0x578] sm:$0xff]
          %v1680 = vld [vmem:[#allocation4 + $0x580] sm:$0xff]
          %v1681 = vld [vmem:[#allocation4 + $0x588] sm:$0xff]
          %v1682 = vld [vmem:[#allocation4 + $0x590] sm:$0xff]
          %v1683 = vld [vmem:[#allocation4 + $0x598] sm:$0xff]
          %vm1690 = vcmask 1046528
          %v1691 = vrot.slane %v388, 1
          %v1692 = vrot.slane %v390, 1
          %v1693 = vsel %vm1690, %v1691, %v1692
          %v1694 = vrot.slane %v389, 1
          %v1695 = vrot.slane %v391, 1
          %v1696 = vsel %vm1690, %v1694, %v1695
          %v1697 = vrot.slane %v452, 1
          %v1698 = vsel %vm1690, %v1692, %v1697
          %v1699 = vrot.slane %v453, 1
          %v1700 = vsel %vm1690, %v1695, %v1699
          %v1763 = vunpack.c.l.b16 %v1624
          %v1764 = vunpack.c.h.b16 %v1624
          %v1765 = vunpack.c.l.b16 %v1625
          %v1766 = vunpack.c.h.b16 %v1625
          %v1767 = vunpack.c.l.b16 %v1626
          %v1768 = vunpack.c.h.b16 %v1626
          %v1769 = vunpack.c.l.b16 %v1627
          %v1770 = vunpack.c.h.b16 %v1627
          %v1771 = vunpack.c.l.b16 %v1628
          %v1772 = vunpack.c.h.b16 %v1628
          %v1773 = vunpack.c.l.b16 %v1629
          %v1774 = vunpack.c.h.b16 %v1629
          %v1775 = vunpack.c.l.b16 %v1630
          %v1776 = vunpack.c.h.b16 %v1630
          %v1777 = vunpack.c.l.b16 %v1631
          %v1778 = vunpack.c.h.b16 %v1631
          %v1779 = vunpack.c.l.b16 %v1632
          %v1780 = vunpack.c.h.b16 %v1632
          %v1781 = vunpack.c.l.b16 %v1633
          %v1782 = vunpack.c.h.b16 %v1633
          %v1783 = vunpack.c.l.b16 %v1634
          %v1784 = vunpack.c.h.b16 %v1634
          %v1785 = vunpack.c.l.b16 %v1635
          %v1786 = vunpack.c.h.b16 %v1635
          %v1787 = vunpack.c.l.b16 %v1636
          %v1788 = vunpack.c.h.b16 %v1636
          %v1789 = vunpack.c.l.b16 %v1637
          %v1790 = vunpack.c.h.b16 %v1637
          %v1791 = vunpack.c.l.b16 %v1638
          %v1792 = vunpack.c.h.b16 %v1638
          %v1793 = vunpack.c.l.b16 %v1639
          %v1794 = vunpack.c.h.b16 %v1639
          %v1795 = vunpack.c.l.b16 %v1640
          %v1796 = vunpack.c.h.b16 %v1640
          %v1797 = vunpack.c.l.b16 %v1641
          %v1798 = vunpack.c.h.b16 %v1641
          %v1799 = vunpack.c.l.b16 %v1642
          %v1800 = vunpack.c.h.b16 %v1642
          %v1801 = vunpack.c.l.b16 %v1643
          %v1802 = vunpack.c.h.b16 %v1643
          %v1803 = vunpack.c.l.b16 %v1644
          %v1804 = vunpack.c.h.b16 %v1644
          %v1805 = vunpack.c.l.b16 %v1645
          %v1806 = vunpack.c.h.b16 %v1645
          %v1807 = vunpack.c.l.b16 %v1646
          %v1808 = vunpack.c.h.b16 %v1646
          %v1809 = vunpack.c.l.b16 %v1647
          %v1810 = vunpack.c.h.b16 %v1647
          %v1811 = vunpack.c.l.b16 %v1648
          %v1812 = vunpack.c.h.b16 %v1648
          %v1813 = vunpack.c.l.b16 %v1649
          %v1814 = vunpack.c.h.b16 %v1649
          %v1815 = vunpack.c.l.b16 %v1650
          %v1816 = vunpack.c.h.b16 %v1650
          %v1817 = vunpack.c.l.b16 %v1651
          %v1818 = vunpack.c.h.b16 %v1651
          %v1819 = vunpack.c.l.b16 %v1652
          %v1820 = vunpack.c.h.b16 %v1652
          %v1821 = vunpack.c.l.b16 %v1653
          %v1822 = vunpack.c.h.b16 %v1653
          %v1823 = vunpack.c.l.b16 %v1654
          %v1824 = vunpack.c.h.b16 %v1654
          %v1825 = vunpack.c.l.b16 %v1655
          %v1826 = vunpack.c.h.b16 %v1655
          %v1827 = vunpack.c.l.b16 %v1656
          %v1828 = vunpack.c.h.b16 %v1656
          %v1829 = vunpack.c.l.b16 %v1657
          %v1830 = vunpack.c.h.b16 %v1657
          %v1831 = vunpack.c.l.b16 %v1658
          %v1832 = vunpack.c.h.b16 %v1658
          %v1833 = vunpack.c.l.b16 %v1659
          %v1834 = vunpack.c.h.b16 %v1659
          %v1835 = vunpack.c.l.b16 %v1660
          %v1836 = vunpack.c.h.b16 %v1660
          %v1837 = vunpack.c.l.b16 %v1661
          %v1838 = vunpack.c.h.b16 %v1661
          %v1839 = vunpack.c.l.b16 %v1662
          %v1840 = vunpack.c.h.b16 %v1662
          %v1841 = vunpack.c.l.b16 %v1663
          %v1842 = vunpack.c.h.b16 %v1663
          %v1843 = vunpack.c.l.b16 %v1664
          %v1844 = vunpack.c.h.b16 %v1664
          %v1845 = vunpack.c.l.b16 %v1665
          %v1846 = vunpack.c.h.b16 %v1665
          %v1847 = vunpack.c.l.b16 %v1666
          %v1848 = vunpack.c.h.b16 %v1666
          %v1849 = vunpack.c.l.b16 %v1667
          %v1850 = vunpack.c.h.b16 %v1667
          %v1851 = vunpack.c.l.b16 %v1668
          %v1852 = vunpack.c.h.b16 %v1668
          %v1853 = vunpack.c.l.b16 %v1669
          %v1854 = vunpack.c.h.b16 %v1669
          %v1855 = vunpack.c.l.b16 %v1670
          %v1856 = vunpack.c.h.b16 %v1670
          %v1857 = vunpack.c.l.b16 %v1671
          %v1858 = vunpack.c.h.b16 %v1671
          %v1859 = vunpack.c.l.b16 %v1672
          %v1860 = vunpack.c.h.b16 %v1672
          %v1861 = vunpack.c.l.b16 %v1673
          %v1862 = vunpack.c.h.b16 %v1673
          %v1863 = vunpack.c.l.b16 %v1674
          %v1864 = vunpack.c.h.b16 %v1674
          %v1865 = vunpack.c.l.b16 %v1675
          %v1866 = vunpack.c.h.b16 %v1675
          %v1867 = vunpack.c.l.b16 %v1676
          %v1868 = vunpack.c.h.b16 %v1676
          %v1869 = vunpack.c.l.b16 %v1677
          %v1870 = vunpack.c.h.b16 %v1677
          %v1871 = vunpack.c.l.b16 %v1678
          %v1872 = vunpack.c.h.b16 %v1678
          %v1873 = vunpack.c.l.b16 %v1679
          %v1874 = vunpack.c.h.b16 %v1679
          %v1875 = vunpack.c.l.b16 %v1680
          %v1876 = vunpack.c.h.b16 %v1680
          %v1877 = vunpack.c.l.b16 %v1681
          %v1878 = vunpack.c.h.b16 %v1681
          %v1879 = vunpack.c.l.b16 %v1682
          %v1880 = vunpack.c.h.b16 %v1682
          %v1881 = vunpack.c.l.b16 %v1683
          %v1882 = vunpack.c.h.b16 %v1683
          %v1883 = vpack.c.b16 %v1769, %v1763
          %v1884 = vpack.c.b16 %v1770, %v1764
          %v1885 = vpack.c.b16 %v1771, %v1765
          %v1886 = vpack.c.b16 %v1772, %v1766
          %v1887 = vpack.c.b16 %v1773, %v1767
          %v1888 = vpack.c.b16 %v1774, %v1768
          %v1889 = vpack.c.b16 %v1781, %v1775
          %v1890 = vpack.c.b16 %v1782, %v1776
          %v1891 = vpack.c.b16 %v1783, %v1777
          %v1892 = vpack.c.b16 %v1784, %v1778
          %v1893 = vpack.c.b16 %v1785, %v1779
          %v1894 = vpack.c.b16 %v1786, %v1780
          %v1895 = vpack.c.b16 %v1793, %v1787
          %v1896 = vpack.c.b16 %v1794, %v1788
          %v1897 = vpack.c.b16 %v1795, %v1789
          %v1898 = vpack.c.b16 %v1796, %v1790
          %v1899 = vpack.c.b16 %v1797, %v1791
          %v1900 = vpack.c.b16 %v1798, %v1792
          %v1901 = vpack.c.b16 %v1805, %v1799
          %v1902 = vpack.c.b16 %v1806, %v1800
          %v1903 = vpack.c.b16 %v1807, %v1801
          %v1904 = vpack.c.b16 %v1808, %v1802
          %v1905 = vpack.c.b16 %v1809, %v1803
          %v1906 = vpack.c.b16 %v1810, %v1804
          %v1907 = vpack.c.b16 %v1817, %v1811
          %v1908 = vpack.c.b16 %v1818, %v1812
          %v1909 = vpack.c.b16 %v1819, %v1813
          %v1910 = vpack.c.b16 %v1820, %v1814
          %v1911 = vpack.c.b16 %v1821, %v1815
          %v1912 = vpack.c.b16 %v1822, %v1816
          %v1913 = vpack.c.b16 %v1829, %v1823
          %v1914 = vpack.c.b16 %v1830, %v1824
          %v1915 = vpack.c.b16 %v1831, %v1825
          %v1916 = vpack.c.b16 %v1832, %v1826
          %v1917 = vpack.c.b16 %v1833, %v1827
          %v1918 = vpack.c.b16 %v1834, %v1828
          %v1919 = vpack.c.b16 %v1841, %v1835
          %v1920 = vpack.c.b16 %v1842, %v1836
          %v1921 = vpack.c.b16 %v1843, %v1837
          %v1922 = vpack.c.b16 %v1844, %v1838
          %v1923 = vpack.c.b16 %v1845, %v1839
          %v1924 = vpack.c.b16 %v1846, %v1840
          %v1925 = vpack.c.b16 %v1853, %v1847
          %v1926 = vpack.c.b16 %v1854, %v1848
          %v1927 = vpack.c.b16 %v1855, %v1849
          %v1928 = vpack.c.b16 %v1856, %v1850
          %v1929 = vpack.c.b16 %v1857, %v1851
          %v1930 = vpack.c.b16 %v1858, %v1852
          %v1931 = vpack.c.b16 %v1865, %v1859
          %v1932 = vpack.c.b16 %v1866, %v1860
          %v1933 = vpack.c.b16 %v1867, %v1861
          %v1934 = vpack.c.b16 %v1868, %v1862
          %v1935 = vpack.c.b16 %v1869, %v1863
          %v1936 = vpack.c.b16 %v1870, %v1864
          %v1937 = vpack.c.b16 %v1877, %v1871
          %v1938 = vpack.c.b16 %v1878, %v1872
          %v1939 = vpack.c.b16 %v1879, %v1873
          %v1940 = vpack.c.b16 %v1880, %v1874
          %v1941 = vpack.c.b16 %v1881, %v1875
          %v1942 = vpack.c.b16 %v1882, %v1876
          %v2004 = vsel %vm857, %v1696, 0
          %v2007 = vsel %vm857, %v1700, 0
          %2009 = vmatpush.bf16.msra.mxu0 %v1925
          %2010 = vmatpush.bf16.msra.mxu0 %v1919
          %2011 = vmatpush.bf16.msra.mxu0 %v1913
          %2012 = vmatpush.bf16.msra.mxu0 %v1907
          %2013 = vmatpush.bf16.msra.mxu0 %v1901
          %2014 = vmatpush.bf16.msra.mxu0 %v1895
          %2015 = vmatpush.bf16.msra.mxu0 %v1889
          %2016 = vmatpush.bf16.msra.mxu0 %v1883
          %2017 = vmatmul.bf16.gmra.mxu0 %v1693
          %v2018 = vpop.f32.mrf.mxu0
          %v2019 = vadd.f32 0.0, %v2018
          %v2020 = vpop.f32.mrf.mxu0
          %v2021 = vadd.f32 0.0, %v2020
          %2022 = vmatmul.bf16.gmra.mxu0 %v1698
          %v2023 = vpop.f32.mrf.mxu0
          %v2024 = vadd.f32 0.0, %v2023
          %v2025 = vpop.f32.mrf.mxu0
          %v2026 = vadd.f32 0.0, %v2025
          %2027 = vdwg.mxu0
          %2028 = vmatpush.bf16.msra.mxu0 0
          %2029 = vmatpush.bf16.msra.mxu0 0
          %2030 = vmatpush.bf16.msra.mxu0 0
          %2031 = vmatpush.bf16.msra.mxu0 0
          %2032 = vmatpush.bf16.msra.mxu0 0
          %2033 = vmatpush.bf16.msra.mxu0 0
          %2034 = vmatpush.bf16.msra.mxu0 %v1937
          %2035 = vmatpush.bf16.msra.mxu0 %v1931
          %2036 = vmatmul.bf16.gmra.mxu0 %v2004
          %v2037 = vpop.f32.mrf.mxu0
          %v2038 = vadd.f32 %v2019, %v2037
          %v2039 = vpop.f32.mrf.mxu0
          %v2040 = vadd.f32 %v2021, %v2039
          %2041 = vmatmul.bf16.gmra.mxu0 %v2007
          %v2042 = vpop.f32.mrf.mxu0
          %v2043 = vadd.f32 %v2024, %v2042
          %v2044 = vpop.f32.mrf.mxu0
          %v2045 = vadd.f32 %v2026, %v2044
          %2046 = vdwg.mxu0
          %2047 = vmatpush.bf16.msra.mxu0 %v1926
          %2048 = vmatpush.bf16.msra.mxu0 %v1920
          %2049 = vmatpush.bf16.msra.mxu0 %v1914
          %2050 = vmatpush.bf16.msra.mxu0 %v1908
          %2051 = vmatpush.bf16.msra.mxu0 %v1902
          %2052 = vmatpush.bf16.msra.mxu0 %v1896
          %2053 = vmatpush.bf16.msra.mxu0 %v1890
          %2054 = vmatpush.bf16.msra.mxu0 %v1884
          %2055 = vmatmul.bf16.gmra.mxu0 %v1693
          %v2056 = vpop.f32.mrf.mxu0
          %v2057 = vadd.f32 0.0, %v2056
          %v2058 = vpop.f32.mrf.mxu0
          %v2059 = vadd.f32 0.0, %v2058
          %2060 = vmatmul.bf16.gmra.mxu0 %v1698
          %v2061 = vpop.f32.mrf.mxu0
          %v2062 = vadd.f32 0.0, %v2061
          %v2063 = vpop.f32.mrf.mxu0
          %v2064 = vadd.f32 0.0, %v2063
          %2065 = vdwg.mxu0
          %2066 = vmatpush.bf16.msra.mxu0 0
          %2067 = vmatpush.bf16.msra.mxu0 0
          %2068 = vmatpush.bf16.msra.mxu0 0
          %2069 = vmatpush.bf16.msra.mxu0 0
          %2070 = vmatpush.bf16.msra.mxu0 0
          %2071 = vmatpush.bf16.msra.mxu0 0
          %2072 = vmatpush.bf16.msra.mxu0 %v1938
          %2073 = vmatpush.bf16.msra.mxu0 %v1932
          %2074 = vmatmul.bf16.gmra.mxu0 %v2004
          %v2075 = vpop.f32.mrf.mxu0
          %v2076 = vadd.f32 %v2057, %v2075
          %v2077 = vpop.f32.mrf.mxu0
          %v2078 = vadd.f32 %v2059, %v2077
          %2079 = vmatmul.bf16.gmra.mxu0 %v2007
          %v2080 = vpop.f32.mrf.mxu0
          %v2081 = vadd.f32 %v2062, %v2080
          %v2082 = vpop.f32.mrf.mxu0
          %v2083 = vadd.f32 %v2064, %v2082
          %2084 = vdwg.mxu0
          %2085 = vmatpush.bf16.msra.mxu0 %v1927
          %2086 = vmatpush.bf16.msra.mxu0 %v1921
          %2087 = vmatpush.bf16.msra.mxu0 %v1915
          %2088 = vmatpush.bf16.msra.mxu0 %v1909
          %2089 = vmatpush.bf16.msra.mxu0 %v1903
          %2090 = vmatpush.bf16.msra.mxu0 %v1897
          %2091 = vmatpush.bf16.msra.mxu0 %v1891
          %2092 = vmatpush.bf16.msra.mxu0 %v1885
          %2093 = vmatmul.bf16.gmra.mxu0 %v1693
          %v2094 = vpop.f32.mrf.mxu0
          %v2095 = vadd.f32 0.0, %v2094
          %v2096 = vpop.f32.mrf.mxu0
          %v2097 = vadd.f32 0.0, %v2096
          %2098 = vmatmul.bf16.gmra.mxu0 %v1698
          %v2099 = vpop.f32.mrf.mxu0
          %v2100 = vadd.f32 0.0, %v2099
          %v2101 = vpop.f32.mrf.mxu0
          %v2102 = vadd.f32 0.0, %v2101
          %2103 = vdwg.mxu0
          %2104 = vmatpush.bf16.msra.mxu0 0
          %2105 = vmatpush.bf16.msra.mxu0 0
          %2106 = vmatpush.bf16.msra.mxu0 0
          %2107 = vmatpush.bf16.msra.mxu0 0
          %2108 = vmatpush.bf16.msra.mxu0 0
          %2109 = vmatpush.bf16.msra.mxu0 0
          %2110 = vmatpush.bf16.msra.mxu0 %v1939
          %2111 = vmatpush.bf16.msra.mxu0 %v1933
          %2112 = vmatmul.bf16.gmra.mxu0 %v2004
          %v2113 = vpop.f32.mrf.mxu0
          %v2114 = vadd.f32 %v2095, %v2113
          %v2115 = vpop.f32.mrf.mxu0
          %v2116 = vadd.f32 %v2097, %v2115
          %2117 = vmatmul.bf16.gmra.mxu0 %v2007
          %v2118 = vpop.f32.mrf.mxu0
          %v2119 = vadd.f32 %v2100, %v2118
          %v2120 = vpop.f32.mrf.mxu0
          %v2121 = vadd.f32 %v2102, %v2120
          %2122 = vdwg.mxu0
          %2123 = vmatpush.bf16.msra.mxu0 %v1928
          %2124 = vmatpush.bf16.msra.mxu0 %v1922
          %2125 = vmatpush.bf16.msra.mxu0 %v1916
          %2126 = vmatpush.bf16.msra.mxu0 %v1910
          %2127 = vmatpush.bf16.msra.mxu0 %v1904
          %2128 = vmatpush.bf16.msra.mxu0 %v1898
          %2129 = vmatpush.bf16.msra.mxu0 %v1892
          %2130 = vmatpush.bf16.msra.mxu0 %v1886
          %2131 = vmatmul.bf16.gmra.mxu0 %v1693
          %v2132 = vpop.f32.mrf.mxu0
          %v2133 = vadd.f32 0.0, %v2132
          %v2134 = vpop.f32.mrf.mxu0
          %v2135 = vadd.f32 0.0, %v2134
          %2136 = vmatmul.bf16.gmra.mxu0 %v1698
          %v2137 = vpop.f32.mrf.mxu0
          %v2138 = vadd.f32 0.0, %v2137
          %v2139 = vpop.f32.mrf.mxu0
          %v2140 = vadd.f32 0.0, %v2139
          %2141 = vdwg.mxu0
          %2142 = vmatpush.bf16.msra.mxu0 0
          %2143 = vmatpush.bf16.msra.mxu0 0
          %2144 = vmatpush.bf16.msra.mxu0 0
          %2145 = vmatpush.bf16.msra.mxu0 0
          %2146 = vmatpush.bf16.msra.mxu0 0
          %2147 = vmatpush.bf16.msra.mxu0 0
          %2148 = vmatpush.bf16.msra.mxu0 %v1940
          %2149 = vmatpush.bf16.msra.mxu0 %v1934
          %2150 = vmatmul.bf16.gmra.mxu0 %v2004
          %v2151 = vpop.f32.mrf.mxu0
          %v2152 = vadd.f32 %v2133, %v2151
          %v2153 = vpop.f32.mrf.mxu0
          %v2154 = vadd.f32 %v2135, %v2153
          %2155 = vmatmul.bf16.gmra.mxu0 %v2007
          %v2156 = vpop.f32.mrf.mxu0
          %v2157 = vadd.f32 %v2138, %v2156
          %v2158 = vpop.f32.mrf.mxu0
          %v2159 = vadd.f32 %v2140, %v2158
          %2160 = vdwg.mxu0
          %2161 = vmatpush.bf16.msra.mxu0 %v1929
          %2162 = vmatpush.bf16.msra.mxu0 %v1923
          %2163 = vmatpush.bf16.msra.mxu0 %v1917
          %2164 = vmatpush.bf16.msra.mxu0 %v1911
          %2165 = vmatpush.bf16.msra.mxu0 %v1905
          %2166 = vmatpush.bf16.msra.mxu0 %v1899
          %2167 = vmatpush.bf16.msra.mxu0 %v1893
          %2168 = vmatpush.bf16.msra.mxu0 %v1887
          %2169 = vmatmul.bf16.gmra.mxu0 %v1693
          %v2170 = vpop.f32.mrf.mxu0
          %v2171 = vadd.f32 0.0, %v2170
          %v2172 = vpop.f32.mrf.mxu0
          %v2173 = vadd.f32 0.0, %v2172
          %2174 = vmatmul.bf16.gmra.mxu0 %v1698
          %v2175 = vpop.f32.mrf.mxu0
          %v2176 = vadd.f32 0.0, %v2175
          %v2177 = vpop.f32.mrf.mxu0
          %v2178 = vadd.f32 0.0, %v2177
          %2179 = vdwg.mxu0
          %2180 = vmatpush.bf16.msra.mxu0 0
          %2181 = vmatpush.bf16.msra.mxu0 0
          %2182 = vmatpush.bf16.msra.mxu0 0
          %2183 = vmatpush.bf16.msra.mxu0 0
          %2184 = vmatpush.bf16.msra.mxu0 0
          %2185 = vmatpush.bf16.msra.mxu0 0
          %2186 = vmatpush.bf16.msra.mxu0 %v1941
          %2187 = vmatpush.bf16.msra.mxu0 %v1935
          %2188 = vmatmul.bf16.gmra.mxu0 %v2004
          %v2189 = vpop.f32.mrf.mxu0
          %v2190 = vadd.f32 %v2171, %v2189
          %v2191 = vpop.f32.mrf.mxu0
          %v2192 = vadd.f32 %v2173, %v2191
          %2193 = vmatmul.bf16.gmra.mxu0 %v2007
          %v2194 = vpop.f32.mrf.mxu0
          %v2195 = vadd.f32 %v2176, %v2194
          %v2196 = vpop.f32.mrf.mxu0
          %v2197 = vadd.f32 %v2178, %v2196
          %2198 = vdwg.mxu0
          %2199 = vmatpush.bf16.msra.mxu0 %v1930
          %2200 = vmatpush.bf16.msra.mxu0 %v1924
          %2201 = vmatpush.bf16.msra.mxu0 %v1918
          %2202 = vmatpush.bf16.msra.mxu0 %v1912
          %2203 = vmatpush.bf16.msra.mxu0 %v1906
          %2204 = vmatpush.bf16.msra.mxu0 %v1900
          %2205 = vmatpush.bf16.msra.mxu0 %v1894
          %2206 = vmatpush.bf16.msra.mxu0 %v1888
          %2207 = vmatmul.bf16.gmra.mxu0 %v1693
          %v2208 = vpop.f32.mrf.mxu0
          %v2209 = vadd.f32 0.0, %v2208
          %v2210 = vpop.f32.mrf.mxu0
          %v2211 = vadd.f32 0.0, %v2210
          %2212 = vmatmul.bf16.gmra.mxu0 %v1698
          %v2213 = vpop.f32.mrf.mxu0
          %v2214 = vadd.f32 0.0, %v2213
          %v2215 = vpop.f32.mrf.mxu0
          %v2216 = vadd.f32 0.0, %v2215
          %2217 = vdwg.mxu0
          %2218 = vmatpush.bf16.msra.mxu0 0
          %2219 = vmatpush.bf16.msra.mxu0 0
          %2220 = vmatpush.bf16.msra.mxu0 0
          %2221 = vmatpush.bf16.msra.mxu0 0
          %2222 = vmatpush.bf16.msra.mxu0 0
          %2223 = vmatpush.bf16.msra.mxu0 0
          %2224 = vmatpush.bf16.msra.mxu0 %v1942
          %2225 = vmatpush.bf16.msra.mxu0 %v1936
          %2226 = vmatmul.bf16.gmra.mxu0 %v2004
          %v2227 = vpop.f32.mrf.mxu0
          %v2228 = vadd.f32 %v2209, %v2227
          %v2229 = vpop.f32.mrf.mxu0
          %v2230 = vadd.f32 %v2211, %v2229
          %2231 = vmatmul.bf16.gmra.mxu0 %v2007
          %v2232 = vpop.f32.mrf.mxu0
          %v2233 = vadd.f32 %v2214, %v2232
          %v2234 = vpop.f32.mrf.mxu0
          %v2235 = vadd.f32 %v2216, %v2234
          %2236 = vdwg.mxu0
          %v2237 = vadd.f32 %v1425, %v2038
          %v2238 = vadd.f32 %v1463, %v2076
          %v2239 = vadd.f32 %v1501, %v2114
          %v2240 = vadd.f32 %v1539, %v2152
          %v2241 = vadd.f32 %v1577, %v2190
          %v2242 = vadd.f32 %v1615, %v2228
          %v2243 = vadd.f32 %v1427, %v2040
          %v2244 = vadd.f32 %v1465, %v2078
          %v2245 = vadd.f32 %v1503, %v2116
          %v2246 = vadd.f32 %v1541, %v2154
          %v2247 = vadd.f32 %v1579, %v2192
          %v2248 = vadd.f32 %v1617, %v2230
          %v2249 = vadd.f32 %v1430, %v2043
          %v2250 = vadd.f32 %v1468, %v2081
          %v2251 = vadd.f32 %v1506, %v2119
          %v2252 = vadd.f32 %v1544, %v2157
          %v2253 = vadd.f32 %v1582, %v2195
          %v2254 = vadd.f32 %v1620, %v2233
          %v2255 = vadd.f32 %v1432, %v2045
          %v2256 = vadd.f32 %v1470, %v2083
          %v2257 = vadd.f32 %v1508, %v2121
          %v2258 = vadd.f32 %v1546, %v2159
          %v2259 = vadd.f32 %v1584, %v2197
          %v2260 = vadd.f32 %v1622, %v2235
          %v2261 = vld [vmem:[#allocation4 + $0x5a0] sm:$0xff]
          %v2262 = vld [vmem:[#allocation4 + $0x5a8] sm:$0xff]
          %v2263 = vld [vmem:[#allocation4 + $0x5b0] sm:$0xff]
          %v2264 = vld [vmem:[#allocation4 + $0x5b8] sm:$0xff]
          %v2265 = vld [vmem:[#allocation4 + $0x5c0] sm:$0xff]
          %v2266 = vld [vmem:[#allocation4 + $0x5c8] sm:$0xff]
          %v2267 = vld [vmem:[#allocation4 + $0x5d0] sm:$0xff]
          %v2268 = vld [vmem:[#allocation4 + $0x5d8] sm:$0xff]
          %v2269 = vld [vmem:[#allocation4 + $0x5e0] sm:$0xff]
          %v2270 = vld [vmem:[#allocation4 + $0x5e8] sm:$0xff]
          %v2271 = vld [vmem:[#allocation4 + $0x5f0] sm:$0xff]
          %v2272 = vld [vmem:[#allocation4 + $0x5f8] sm:$0xff]
          %v2273 = vld [vmem:[#allocation4 + $0x600] sm:$0xff]
          %v2274 = vld [vmem:[#allocation4 + $0x608] sm:$0xff]
          %v2275 = vld [vmem:[#allocation4 + $0x610] sm:$0xff]
          %v2276 = vld [vmem:[#allocation4 + $0x618] sm:$0xff]
          %v2277 = vld [vmem:[#allocation4 + $0x620] sm:$0xff]
          %v2278 = vld [vmem:[#allocation4 + $0x628] sm:$0xff]
          %v2279 = vld [vmem:[#allocation4 + $0x630] sm:$0xff]
          %v2280 = vld [vmem:[#allocation4 + $0x638] sm:$0xff]
          %v2281 = vld [vmem:[#allocation4 + $0x640] sm:$0xff]
          %v2282 = vld [vmem:[#allocation4 + $0x648] sm:$0xff]
          %v2283 = vld [vmem:[#allocation4 + $0x650] sm:$0xff]
          %v2284 = vld [vmem:[#allocation4 + $0x658] sm:$0xff]
          %v2285 = vld [vmem:[#allocation4 + $0x660] sm:$0xff]
          %v2286 = vld [vmem:[#allocation4 + $0x668] sm:$0xff]
          %v2287 = vld [vmem:[#allocation4 + $0x670] sm:$0xff]
          %v2288 = vld [vmem:[#allocation4 + $0x678] sm:$0xff]
          %v2289 = vld [vmem:[#allocation4 + $0x680] sm:$0xff]
          %v2290 = vld [vmem:[#allocation4 + $0x688] sm:$0xff]
          %v2291 = vld [vmem:[#allocation4 + $0x690] sm:$0xff]
          %v2292 = vld [vmem:[#allocation4 + $0x698] sm:$0xff]
          %v2293 = vld [vmem:[#allocation4 + $0x6a0] sm:$0xff]
          %v2294 = vld [vmem:[#allocation4 + $0x6a8] sm:$0xff]
          %v2295 = vld [vmem:[#allocation4 + $0x6b0] sm:$0xff]
          %v2296 = vld [vmem:[#allocation4 + $0x6b8] sm:$0xff]
          %v2297 = vld [vmem:[#allocation4 + $0x6c0] sm:$0xff]
          %v2298 = vld [vmem:[#allocation4 + $0x6c8] sm:$0xff]
          %v2299 = vld [vmem:[#allocation4 + $0x6d0] sm:$0xff]
          %v2300 = vld [vmem:[#allocation4 + $0x6d8] sm:$0xff]
          %v2301 = vld [vmem:[#allocation4 + $0x6e0] sm:$0xff]
          %v2302 = vld [vmem:[#allocation4 + $0x6e8] sm:$0xff]
          %v2303 = vld [vmem:[#allocation4 + $0x6f0] sm:$0xff]
          %v2304 = vld [vmem:[#allocation4 + $0x6f8] sm:$0xff]
          %v2305 = vld [vmem:[#allocation4 + $0x700] sm:$0xff]
          %v2306 = vld [vmem:[#allocation4 + $0x708] sm:$0xff]
          %v2307 = vld [vmem:[#allocation4 + $0x710] sm:$0xff]
          %v2308 = vld [vmem:[#allocation4 + $0x718] sm:$0xff]
          %v2309 = vld [vmem:[#allocation4 + $0x720] sm:$0xff]
          %v2310 = vld [vmem:[#allocation4 + $0x728] sm:$0xff]
          %v2311 = vld [vmem:[#allocation4 + $0x730] sm:$0xff]
          %v2312 = vld [vmem:[#allocation4 + $0x738] sm:$0xff]
          %v2313 = vld [vmem:[#allocation4 + $0x740] sm:$0xff]
          %v2314 = vld [vmem:[#allocation4 + $0x748] sm:$0xff]
          %v2315 = vld [vmem:[#allocation4 + $0x750] sm:$0xff]
          %v2316 = vld [vmem:[#allocation4 + $0x758] sm:$0xff]
          %v2317 = vld [vmem:[#allocation4 + $0x760] sm:$0xff]
          %v2318 = vld [vmem:[#allocation4 + $0x768] sm:$0xff]
          %v2319 = vld [vmem:[#allocation4 + $0x770] sm:$0xff]
          %v2320 = vld [vmem:[#allocation4 + $0x778] sm:$0xff]
          %vm2321 = vsmask.f32 6400
          %v2322 = vrot.slane %v516, 1
          %v2323 = vrot.slane %v518, 2
          %v2324 = vor.u32 %v2322, %v2323
          %v2325 = vrot.slane %v539, 1
          %v2326 = vrot.slane %v523, 2
          %v2327 = vor.u32 %v2325, %v2326
          %v2328 = vsel %vm2321, %v2324, %v2327
          %v2329 = vrot.slane %v528, 1
          %v2330 = vrot.slane %v530, 2
          %v2331 = vor.u32 %v2329, %v2330
          %v2332 = vrot.slane %v547, 1
          %v2333 = vrot.slane %v535, 2
          %v2334 = vor.u32 %v2332, %v2333
          %v2335 = vsel %vm2321, %v2331, %v2334
          %v2336 = vshrl.u32 %v452, 16
          %v2338 = vrot.slane %v2336, 1
          %v2339 = vrot.slane %v543, 2
          %v2340 = vor.u32 %v2338, %v2339
          %v2341 = vsel %vm2321, %v2327, %v2340
          %v2342 = vshrl.u32 %v453, 16
          %v2344 = vrot.slane %v2342, 1
          %v2345 = vrot.slane %v551, 2
          %v2346 = vor.u32 %v2344, %v2345
          %v2347 = vsel %vm2321, %v2334, %v2346
          %v2410 = vunpack.c.l.b16 %v2261
          %v2411 = vunpack.c.h.b16 %v2261
          %v2412 = vunpack.c.l.b16 %v2262
          %v2413 = vunpack.c.h.b16 %v2262
          %v2414 = vunpack.c.l.b16 %v2263
          %v2415 = vunpack.c.h.b16 %v2263
          %v2416 = vunpack.c.l.b16 %v2264
          %v2417 = vunpack.c.h.b16 %v2264
          %v2418 = vunpack.c.l.b16 %v2265
          %v2419 = vunpack.c.h.b16 %v2265
          %v2420 = vunpack.c.l.b16 %v2266
          %v2421 = vunpack.c.h.b16 %v2266
          %v2422 = vunpack.c.l.b16 %v2267
          %v2423 = vunpack.c.h.b16 %v2267
          %v2424 = vunpack.c.l.b16 %v2268
          %v2425 = vunpack.c.h.b16 %v2268
          %v2426 = vunpack.c.l.b16 %v2269
          %v2427 = vunpack.c.h.b16 %v2269
          %v2428 = vunpack.c.l.b16 %v2270
          %v2429 = vunpack.c.h.b16 %v2270
          %v2430 = vunpack.c.l.b16 %v2271
          %v2431 = vunpack.c.h.b16 %v2271
          %v2432 = vunpack.c.l.b16 %v2272
          %v2433 = vunpack.c.h.b16 %v2272
          %v2434 = vunpack.c.l.b16 %v2273
          %v2435 = vunpack.c.h.b16 %v2273
          %v2436 = vunpack.c.l.b16 %v2274
          %v2437 = vunpack.c.h.b16 %v2274
          %v2438 = vunpack.c.l.b16 %v2275
          %v2439 = vunpack.c.h.b16 %v2275
          %v2440 = vunpack.c.l.b16 %v2276
          %v2441 = vunpack.c.h.b16 %v2276
          %v2442 = vunpack.c.l.b16 %v2277
          %v2443 = vunpack.c.h.b16 %v2277
          %v2444 = vunpack.c.l.b16 %v2278
          %v2445 = vunpack.c.h.b16 %v2278
          %v2446 = vunpack.c.l.b16 %v2279
          %v2447 = vunpack.c.h.b16 %v2279
          %v2448 = vunpack.c.l.b16 %v2280
          %v2449 = vunpack.c.h.b16 %v2280
          %v2450 = vunpack.c.l.b16 %v2281
          %v2451 = vunpack.c.h.b16 %v2281
          %v2452 = vunpack.c.l.b16 %v2282
          %v2453 = vunpack.c.h.b16 %v2282
          %v2454 = vunpack.c.l.b16 %v2283
          %v2455 = vunpack.c.h.b16 %v2283
          %v2456 = vunpack.c.l.b16 %v2284
          %v2457 = vunpack.c.h.b16 %v2284
          %v2458 = vunpack.c.l.b16 %v2285
          %v2459 = vunpack.c.h.b16 %v2285
          %v2460 = vunpack.c.l.b16 %v2286
          %v2461 = vunpack.c.h.b16 %v2286
          %v2462 = vunpack.c.l.b16 %v2287
          %v2463 = vunpack.c.h.b16 %v2287
          %v2464 = vunpack.c.l.b16 %v2288
          %v2465 = vunpack.c.h.b16 %v2288
          %v2466 = vunpack.c.l.b16 %v2289
          %v2467 = vunpack.c.h.b16 %v2289
          %v2468 = vunpack.c.l.b16 %v2290
          %v2469 = vunpack.c.h.b16 %v2290
          %v2470 = vunpack.c.l.b16 %v2291
          %v2471 = vunpack.c.h.b16 %v2291
          %v2472 = vunpack.c.l.b16 %v2292
          %v2473 = vunpack.c.h.b16 %v2292
          %v2474 = vunpack.c.l.b16 %v2293
          %v2475 = vunpack.c.h.b16 %v2293
          %v2476 = vunpack.c.l.b16 %v2294
          %v2477 = vunpack.c.h.b16 %v2294
          %v2478 = vunpack.c.l.b16 %v2295
          %v2479 = vunpack.c.h.b16 %v2295
          %v2480 = vunpack.c.l.b16 %v2296
          %v2481 = vunpack.c.h.b16 %v2296
          %v2482 = vunpack.c.l.b16 %v2297
          %v2483 = vunpack.c.h.b16 %v2297
          %v2484 = vunpack.c.l.b16 %v2298
          %v2485 = vunpack.c.h.b16 %v2298
          %v2486 = vunpack.c.l.b16 %v2299
          %v2487 = vunpack.c.h.b16 %v2299
          %v2488 = vunpack.c.l.b16 %v2300
          %v2489 = vunpack.c.h.b16 %v2300
          %v2490 = vunpack.c.l.b16 %v2301
          %v2491 = vunpack.c.h.b16 %v2301
          %v2492 = vunpack.c.l.b16 %v2302
          %v2493 = vunpack.c.h.b16 %v2302
          %v2494 = vunpack.c.l.b16 %v2303
          %v2495 = vunpack.c.h.b16 %v2303
          %v2496 = vunpack.c.l.b16 %v2304
          %v2497 = vunpack.c.h.b16 %v2304
          %v2498 = vunpack.c.l.b16 %v2305
          %v2499 = vunpack.c.h.b16 %v2305
          %v2500 = vunpack.c.l.b16 %v2306
          %v2501 = vunpack.c.h.b16 %v2306
          %v2502 = vunpack.c.l.b16 %v2307
          %v2503 = vunpack.c.h.b16 %v2307
          %v2504 = vunpack.c.l.b16 %v2308
          %v2505 = vunpack.c.h.b16 %v2308
          %v2506 = vunpack.c.l.b16 %v2309
          %v2507 = vunpack.c.h.b16 %v2309
          %v2508 = vunpack.c.l.b16 %v2310
          %v2509 = vunpack.c.h.b16 %v2310
          %v2510 = vunpack.c.l.b16 %v2311
          %v2511 = vunpack.c.h.b16 %v2311
          %v2512 = vunpack.c.l.b16 %v2312
          %v2513 = vunpack.c.h.b16 %v2312
          %v2514 = vunpack.c.l.b16 %v2313
          %v2515 = vunpack.c.h.b16 %v2313
          %v2516 = vunpack.c.l.b16 %v2314
          %v2517 = vunpack.c.h.b16 %v2314
          %v2518 = vunpack.c.l.b16 %v2315
          %v2519 = vunpack.c.h.b16 %v2315
          %v2520 = vunpack.c.l.b16 %v2316
          %v2521 = vunpack.c.h.b16 %v2316
          %v2522 = vunpack.c.l.b16 %v2317
          %v2523 = vunpack.c.h.b16 %v2317
          %v2524 = vunpack.c.l.b16 %v2318
          %v2525 = vunpack.c.h.b16 %v2318
          %v2526 = vunpack.c.l.b16 %v2319
          %v2527 = vunpack.c.h.b16 %v2319
          %v2528 = vunpack.c.l.b16 %v2320
          %v2529 = vunpack.c.h.b16 %v2320
          %v2530 = vpack.c.b16 %v2416, %v2410
          %v2531 = vpack.c.b16 %v2417, %v2411
          %v2532 = vpack.c.b16 %v2418, %v2412
          %v2533 = vpack.c.b16 %v2419, %v2413
          %v2534 = vpack.c.b16 %v2420, %v2414
          %v2535 = vpack.c.b16 %v2421, %v2415
          %v2536 = vpack.c.b16 %v2428, %v2422
          %v2537 = vpack.c.b16 %v2429, %v2423
          %v2538 = vpack.c.b16 %v2430, %v2424
          %v2539 = vpack.c.b16 %v2431, %v2425
          %v2540 = vpack.c.b16 %v2432, %v2426
          %v2541 = vpack.c.b16 %v2433, %v2427
          %v2542 = vpack.c.b16 %v2440, %v2434
          %v2543 = vpack.c.b16 %v2441, %v2435
          %v2544 = vpack.c.b16 %v2442, %v2436
          %v2545 = vpack.c.b16 %v2443, %v2437
          %v2546 = vpack.c.b16 %v2444, %v2438
          %v2547 = vpack.c.b16 %v2445, %v2439
          %v2548 = vpack.c.b16 %v2452, %v2446
          %v2549 = vpack.c.b16 %v2453, %v2447
          %v2550 = vpack.c.b16 %v2454, %v2448
          %v2551 = vpack.c.b16 %v2455, %v2449
          %v2552 = vpack.c.b16 %v2456, %v2450
          %v2553 = vpack.c.b16 %v2457, %v2451
          %v2554 = vpack.c.b16 %v2464, %v2458
          %v2555 = vpack.c.b16 %v2465, %v2459
          %v2556 = vpack.c.b16 %v2466, %v2460
          %v2557 = vpack.c.b16 %v2467, %v2461
          %v2558 = vpack.c.b16 %v2468, %v2462
          %v2559 = vpack.c.b16 %v2469, %v2463
          %v2560 = vpack.c.b16 %v2476, %v2470
          %v2561 = vpack.c.b16 %v2477, %v2471
          %v2562 = vpack.c.b16 %v2478, %v2472
          %v2563 = vpack.c.b16 %v2479, %v2473
          %v2564 = vpack.c.b16 %v2480, %v2474
          %v2565 = vpack.c.b16 %v2481, %v2475
          %v2566 = vpack.c.b16 %v2488, %v2482
          %v2567 = vpack.c.b16 %v2489, %v2483
          %v2568 = vpack.c.b16 %v2490, %v2484
          %v2569 = vpack.c.b16 %v2491, %v2485
          %v2570 = vpack.c.b16 %v2492, %v2486
          %v2571 = vpack.c.b16 %v2493, %v2487
          %v2572 = vpack.c.b16 %v2500, %v2494
          %v2573 = vpack.c.b16 %v2501, %v2495
          %v2574 = vpack.c.b16 %v2502, %v2496
          %v2575 = vpack.c.b16 %v2503, %v2497
          %v2576 = vpack.c.b16 %v2504, %v2498
          %v2577 = vpack.c.b16 %v2505, %v2499
          %v2578 = vpack.c.b16 %v2512, %v2506
          %v2579 = vpack.c.b16 %v2513, %v2507
          %v2580 = vpack.c.b16 %v2514, %v2508
          %v2581 = vpack.c.b16 %v2515, %v2509
          %v2582 = vpack.c.b16 %v2516, %v2510
          %v2583 = vpack.c.b16 %v2517, %v2511
          %v2584 = vpack.c.b16 %v2524, %v2518
          %v2585 = vpack.c.b16 %v2525, %v2519
          %v2586 = vpack.c.b16 %v2526, %v2520
          %v2587 = vpack.c.b16 %v2527, %v2521
          %v2588 = vpack.c.b16 %v2528, %v2522
          %v2589 = vpack.c.b16 %v2529, %v2523
          %v2651 = vsel %vm857, %v2335, 0
          %v2654 = vsel %vm857, %v2347, 0
          %2656 = vmatpush.bf16.msra.mxu0 %v2572
          %2657 = vmatpush.bf16.msra.mxu0 %v2566
          %2658 = vmatpush.bf16.msra.mxu0 %v2560
          %2659 = vmatpush.bf16.msra.mxu0 %v2554
          %2660 = vmatpush.bf16.msra.mxu0 %v2548
          %2661 = vmatpush.bf16.msra.mxu0 %v2542
          %2662 = vmatpush.bf16.msra.mxu0 %v2536
          %2663 = vmatpush.bf16.msra.mxu0 %v2530
          %2664 = vmatmul.bf16.gmra.mxu0 %v2328
          %v2665 = vpop.f32.mrf.mxu0
          %v2666 = vadd.f32 0.0, %v2665
          %v2667 = vpop.f32.mrf.mxu0
          %v2668 = vadd.f32 0.0, %v2667
          %2669 = vmatmul.bf16.gmra.mxu0 %v2341
          %v2670 = vpop.f32.mrf.mxu0
          %v2671 = vadd.f32 0.0, %v2670
          %v2672 = vpop.f32.mrf.mxu0
          %v2673 = vadd.f32 0.0, %v2672
          %2674 = vdwg.mxu0
          %2675 = vmatpush.bf16.msra.mxu0 0
          %2676 = vmatpush.bf16.msra.mxu0 0
          %2677 = vmatpush.bf16.msra.mxu0 0
          %2678 = vmatpush.bf16.msra.mxu0 0
          %2679 = vmatpush.bf16.msra.mxu0 0
          %2680 = vmatpush.bf16.msra.mxu0 0
          %2681 = vmatpush.bf16.msra.mxu0 %v2584
          %2682 = vmatpush.bf16.msra.mxu0 %v2578
          %2683 = vmatmul.bf16.gmra.mxu0 %v2651
          %v2684 = vpop.f32.mrf.mxu0
          %v2685 = vadd.f32 %v2666, %v2684
          %v2686 = vpop.f32.mrf.mxu0
          %v2687 = vadd.f32 %v2668, %v2686
          %2688 = vmatmul.bf16.gmra.mxu0 %v2654
          %v2689 = vpop.f32.mrf.mxu0
          %v2690 = vadd.f32 %v2671, %v2689
          %v2691 = vpop.f32.mrf.mxu0
          %v2692 = vadd.f32 %v2673, %v2691
          %2693 = vdwg.mxu0
          %2694 = vmatpush.bf16.msra.mxu0 %v2573
          %2695 = vmatpush.bf16.msra.mxu0 %v2567
          %2696 = vmatpush.bf16.msra.mxu0 %v2561
          %2697 = vmatpush.bf16.msra.mxu0 %v2555
          %2698 = vmatpush.bf16.msra.mxu0 %v2549
          %2699 = vmatpush.bf16.msra.mxu0 %v2543
          %2700 = vmatpush.bf16.msra.mxu0 %v2537
          %2701 = vmatpush.bf16.msra.mxu0 %v2531
          %2702 = vmatmul.bf16.gmra.mxu0 %v2328
          %v2703 = vpop.f32.mrf.mxu0
          %v2704 = vadd.f32 0.0, %v2703
          %v2705 = vpop.f32.mrf.mxu0
          %v2706 = vadd.f32 0.0, %v2705
          %2707 = vmatmul.bf16.gmra.mxu0 %v2341
          %v2708 = vpop.f32.mrf.mxu0
          %v2709 = vadd.f32 0.0, %v2708
          %v2710 = vpop.f32.mrf.mxu0
          %v2711 = vadd.f32 0.0, %v2710
          %2712 = vdwg.mxu0
          %2713 = vmatpush.bf16.msra.mxu0 0
          %2714 = vmatpush.bf16.msra.mxu0 0
          %2715 = vmatpush.bf16.msra.mxu0 0
          %2716 = vmatpush.bf16.msra.mxu0 0
          %2717 = vmatpush.bf16.msra.mxu0 0
          %2718 = vmatpush.bf16.msra.mxu0 0
          %2719 = vmatpush.bf16.msra.mxu0 %v2585
          %2720 = vmatpush.bf16.msra.mxu0 %v2579
          %2721 = vmatmul.bf16.gmra.mxu0 %v2651
          %v2722 = vpop.f32.mrf.mxu0
          %v2723 = vadd.f32 %v2704, %v2722
          %v2724 = vpop.f32.mrf.mxu0
          %v2725 = vadd.f32 %v2706, %v2724
          %2726 = vmatmul.bf16.gmra.mxu0 %v2654
          %v2727 = vpop.f32.mrf.mxu0
          %v2728 = vadd.f32 %v2709, %v2727
          %v2729 = vpop.f32.mrf.mxu0
          %v2730 = vadd.f32 %v2711, %v2729
          %2731 = vdwg.mxu0
          %2732 = vmatpush.bf16.msra.mxu0 %v2574
          %2733 = vmatpush.bf16.msra.mxu0 %v2568
          %2734 = vmatpush.bf16.msra.mxu0 %v2562
          %2735 = vmatpush.bf16.msra.mxu0 %v2556
          %2736 = vmatpush.bf16.msra.mxu0 %v2550
          %2737 = vmatpush.bf16.msra.mxu0 %v2544
          %2738 = vmatpush.bf16.msra.mxu0 %v2538
          %2739 = vmatpush.bf16.msra.mxu0 %v2532
          %2740 = vmatmul.bf16.gmra.mxu0 %v2328
          %v2741 = vpop.f32.mrf.mxu0
          %v2742 = vadd.f32 0.0, %v2741
          %v2743 = vpop.f32.mrf.mxu0
          %v2744 = vadd.f32 0.0, %v2743
          %2745 = vmatmul.bf16.gmra.mxu0 %v2341
          %v2746 = vpop.f32.mrf.mxu0
          %v2747 = vadd.f32 0.0, %v2746
          %v2748 = vpop.f32.mrf.mxu0
          %v2749 = vadd.f32 0.0, %v2748
          %2750 = vdwg.mxu0
          %2751 = vmatpush.bf16.msra.mxu0 0
          %2752 = vmatpush.bf16.msra.mxu0 0
          %2753 = vmatpush.bf16.msra.mxu0 0
          %2754 = vmatpush.bf16.msra.mxu0 0
          %2755 = vmatpush.bf16.msra.mxu0 0
          %2756 = vmatpush.bf16.msra.mxu0 0
          %2757 = vmatpush.bf16.msra.mxu0 %v2586
          %2758 = vmatpush.bf16.msra.mxu0 %v2580
          %2759 = vmatmul.bf16.gmra.mxu0 %v2651
          %v2760 = vpop.f32.mrf.mxu0
          %v2761 = vadd.f32 %v2742, %v2760
          %v2762 = vpop.f32.mrf.mxu0
          %v2763 = vadd.f32 %v2744, %v2762
          %2764 = vmatmul.bf16.gmra.mxu0 %v2654
          %v2765 = vpop.f32.mrf.mxu0
          %v2766 = vadd.f32 %v2747, %v2765
          %v2767 = vpop.f32.mrf.mxu0
          %v2768 = vadd.f32 %v2749, %v2767
          %2769 = vdwg.mxu0
          %2770 = vmatpush.bf16.msra.mxu0 %v2575
          %2771 = vmatpush.bf16.msra.mxu0 %v2569
          %2772 = vmatpush.bf16.msra.mxu0 %v2563
          %2773 = vmatpush.bf16.msra.mxu0 %v2557
          %2774 = vmatpush.bf16.msra.mxu0 %v2551
          %2775 = vmatpush.bf16.msra.mxu0 %v2545
          %2776 = vmatpush.bf16.msra.mxu0 %v2539
          %2777 = vmatpush.bf16.msra.mxu0 %v2533
          %2778 = vmatmul.bf16.gmra.mxu0 %v2328
          %v2779 = vpop.f32.mrf.mxu0
          %v2780 = vadd.f32 0.0, %v2779
          %v2781 = vpop.f32.mrf.mxu0
          %v2782 = vadd.f32 0.0, %v2781
          %2783 = vmatmul.bf16.gmra.mxu0 %v2341
          %v2784 = vpop.f32.mrf.mxu0
          %v2785 = vadd.f32 0.0, %v2784
          %v2786 = vpop.f32.mrf.mxu0
          %v2787 = vadd.f32 0.0, %v2786
          %2788 = vdwg.mxu0
          %2789 = vmatpush.bf16.msra.mxu0 0
          %2790 = vmatpush.bf16.msra.mxu0 0
          %2791 = vmatpush.bf16.msra.mxu0 0
          %2792 = vmatpush.bf16.msra.mxu0 0
          %2793 = vmatpush.bf16.msra.mxu0 0
          %2794 = vmatpush.bf16.msra.mxu0 0
          %2795 = vmatpush.bf16.msra.mxu0 %v2587
          %2796 = vmatpush.bf16.msra.mxu0 %v2581
          %2797 = vmatmul.bf16.gmra.mxu0 %v2651
          %v2798 = vpop.f32.mrf.mxu0
          %v2799 = vadd.f32 %v2780, %v2798
          %v2800 = vpop.f32.mrf.mxu0
          %v2801 = vadd.f32 %v2782, %v2800
          %2802 = vmatmul.bf16.gmra.mxu0 %v2654
          %v2803 = vpop.f32.mrf.mxu0
          %v2804 = vadd.f32 %v2785, %v2803
          %v2805 = vpop.f32.mrf.mxu0
          %v2806 = vadd.f32 %v2787, %v2805
          %2807 = vdwg.mxu0
          %2808 = vmatpush.bf16.msra.mxu0 %v2576
          %2809 = vmatpush.bf16.msra.mxu0 %v2570
          %2810 = vmatpush.bf16.msra.mxu0 %v2564
          %2811 = vmatpush.bf16.msra.mxu0 %v2558
          %2812 = vmatpush.bf16.msra.mxu0 %v2552
          %2813 = vmatpush.bf16.msra.mxu0 %v2546
          %2814 = vmatpush.bf16.msra.mxu0 %v2540
          %2815 = vmatpush.bf16.msra.mxu0 %v2534
          %2816 = vmatmul.bf16.gmra.mxu0 %v2328
          %v2817 = vpop.f32.mrf.mxu0
          %v2818 = vadd.f32 0.0, %v2817
          %v2819 = vpop.f32.mrf.mxu0
          %v2820 = vadd.f32 0.0, %v2819
          %2821 = vmatmul.bf16.gmra.mxu0 %v2341
          %v2822 = vpop.f32.mrf.mxu0
          %v2823 = vadd.f32 0.0, %v2822
          %v2824 = vpop.f32.mrf.mxu0
          %v2825 = vadd.f32 0.0, %v2824
          %2826 = vdwg.mxu0
          %2827 = vmatpush.bf16.msra.mxu0 0
          %2828 = vmatpush.bf16.msra.mxu0 0
          %2829 = vmatpush.bf16.msra.mxu0 0
          %2830 = vmatpush.bf16.msra.mxu0 0
          %2831 = vmatpush.bf16.msra.mxu0 0
          %2832 = vmatpush.bf16.msra.mxu0 0
          %2833 = vmatpush.bf16.msra.mxu0 %v2588
          %2834 = vmatpush.bf16.msra.mxu0 %v2582
          %2835 = vmatmul.bf16.gmra.mxu0 %v2651
          %v2836 = vpop.f32.mrf.mxu0
          %v2837 = vadd.f32 %v2818, %v2836
          %v2838 = vpop.f32.mrf.mxu0
          %v2839 = vadd.f32 %v2820, %v2838
          %2840 = vmatmul.bf16.gmra.mxu0 %v2654
          %v2841 = vpop.f32.mrf.mxu0
          %v2842 = vadd.f32 %v2823, %v2841
          %v2843 = vpop.f32.mrf.mxu0
          %v2844 = vadd.f32 %v2825, %v2843
          %2845 = vdwg.mxu0
          %2846 = vmatpush.bf16.msra.mxu0 %v2577
          %2847 = vmatpush.bf16.msra.mxu0 %v2571
          %2848 = vmatpush.bf16.msra.mxu0 %v2565
          %2849 = vmatpush.bf16.msra.mxu0 %v2559
          %2850 = vmatpush.bf16.msra.mxu0 %v2553
          %2851 = vmatpush.bf16.msra.mxu0 %v2547
          %2852 = vmatpush.bf16.msra.mxu0 %v2541
          %2853 = vmatpush.bf16.msra.mxu0 %v2535
          %2854 = vmatmul.bf16.gmra.mxu0 %v2328
          %v2855 = vpop.f32.mrf.mxu0
          %v2856 = vadd.f32 0.0, %v2855
          %v2857 = vpop.f32.mrf.mxu0
          %v2858 = vadd.f32 0.0, %v2857
          %2859 = vmatmul.bf16.gmra.mxu0 %v2341
          %v2860 = vpop.f32.mrf.mxu0
          %v2861 = vadd.f32 0.0, %v2860
          %v2862 = vpop.f32.mrf.mxu0
          %v2863 = vadd.f32 0.0, %v2862
          %2864 = vdwg.mxu0
          %2865 = vmatpush.bf16.msra.mxu0 0
          %2866 = vmatpush.bf16.msra.mxu0 0
          %2867 = vmatpush.bf16.msra.mxu0 0
          %2868 = vmatpush.bf16.msra.mxu0 0
          %2869 = vmatpush.bf16.msra.mxu0 0
          %2870 = vmatpush.bf16.msra.mxu0 0
          %2871 = vmatpush.bf16.msra.mxu0 %v2589
          %2872 = vmatpush.bf16.msra.mxu0 %v2583
          %2873 = vmatmul.bf16.gmra.mxu0 %v2651
          %v2874 = vpop.f32.mrf.mxu0
          %v2875 = vadd.f32 %v2856, %v2874
          %v2876 = vpop.f32.mrf.mxu0
          %v2877 = vadd.f32 %v2858, %v2876
          %2878 = vmatmul.bf16.gmra.mxu0 %v2654
          %v2879 = vpop.f32.mrf.mxu0
          %v2880 = vadd.f32 %v2861, %v2879
          %v2881 = vpop.f32.mrf.mxu0
          %v2882 = vadd.f32 %v2863, %v2881
          %2883 = vdwg.mxu0
          %v2884 = vadd.f32 %v2237, %v2685
          %v2885 = vadd.f32 %v2238, %v2723
          %v2886 = vadd.f32 %v2239, %v2761
          %v2887 = vadd.f32 %v2240, %v2799
          %v2888 = vadd.f32 %v2241, %v2837
          %v2889 = vadd.f32 %v2242, %v2875
          %v2890 = vadd.f32 %v2243, %v2687
          %v2891 = vadd.f32 %v2244, %v2725
          %v2892 = vadd.f32 %v2245, %v2763
          %v2893 = vadd.f32 %v2246, %v2801
          %v2894 = vadd.f32 %v2247, %v2839
          %v2895 = vadd.f32 %v2248, %v2877
          %v2896 = vadd.f32 %v2249, %v2690
          %v2897 = vadd.f32 %v2250, %v2728
          %v2898 = vadd.f32 %v2251, %v2766
          %v2899 = vadd.f32 %v2252, %v2804
          %v2900 = vadd.f32 %v2253, %v2842
          %v2901 = vadd.f32 %v2254, %v2880
          %v2902 = vadd.f32 %v2255, %v2692
          %v2903 = vadd.f32 %v2256, %v2730
          %v2904 = vadd.f32 %v2257, %v2768
          %v2905 = vadd.f32 %v2258, %v2806
          %v2906 = vadd.f32 %v2259, %v2844
          %v2907 = vadd.f32 %v2260, %v2882
          %v2908 = vmul.f32 %v2884, %v2884
          %v2909 = vmul.f32 %v2885, %v2885
          %v2910 = vmul.f32 %v2886, %v2886
          %v2911 = vmul.f32 %v2890, %v2890
          %v2912 = vmul.f32 %v2891, %v2891
          %v2913 = vmul.f32 %v2892, %v2892
          %v2914 = vmul.f32 %v2896, %v2896
          %v2915 = vmul.f32 %v2897, %v2897
          %v2916 = vmul.f32 %v2898, %v2898
          %v2917 = vmul.f32 %v2902, %v2902
          %v2918 = vmul.f32 %v2903, %v2903
          %v2919 = vmul.f32 %v2904, %v2904
          %v2920 = vmul.f32 %v2887, %v2887
          %v2921 = vmul.f32 %v2888, %v2888
          %v2922 = vmul.f32 %v2889, %v2889
          %v2923 = vmul.f32 %v2893, %v2893
          %v2924 = vmul.f32 %v2894, %v2894
          %v2925 = vmul.f32 %v2895, %v2895
          %v2926 = vmul.f32 %v2899, %v2899
          %v2927 = vmul.f32 %v2900, %v2900
          %v2928 = vmul.f32 %v2901, %v2901
          %v2929 = vmul.f32 %v2905, %v2905
          %v2930 = vmul.f32 %v2906, %v2906
          %v2931 = vmul.f32 %v2907, %v2907
          %v2932 = vadd.f32 %v2908, %v2920
          %v2933 = vadd.f32 %v2909, %v2921
          %v2934 = vadd.f32 %v2910, %v2922
          %v2935 = vadd.f32 %v2911, %v2923
          %v2936 = vadd.f32 %v2912, %v2924
          %v2937 = vadd.f32 %v2913, %v2925
          %v2938 = vadd.f32 %v2914, %v2926
          %v2939 = vadd.f32 %v2915, %v2927
          %v2940 = vadd.f32 %v2916, %v2928
          %v2941 = vadd.f32 %v2917, %v2929
          %v2942 = vadd.f32 %v2918, %v2930
          %v2943 = vadd.f32 %v2919, %v2931
          %v2944 = vpack.c.bf16 %v2935, %v2932
          %v2945 = vpack.c.bf16 %v2936, %v2933
          %v2946 = vpack.c.bf16 %v2937, %v2934
          %v2947 = vpack.c.bf16 %v2941, %v2938
          %v2948 = vpack.c.bf16 %v2942, %v2939
          %v2949 = vpack.c.bf16 %v2943, %v2940
          %v2950 = vld [vmem:[%s4] sm:$0xf]
          %v2951 = vld [vmem:[%s4 + $0x4] sm:$0xf]
          %v2952 = vld [vmem:[%s4 + $0x8] sm:$0xf]
          %v2953 = vld [vmem:[%s4 + $0xc] sm:$0xf]
          %v2954 = vld [vmem:[%s4 + $0x10] sm:$0xf]
          %v2955 = vld [vmem:[%s4 + $0x14] sm:$0xf]
          %v2956 = vld [vmem:[%s4 + $0x18] sm:$0xf]
          %v2957 = vld [vmem:[%s4 + $0x1c] sm:$0xf]
          %v2958 = vld [vmem:[%s4 + $0x20] sm:$0xf]
          %v2959 = vld [vmem:[%s4 + $0x24] sm:$0xf]
          %v2960 = vld [vmem:[%s4 + $0x28] sm:$0xf]
          %v2961 = vld [vmem:[%s4 + $0x2c] sm:$0xf]
          %v2962 = vld [vmem:[%s4 + $0x30] sm:$0xf]
          %v2963 = vld [vmem:[%s4 + $0x34] sm:$0xf]
          %v2964 = vld [vmem:[%s4 + $0x38] sm:$0xf]
          %v2965 = vld [vmem:[%s4 + $0x3c] sm:$0xf]
          %v2966 = vld [vmem:[%s4 + $0x40] sm:$0xf]
          %v2967 = vld [vmem:[%s4 + $0x44] sm:$0xf]
          %v2968 = vld [vmem:[%s4 + $0x48] sm:$0xf]
          %v2969 = vld [vmem:[%s4 + $0x4c] sm:$0xf]
          %v2970 = vld [vmem:[%s4 + $0x50] sm:$0xf]
          %v2971 = vld [vmem:[%s4 + $0x54] sm:$0xf]
          %v2972 = vld [vmem:[%s4 + $0x58] sm:$0xf]
          %v2973 = vld [vmem:[%s4 + $0x5c] sm:$0xf]
          %v2974 = vld [vmem:[%s4 + $0x60] sm:$0xf]
          %v2975 = vld [vmem:[%s4 + $0x64] sm:$0xf]
          %v2976 = vld [vmem:[%s4 + $0x68] sm:$0xf]
          %v2977 = vld [vmem:[%s4 + $0x6c] sm:$0xf]
          %v2978 = vld [vmem:[%s4 + $0x70] sm:$0xf]
          %v2979 = vld [vmem:[%s4 + $0x74] sm:$0xf]
          %v2980 = vld [vmem:[%s4 + $0x78] sm:$0xf]
          %v2981 = vld [vmem:[%s4 + $0x7c] sm:$0xf]
          %v2982 = vld [vmem:[%s4 + $0x80] sm:$0xf]
          %v2983 = vld [vmem:[%s4 + $0x84] sm:$0xf]
          %v2984 = vld [vmem:[%s4 + $0x88] sm:$0xf]
          %v2985 = vld [vmem:[%s4 + $0x8c] sm:$0xf]
          %v2986 = vld [vmem:[%s4 + $0x90] sm:$0xf]
          %v2987 = vld [vmem:[%s4 + $0x94] sm:$0xf]
          %v2988 = vld [vmem:[%s4 + $0x98] sm:$0xf]
          %v2989 = vld [vmem:[%s4 + $0x9c] sm:$0xf]
          %v2990 = vld [vmem:[%s4 + $0xa0] sm:$0xf]
          %v2991 = vld [vmem:[%s4 + $0xa4] sm:$0xf]
          %v2992 = vld [vmem:[%s4 + $0xa8] sm:$0xf]
          %v2993 = vld [vmem:[%s4 + $0xac] sm:$0xf]
          %v2994 = vld [vmem:[%s4 + $0xb0] sm:$0xf]
          %v2995 = vld [vmem:[%s4 + $0xb4] sm:$0xf]
          %v2996 = vld [vmem:[%s4 + $0xb8] sm:$0xf]
          %v2997 = vld [vmem:[%s4 + $0xbc] sm:$0xf]
          %v3046 = vunpack.c.l.b16 %v2950
          %v3047 = vunpack.c.l.b16 %v2951
          %v3048 = vunpack.c.l.b16 %v2952
          %v3049 = vunpack.c.l.b16 %v2953
          %v3050 = vunpack.c.l.b16 %v2954
          %v3051 = vunpack.c.l.b16 %v2955
          %v3052 = vunpack.c.l.b16 %v2956
          %v3053 = vunpack.c.l.b16 %v2957
          %v3054 = vunpack.c.l.b16 %v2958
          %v3055 = vunpack.c.l.b16 %v2959
          %v3056 = vunpack.c.l.b16 %v2960
          %v3057 = vunpack.c.l.b16 %v2961
          %v3058 = vunpack.c.l.b16 %v2962
          %v3059 = vunpack.c.l.b16 %v2963
          %v3060 = vunpack.c.l.b16 %v2964
          %v3061 = vunpack.c.l.b16 %v2965
          %v3062 = vunpack.c.l.b16 %v2966
          %v3063 = vunpack.c.l.b16 %v2967
          %v3064 = vunpack.c.l.b16 %v2968
          %v3065 = vunpack.c.l.b16 %v2969
          %v3066 = vunpack.c.l.b16 %v2970
          %v3067 = vunpack.c.l.b16 %v2971
          %v3068 = vunpack.c.l.b16 %v2972
          %v3069 = vunpack.c.l.b16 %v2973
          %v3070 = vunpack.c.l.b16 %v2974
          %v3071 = vunpack.c.l.b16 %v2975
          %v3072 = vunpack.c.l.b16 %v2976
          %v3073 = vunpack.c.l.b16 %v2977
          %v3074 = vunpack.c.l.b16 %v2978
          %v3075 = vunpack.c.l.b16 %v2979
          %v3076 = vunpack.c.l.b16 %v2980
          %v3077 = vunpack.c.l.b16 %v2981
          %v3078 = vunpack.c.l.b16 %v2982
          %v3079 = vunpack.c.l.b16 %v2983
          %v3080 = vunpack.c.l.b16 %v2984
          %v3081 = vunpack.c.l.b16 %v2985
          %v3082 = vunpack.c.l.b16 %v2986
          %v3083 = vunpack.c.l.b16 %v2987
          %v3084 = vunpack.c.l.b16 %v2988
          %v3085 = vunpack.c.l.b16 %v2989
          %v3086 = vunpack.c.l.b16 %v2990
          %v3087 = vunpack.c.l.b16 %v2991
          %v3088 = vunpack.c.l.b16 %v2992
          %v3089 = vunpack.c.l.b16 %v2993
          %v3090 = vunpack.c.l.b16 %v2994
          %v3091 = vunpack.c.l.b16 %v2995
          %v3092 = vunpack.c.l.b16 %v2996
          %v3093 = vunpack.c.l.b16 %v2997
          %v3094 = vpack.c.b16 %v3047, %v3046
          %v3095 = vpack.c.b16 %v3049, %v3048
          %v3096 = vpack.c.b16 %v3051, %v3050
          %v3097 = vpack.c.b16 %v3053, %v3052
          %v3098 = vpack.c.b16 %v3055, %v3054
          %v3099 = vpack.c.b16 %v3057, %v3056
          %v3100 = vpack.c.b16 %v3059, %v3058
          %v3101 = vpack.c.b16 %v3061, %v3060
          %v3102 = vpack.c.b16 %v3063, %v3062
          %v3103 = vpack.c.b16 %v3065, %v3064
          %v3104 = vpack.c.b16 %v3067, %v3066
          %v3105 = vpack.c.b16 %v3069, %v3068
          %v3106 = vpack.c.b16 %v3071, %v3070
          %v3107 = vpack.c.b16 %v3073, %v3072
          %v3108 = vpack.c.b16 %v3075, %v3074
          %v3109 = vpack.c.b16 %v3077, %v3076
          %v3110 = vpack.c.b16 %v3079, %v3078
          %v3111 = vpack.c.b16 %v3081, %v3080
          %v3112 = vpack.c.b16 %v3083, %v3082
          %v3113 = vpack.c.b16 %v3085, %v3084
          %v3114 = vpack.c.b16 %v3087, %v3086
          %v3115 = vpack.c.b16 %v3089, %v3088
          %v3116 = vpack.c.b16 %v3091, %v3090
          %v3117 = vpack.c.b16 %v3093, %v3092
          %3142 = vmatpush.bf16.msra.mxu0 %v3101
          %3143 = vmatpush.bf16.msra.mxu0 %v3100
          %3144 = vmatpush.bf16.msra.mxu0 %v3099
          %3145 = vmatpush.bf16.msra.mxu0 %v3098
          %3146 = vmatpush.bf16.msra.mxu0 %v3097
          %3147 = vmatpush.bf16.msra.mxu0 %v3096
          %3148 = vmatpush.bf16.msra.mxu0 %v3095
          %3149 = vmatpush.bf16.msra.mxu0 %v3094
          %3150 = vmatmul.bf16.gmra.mxu0 %v2944
          %v3151 = vpop.f32.mrf.mxu0
          %v3152 = vadd.f32 0.0, %v3151
          %v3153 = vpop.f32.mrf.mxu0
          %v3154 = vadd.f32 0.0, %v3153
          %3155 = vmatmul.bf16.gmra.mxu0 %v2947
          %v3156 = vpop.f32.mrf.mxu0
          %v3157 = vadd.f32 0.0, %v3156
          %v3158 = vpop.f32.mrf.mxu0
          %v3159 = vadd.f32 0.0, %v3158
          %3160 = vdwg.mxu0
          %3161 = vmatpush.bf16.msra.mxu0 %v3109
          %3162 = vmatpush.bf16.msra.mxu0 %v3108
          %3163 = vmatpush.bf16.msra.mxu0 %v3107
          %3164 = vmatpush.bf16.msra.mxu0 %v3106
          %3165 = vmatpush.bf16.msra.mxu0 %v3105
          %3166 = vmatpush.bf16.msra.mxu0 %v3104
          %3167 = vmatpush.bf16.msra.mxu0 %v3103
          %3168 = vmatpush.bf16.msra.mxu0 %v3102
          %3169 = vmatmul.bf16.gmra.mxu0 %v2945
          %v3170 = vpop.f32.mrf.mxu0
          %v3171 = vadd.f32 %v3152, %v3170
          %v3172 = vpop.f32.mrf.mxu0
          %v3173 = vadd.f32 %v3154, %v3172
          %3174 = vmatmul.bf16.gmra.mxu0 %v2948
          %v3175 = vpop.f32.mrf.mxu0
          %v3176 = vadd.f32 %v3157, %v3175
          %v3177 = vpop.f32.mrf.mxu0
          %v3178 = vadd.f32 %v3159, %v3177
          %3179 = vdwg.mxu0
          %3180 = vmatpush.bf16.msra.mxu0 %v3117
          %3181 = vmatpush.bf16.msra.mxu0 %v3116
          %3182 = vmatpush.bf16.msra.mxu0 %v3115
          %3183 = vmatpush.bf16.msra.mxu0 %v3114
          %3184 = vmatpush.bf16.msra.mxu0 %v3113
          %3185 = vmatpush.bf16.msra.mxu0 %v3112
          %3186 = vmatpush.bf16.msra.mxu0 %v3111
          %3187 = vmatpush.bf16.msra.mxu0 %v3110
          %3188 = vmatmul.bf16.gmra.mxu0 %v2946
          %v3189 = vpop.f32.mrf.mxu0
          %v3190 = vadd.f32 %v3171, %v3189
          %v3191 = vpop.f32.mrf.mxu0
          %v3192 = vadd.f32 %v3173, %v3191
          %3193 = vmatmul.bf16.gmra.mxu0 %v2949
          %v3194 = vpop.f32.mrf.mxu0
          %v3195 = vadd.f32 %v3176, %v3194
          %v3196 = vpop.f32.mrf.mxu0
          %v3197 = vadd.f32 %v3178, %v3196
          %3198 = vdwg.mxu0
          %v3199 = vmax.f32 %v3190, 1e-10
          %v3200 = vmax.f32 %v3192, 1e-10
          %v3201 = vmax.f32 %v3195, 1e-10
          %v3202 = vmax.f32 %v3197, 1e-10
          %v3203 = vlog2.pop %v3199
          %v3204 = vmul.f32 %v3203, 0.6931472
          %v3205 = vlog2.pop %v3200
          %v3206 = vmul.f32 %v3205, 0.6931472
          %v3207 = vlog2.pop %v3201
          %v3208 = vmul.f32 %v3207, 0.6931472
          %v3209 = vlog2.pop %v3202
          %v3210 = vmul.f32 %v3209, 0.6931472
          %v3211 = vlaneseq
          %v3212 = vshrl.u32 %v3211, 7
          %v3213 = vadd.s32 %v3212, 8
          %v3214 = vadd.s32 %v3212, 16
          %v3215 = vadd.s32 %v3212, 24
          %v3216 = vstv %s373
          %v3217 = vadd.s32 %v3212, %v3216
          %v3218 = vadd.s32 %v3213, %v3216
          %v3219 = vadd.s32 %v3214, %v3216
          %v3220 = vadd.s32 %v3215, %v3216
          %v3221 = vstv %s372
          %vm3222 = vcmp.lt.s32.totalorder %v3217, %v3221
          %vm3223 = vcmp.lt.s32.totalorder %v3218, %v3221
          %vm3224 = vcmp.lt.s32.totalorder %v3219, %v3221
          %vm3225 = vcmp.lt.s32.totalorder %v3220, %v3221
          %v3226 = vsel %vm3222, 1, 0
          %v3227 = vsel %vm3223, 1, 0
          %v3228 = vsel %vm3224, 1, 0
          %v3229 = vsel %vm3225, 1, 0
          %v3230 = vcvt.s32.f32 %v3226
          %v3231 = vcvt.s32.f32 %v3227
          %v3232 = vcvt.s32.f32 %v3228
          %v3233 = vcvt.s32.f32 %v3229
          %v3234 = vmul.f32 %v3204, %v3230
          %v3235 = vmul.f32 %v3206, %v3231
          %v3236 = vmul.f32 %v3208, %v3232
          %v3237 = vmul.f32 %v3210, %v3233
          %v3238 = vadd.f32 %v3234, %v3235
          %v3239 = vadd.f32 %v3238, %v3236
          %v3240 = vadd.f32 %v3239, %v3237
          %v3241 = vrot.slane %v3240, 4
          %v3242 = vadd.f32 %v3240, %v3241
          %v3243 = vrot.slane %v3242, 2
          %v3244 = vadd.f32 %v3242, %v3243
          %v3245 = vrot.slane %v3244, 1
          %v3246 = vadd.f32 %v3244, %v3245
          %3247 = vst [vmem:[%s370] sm:$0x1] %v3246
          %v3248 = vpack.c.bf16 %v3206, %v3204
          %v3249 = vpack.c.bf16 %v3210, %v3208
          %v3250 = vld [vmem:[%s5] sm:$0xf]
          %v3251 = vld [vmem:[%s5 + $0x4] sm:$0xf]
          %v3252 = vld [vmem:[%s5 + $0x8] sm:$0xf]
          %v3253 = vld [vmem:[%s5 + $0xc] sm:$0xf]
          %v3254 = vld [vmem:[%s5 + $0x10] sm:$0xf]
          %v3255 = vld [vmem:[%s5 + $0x14] sm:$0xf]
          %v3256 = vld [vmem:[%s5 + $0x18] sm:$0xf]
          %v3257 = vld [vmem:[%s5 + $0x1c] sm:$0xf]
          %v3258 = vld [vmem:[%s5 + $0x20] sm:$0xf]
          %v3259 = vld [vmem:[%s5 + $0x24] sm:$0xf]
          %v3260 = vld [vmem:[%s5 + $0x28] sm:$0xf]
          %v3261 = vld [vmem:[%s5 + $0x2c] sm:$0xf]
          %v3262 = vld [vmem:[%s5 + $0x30] sm:$0xf]
          %v3263 = vld [vmem:[%s5 + $0x34] sm:$0xf]
          %v3264 = vld [vmem:[%s5 + $0x38] sm:$0xf]
          %v3265 = vld [vmem:[%s5 + $0x3c] sm:$0xf]
          %v3282 = vunpack.c.l.b16 %v3250
          %v3283 = vunpack.c.l.b16 %v3251
          %v3284 = vunpack.c.l.b16 %v3252
          %v3285 = vunpack.c.l.b16 %v3253
          %v3286 = vunpack.c.l.b16 %v3254
          %v3287 = vunpack.c.l.b16 %v3255
          %v3288 = vunpack.c.l.b16 %v3256
          %v3289 = vunpack.c.l.b16 %v3257
          %v3290 = vunpack.c.l.b16 %v3258
          %v3291 = vunpack.c.l.b16 %v3259
          %v3292 = vunpack.c.l.b16 %v3260
          %v3293 = vunpack.c.l.b16 %v3261
          %v3294 = vunpack.c.l.b16 %v3262
          %v3295 = vunpack.c.l.b16 %v3263
          %v3296 = vunpack.c.l.b16 %v3264
          %v3297 = vunpack.c.l.b16 %v3265
          %v3298 = vpack.c.b16 %v3283, %v3282
          %v3299 = vpack.c.b16 %v3285, %v3284
          %v3300 = vpack.c.b16 %v3287, %v3286
          %v3301 = vpack.c.b16 %v3289, %v3288
          %v3302 = vpack.c.b16 %v3291, %v3290
          %v3303 = vpack.c.b16 %v3293, %v3292
          %v3304 = vpack.c.b16 %v3295, %v3294
          %v3305 = vpack.c.b16 %v3297, %v3296
          %3314 = vmatpush.bf16.msra.mxu0 %v3305
          %3315 = vmatpush.bf16.msra.mxu0 %v3304
          %3316 = vmatpush.bf16.msra.mxu0 %v3303
          %3317 = vmatpush.bf16.msra.mxu0 %v3302
          %3318 = vmatpush.bf16.msra.mxu0 %v3301
          %3319 = vmatpush.bf16.msra.mxu0 %v3300
          %3320 = vmatpush.bf16.msra.mxu0 %v3299
          %3321 = vmatpush.bf16.msra.mxu0 %v3298
          %3322 = vmatmul.bf16.gmra.mxu0 %v3248
          %v3323 = vpop.f32.mrf.mxu0
          %v3324 = vadd.f32 0.0, %v3323
          %v3325 = vpop.f32.mrf.mxu0
          %v3326 = vadd.f32 0.0, %v3325
          %3327 = vmatmul.bf16.gmra.mxu0 %v3249
          %v3328 = vpop.f32.mrf.mxu0
          %v3329 = vadd.f32 0.0, %v3328
          %v3330 = vpop.f32.mrf.mxu0
          %v3331 = vadd.f32 0.0, %v3330
          %3332 = vdwg.mxu0
          %v3333 = vpack.c.bf16 %v3324, %v3324
          %v3334 = vpack.c.bf16 %v3326, %v3326
          %v3335 = vpack.c.bf16 %v3329, %v3329
          %v3336 = vpack.c.bf16 %v3331, %v3331
          %3337 = vst [vmem:[%s363] sm:$0xf] %v3333
          %3338 = vst [vmem:[%s363 + $0x4] sm:$0xf] %v3334
          %3339 = vst [vmem:[%s363 + $0x8] sm:$0xf] %v3335
          %3340 = vst [vmem:[%s363 + $0xc] sm:$0xf] %v3336
        $region48: #{asr_forward.2} parent=39 // pred_fallthru
          _
        %p3341 = scmp.ge.s32.totalorder %s373, %s372
        // Predicated region
        $region49: #{asr_forward.2} parent=39 // pred_check
          %p3342 = pneg %p3341
        $region50: #{asr_forward.2} parent=39 // pred_check_branch
          %3344 = sbr.rel (%p3342) target = $region52
        $region51: #{asr_forward.2} parent=39 // pred_region
          %3345 = vst [vmem:[%s370] sm:$0x1] 0.0
          %3346 = vst [vmem:[%s363] sm:$0xf] 0
          %3347 = vst [vmem:[%s363 + $0x4] sm:$0xf] 0
          %3348 = vst [vmem:[%s363 + $0x8] sm:$0xf] 0
          %3349 = vst [vmem:[%s363 + $0xc] sm:$0xf] 0
        $region52: #{asr_forward.2} parent=39 // pred_fallthru
          _
        %s3350 = smul.u32 4, %s33
        %p3351 = scmp.lt.s32.totalorder %s32, 1
        %s3352 = scalar_select %p3351, %s32, 1
        %p3353 = scmp.lt.s32.totalorder %s3350, 3
        %s3354 = scalar_select %p3353, %s3350, 3
        %s3355 = smul.addr %s3352, 4
        %s3356 = sadd.s32 %s3354, %s3355
        %s3357 = smul.addr %s3356, 4
        %s3358 = scalar_lea.vmem %s6, %s3357
        %p3359 = scmp.lt.s32.totalorder %s32, 1
        %s3360 = scalar_select %p3359, %s32, 1
        %p3361 = scmp.lt.s32.totalorder %s33, 0
        %s3362 = scalar_select %p3361, %s33, 0
        %s3363 = sadd.s32 %s3362, %s3360
        %s3364 = scalar_lea.vmem %s7, %s3363
        // Predicated region
        $region53: #{asr_forward.2} parent=39 // pred_check
          %p3365 = pneg %p179
        $region54: #{asr_forward.2} parent=39 // pred_check_branch
          %3367 = sbr.rel (%p3365) target = $region56
        $region55: #{asr_forward.2} parent=39 // pred_region
          %s3368 = smul.u32 4, %s33
        $region56: #{asr_forward.2} parent=39 // pred_fallthru
          _
        // Predicated region
        $region57: #{asr_forward.2} parent=39 // pred_check
          %p3369 = pneg %p207
        $region58: #{asr_forward.2} parent=39 // pred_check_branch
          %3371 = sbr.rel (%p3369) target = $region60
        $region59: #{asr_forward.2} parent=39 // pred_region
          _
        $region60: #{asr_forward.2} parent=39 // pred_fallthru
          _
      $region40: #{asr_forward.2} parent=5 // pred_fallthru
        _
      %p3372 = scmp.le.s32.totalorder 2, %s23
      // Predicated region
      $region61: #{asr_forward.2} parent=5 // pred_check
        %p3373 = pneg %p3372
      $region62: #{asr_forward.2} parent=5 // pred_check_branch
        %3375 = sbr.rel (%p3373) target = $region64
      $region63: #{asr_forward.2} parent=5 // pred_region
        %s3376 = ssub.s32 %s23, 2
        // Predicated region
        $region65: #{asr_forward.2} parent=63 // pred_check
          %p3377 = pneg %p185
        $region66: #{asr_forward.2} parent=63 // pred_check_branch
          %3379 = sbr.rel (%p3377) target = $region68
        $region67: #{asr_forward.2} parent=63 // pred_region
          %s3380 = smul.u32 4, %s35
          %p3381 = scmp.lt.s32.totalorder %s34, 1
          %s3382 = scalar_select %p3381, %s34, 1
          %p3383 = scmp.lt.s32.totalorder %s3380, 3
          %s3384 = scalar_select %p3383, %s3380, 3
          %s3385 = smul.addr %s3382, 4
          %s3386 = sadd.s32 %s3384, %s3385
          %s3387 = smul.addr %s3386, 4
          %s3388 = scalar_lea.vmem %s6, %s3387
        $region68: #{asr_forward.2} parent=63 // pred_fallthru
          _
        // Predicated region
        $region69: #{asr_forward.2} parent=63 // pred_check
          %p3389 = pneg %p213
        $region70: #{asr_forward.2} parent=63 // pred_check_branch
          %3391 = sbr.rel (%p3389) target = $region72
        $region71: #{asr_forward.2} parent=63 // pred_region
          %p3392 = scmp.lt.s32.totalorder %s34, 1
          %s3393 = scalar_select %p3392, %s34, 1
          %p3394 = scmp.lt.s32.totalorder %s35, 0
          %s3395 = scalar_select %p3394, %s35, 0
          %s3396 = sadd.s32 %s3395, %s3393
          %s3397 = scalar_lea.vmem %s7, %s3396
        $region72: #{asr_forward.2} parent=63 // pred_fallthru
          _
      $region64: #{asr_forward.2} parent=5 // pred_fallthru
        _
    $region6: #{asr_forward.2} parent=1 // loop_footer
      %s27 = sadd.s32 1, %s23
    $region7: #{asr_forward.2} parent=1 // loop_footer_branch
      %22 = sbr.rel target = $region3
    $region8: #{asr_forward.2} parent=1 // loop_exit
      _
    %3398 = vsyncpa [#allocation5], 1
    %s3399 = scalar_lea.sflag [#allocation5], 1
    %3400 = vsyncpa %s3399, 1

</llo_original>
